<compile_context>
chip_gen: v5e
topology: v5e:2x2
jax: 0.10.0
libtpu: 0.0.40
codegen_flags: <defaults>
</compile_context>

<pallas_src>
import numpy as np
import jax
import jax.numpy as jnp
from jax.experimental import pallas as pl
from jax.experimental.pallas import tpu as pltpu


# ---------------------------------------------------------------------------
# Constant selection matrices (built once on host, shipped to VMEM)
# ---------------------------------------------------------------------------
def _pool_select(H, Wp, dst_Wp, pad):
    """0/1 matrix: picks 2x2-maxpool anchors out of the shifted-max slab and scatters
    them into the (optionally zero-padded) next-layer slab (flattened row-major)."""
    W = Wp - 2                      # valid conv output width (Wp = padded width)
    blen = H * Wp - Wp - 3          # length of the shifted-max slab
    dst_Hp = H // 2 + 2 * pad
    G = np.zeros((blen, dst_Hp * dst_Wp), np.float32)
    for ho in range(H // 2):
        for wo in range(W // 2):
            G[(2 * ho) * Wp + 2 * wo, (ho + pad) * dst_Wp + (wo + pad)] = 1.0
    return jnp.asarray(G)


def _mean_select(H, Wp):
    """(T,1) vector with 1/(H*W) at valid conv-output positions (masks pad garbage)."""
    W = Wp - 2
    T = H * Wp - 2
    v = np.zeros((T, 1), np.float32)
    for h in range(H):
        for w in range(W):
            v[h * Wp + w, 0] = 1.0 / float(H * W)
    return jnp.asarray(v)


# ---------------------------------------------------------------------------
# In-kernel helpers
# ---------------------------------------------------------------------------
def _lrelu(y):
    return jnp.maximum(y, 0.1 * y)


def _conv_taps_mxu(p_slab, w_ref, Wp, T, cout):
    """3x3 'same' conv over a zero-padded flattened slab via 9 per-tap MXU matmuls.

    p_slab: (Cin, Hp*Wp) value, w_ref: (9, Cout, Cin) ref, returns (Cout, T) f32."""
    acc = jnp.zeros((cout, T), jnp.float32)
    for ky in range(3):
        for kx in range(3):
            s = ky * Wp + kx
            acc = acc + jnp.dot(w_ref[ky * 3 + kx], p_slab[:, s:s + T],
                                preferred_element_type=jnp.float32)
    return acc


def _pool_max(a, Wp, blen):
    """Elementwise max of the 4 shifted views of a 2x2 window (valid at even anchors)."""
    return jnp.maximum(jnp.maximum(a[:, 0:blen], a[:, 1:blen + 1]),
                       jnp.maximum(a[:, Wp:Wp + blen], a[:, Wp + 1:Wp + 1 + blen]))


# ---------------------------------------------------------------------------
# The forward pass for one sample (one grid step)
# ---------------------------------------------------------------------------
def simple_cnn_kernel(x_ref, w1_ref, b1_ref, w2_ref, b2_ref, w3_ref, b3_ref,
                      sew1_ref, seb1_ref, sew2_ref, seb2_ref,
                      wfc1_ref, bfc1_ref, wfc2_ref, bfc2_ref,
                      g1_ref, g2_ref, g3_ref, msel_ref,
                      out_ref):
    f32 = jnp.float32

    # ---- conv1 + bn1 + leaky_relu (Cin=1 -> 9 cheap VPU broadcast-MACs) ----
    x = x_ref[0]                                    # (1, 676) zero-padded 26x26 plane
    w1 = w1_ref[...]                                # (8, 9), BN scale folded in
    acc1 = jnp.zeros((8, 622), f32)                 # 622 = 24*26 - 2 valid+slack positions
    for ky in range(3):
        for kx in range(3):
            t = ky * 3 + kx
            s = ky * 26 + kx
            acc1 = acc1 + w1[:, t:t + 1] * x[:, s:s + 622]
    a1 = _lrelu(acc1 + b1_ref[...])                 # (8, 622)

    # ---- 2x2 maxpool -> zero-padded 14x14 slab (shifted maxes + selection matmul) ----
    p2 = jnp.dot(_pool_max(a1, 26, 595), g1_ref[...],
                 preferred_element_type=f32)        # (8, 196)

    # ---- conv2 + bn2 + leaky_relu (MXU) ----
    a2 = _lrelu(_conv_taps_mxu(p2, w2_ref, 14, 166, 16) + b2_ref[...])   # (16, 166)

    # ---- SE block: masked spatial mean (matmul) -> 1x1 convs -> sigmoid gate ----
    m = jnp.dot(a2, msel_ref[...], preferred_element_type=f32)           # (16, 1)
    h = jnp.maximum(jnp.dot(sew1_ref[...], m, preferred_element_type=f32)
                    + seb1_ref[...], 0.0)                                # (4, 1)
    z = jnp.dot(sew2_ref[...], h, preferred_element_type=f32) + seb2_ref[...]
    a2 = a2 * (1.0 / (1.0 + jnp.exp(-z)))                                # channel attention

    # ---- pool2, conv3 + bn3 + leaky_relu, pool3 ----
    p3 = jnp.dot(_pool_max(a2, 14, 151), g2_ref[...],
                 preferred_element_type=f32)                             # (16, 64)
    a3 = _lrelu(_conv_taps_mxu(p3, w3_ref, 8, 46, 20) + b3_ref[...])     # (20, 46)
    p9 = jnp.dot(_pool_max(a3, 8, 37), g3_ref[...],
                 preferred_element_type=f32)                             # (20, 9): C x (3x3)

    # ---- fc1 (+leaky_relu), dropout(eval)=identity, fc2 ----
    y = bfc1_ref[...]                                                    # (80, 1)
    for j in range(9):                      # one (80,20)@(20,1) dot per spatial position
        y = y + jnp.dot(wfc1_ref[j], p9[:, j:j + 1], preferred_element_type=f32)
    y = _lrelu(y)
    # TODO(synk): Dropout(0.1) is identity in eval mode; training-mode RNG dropout not implemented.
    out = jnp.dot(wfc2_ref[...], y, preferred_element_type=f32) + bfc2_ref[...]   # (10, 1)
    out_ref[0] = out.astype(out_ref.dtype)


# ---------------------------------------------------------------------------
# Parameters (PyTorch-shaped), kernel-layout preparation, pallas_call wrapper
# ---------------------------------------------------------------------------
def init_params(key):
    ks = jax.random.split(key, 12)
    f32 = jnp.float32

    def nrm(k, shape, scale):
        return jax.random.normal(k, shape, f32) * scale

    return {
        "c1w": nrm(ks[0], (8, 1, 3, 3), 0.30),   "c1b": nrm(ks[1], (8,), 0.10),
        "c2w": nrm(ks[2], (16, 8, 3, 3), 0.10),  "c2b": nrm(ks[3], (16,), 0.10),
        "c3w": nrm(ks[4], (20, 16, 3, 3), 0.10), "c3b": nrm(ks[5], (20,), 0.10),
        "se1w": nrm(ks[6], (4, 16), 0.20),       "se1b": jnp.zeros((4,), f32),
        "se2w": nrm(ks[7], (16, 4), 0.20),       "se2b": jnp.zeros((16,), f32),
        "fc1w": nrm(ks[8], (80, 180), 0.05),     "fc1b": nrm(ks[9], (80,), 0.05),
        "fc2w": nrm(ks[10], (10, 80), 0.10),     "fc2b": nrm(ks[11], (10,), 0.05),
    }


def prepare_params(p):
    """Fold eval-mode BN into conv weights/biases and rearrange to kernel layouts."""
    f32 = jnp.float32
    g = float(1.0 / np.sqrt(1.0 + 1e-5))   # BN eval fold: gamma=1, beta=0, mean=0, var=1
    kp = {
        "w1": (p["c1w"] * g).reshape(8, 9).astype(f32),               # (Cout, ky*3+kx)
        "b1": (p["c1b"] * g).reshape(8, 1).astype(f32),
        "w2": jnp.transpose(p["c2w"] * g, (2, 3, 0, 1)).reshape(9, 16, 8).astype(f32),
        "b2": (p["c2b"] * g).reshape(16, 1).astype(f32),
        "w3": jnp.transpose(p["c3w"] * g, (2, 3, 0, 1)).reshape(9, 20, 16).astype(f32),
        "b3": (p["c3b"] * g).reshape(20, 1).astype(f32),
        "sew1": p["se1w"].astype(f32), "seb1": p["se1b"].reshape(4, 1).astype(f32),
        "sew2": p["se2w"].astype(f32), "seb2": p["se2b"].reshape(16, 1).astype(f32),
        # fc1.weight (80, 180) viewed as (80, C=20, 3, 3) (PyTorch flatten order),
        # rearranged to one (80, 20) block per spatial position j = ho*3 + wo.
        "wfc1": jnp.transpose(p["fc1w"].reshape(80, 20, 3, 3),
                              (2, 3, 0, 1)).reshape(9, 80, 20).astype(f32),
        "bfc1": p["fc1b"].reshape(80, 1).astype(f32),
        "wfc2": p["fc2w"].astype(f32), "bfc2": p["fc2b"].reshape(10, 1).astype(f32),
        # constant pooling / masked-mean selection operands
        "g1": _pool_select(24, 26, 14, pad=1),      # (595, 196)
        "g2": _pool_select(12, 14, 8, pad=1),       # (151, 64)
        "g3": _pool_select(6, 8, 3, pad=0),         # (37, 9)
        "msel": _mean_select(12, 14),               # (166, 1)
    }
    return kp


def _full_spec(a):
    zeros = (0,) * a.ndim
    return pl.BlockSpec(a.shape, lambda i, _z=zeros: _z)


@jax.jit
def simple_cnn_forward(x_nchw, kp):
    f32 = jnp.float32
    n = x_nchw.shape[0]
    # zero-pad (padding=1) and flatten the single input channel plane row-major
    xp = jnp.pad(x_nchw.astype(f32), ((0, 0), (0, 0), (1, 1), (1, 1)))   # (N,1,26,26)
    xf = xp.reshape(n, 1, 26 * 26)                                       # (N,1,676)

    args = (xf, kp["w1"], kp["b1"], kp["w2"], kp["b2"], kp["w3"], kp["b3"],
            kp["sew1"], kp["seb1"], kp["sew2"], kp["seb2"],
            kp["wfc1"], kp["bfc1"], kp["wfc2"], kp["bfc2"],
            kp["g1"], kp["g2"], kp["g3"], kp["msel"])

    in_specs = [pl.BlockSpec((1, 1, 26 * 26), lambda i: (i, 0, 0))]
    in_specs += [_full_spec(a) for a in args[1:]]

    out = pl.pallas_call(
        simple_cnn_kernel,
        grid=(n,),                                  # one sample per grid step
        in_specs=in_specs,
        out_specs=pl.BlockSpec((1, 10, 1), lambda i: (i, 0, 0)),
        out_shape=jax.ShapeDtypeStruct((n, 10, 1), f32),
        compiler_params=pltpu.CompilerParams(
            dimension_semantics=("parallel",)),     # v7x: shard batch over 2 TCs
    )(*args)
    return out[:, :, 0]                             # (N, 10)


# ---------------------------------------------------------------------------
# Pure-JAX reference (outside Pallas) for a correctness check
# ---------------------------------------------------------------------------
def reference_forward(x, p):
    g = 1.0 / jnp.sqrt(jnp.asarray(1.0 + 1e-5, jnp.float32))
    hi = jax.lax.Precision.HIGHEST

    def conv_bn_lrelu(h, w, b):
        y = jax.lax.conv_general_dilated(
            h, w, window_strides=(1, 1), padding="SAME",
            dimension_numbers=("NCHW", "OIHW", "NCHW"), precision=hi)
        y = (y + b.reshape(1, -1, 1, 1)) * g
        return jnp.maximum(y, 0.1 * y)

    def pool(h):
        return jax.lax.reduce_window(h, -jnp.inf, jax.lax.max,
                                     (1, 1, 2, 2), (1, 1, 2, 2), "VALID")

    h = pool(conv_bn_lrelu(x, p["c1w"], p["c1b"]))
    h = conv_bn_lrelu(h, p["c2w"], p["c2b"])
    m = jnp.mean(h, axis=(2, 3))                                         # (N,16)
    s = jnp.maximum(jnp.dot(m, p["se1w"].T, precision=hi) + p["se1b"], 0.0)
    att = jax.nn.sigmoid(jnp.dot(s, p["se2w"].T, precision=hi) + p["se2b"])
    h = h * att[:, :, None, None]
    h = pool(h)
    h = pool(conv_bn_lrelu(h, p["c3w"], p["c3b"]))                       # (N,20,3,3)
    flat = h.reshape(h.shape[0], -1)                                     # (N,180) C-major
    t = jnp.dot(flat, p["fc1w"].T, precision=hi) + p["fc1b"]
    t = jnp.maximum(t, 0.1 * t)
    return jnp.dot(t, p["fc2w"].T, precision=hi) + p["fc2b"]


if __name__ == "__main__":
    key = jax.random.PRNGKey(0)
    pkey, xkey = jax.random.split(key)
    params = init_params(pkey)
    kparams = prepare_params(params)
    # (N, C, H, W) = (2, 1, 24, 24): three 2x2 max-pools give 3x3, matching fc1 = 20*3*3.
    x = jax.random.normal(xkey, (2, 1, 24, 24), jnp.float32)

    out = jax.block_until_ready(simple_cnn_forward(x, kparams))
    assert out.shape == (2, 10) and out.dtype == jnp.float32

    ref = jax.block_until_ready(reference_forward(x, params))
    max_err = float(jnp.max(jnp.abs(out - ref)))
    assert max_err < 2e-2, f"kernel/reference mismatch: max abs err = {max_err}"

    print("KERNEL_OK")
</pallas_src>

<mosaic_0001>
module attributes {stable_mosaic.version = 11 : i64} {
  func.func @simple_cnn_kernel(%arg0: i32, %arg1: memref<1x1x676xf32, #tpu.memory_space<vmem>>, %arg2: memref<8x9xf32, #tpu.memory_space<vmem>>, %arg3: memref<8x1xf32, #tpu.memory_space<vmem>>, %arg4: memref<9x16x8xf32, #tpu.memory_space<vmem>>, %arg5: memref<16x1xf32, #tpu.memory_space<vmem>>, %arg6: memref<9x20x16xf32, #tpu.memory_space<vmem>>, %arg7: memref<20x1xf32, #tpu.memory_space<vmem>>, %arg8: memref<4x16xf32, #tpu.memory_space<vmem>>, %arg9: memref<4x1xf32, #tpu.memory_space<vmem>>, %arg10: memref<16x4xf32, #tpu.memory_space<vmem>>, %arg11: memref<16x1xf32, #tpu.memory_space<vmem>>, %arg12: memref<9x80x20xf32, #tpu.memory_space<vmem>>, %arg13: memref<80x1xf32, #tpu.memory_space<vmem>>, %arg14: memref<10x80xf32, #tpu.memory_space<vmem>>, %arg15: memref<10x1xf32, #tpu.memory_space<vmem>>, %arg16: memref<595x196xf32, #tpu.memory_space<vmem>>, %arg17: memref<151x64xf32, #tpu.memory_space<vmem>>, %arg18: memref<37x9xf32, #tpu.memory_space<vmem>>, %arg19: memref<166x1xf32, #tpu.memory_space<vmem>>, %arg20: memref<1x10x1xf32, #tpu.memory_space<vmem>>) attributes {dimension_semantics = [#tpu.dimension_semantics<parallel>], iteration_bounds = array<i64: 2>, scalar_prefetch = 0 : i64, scratch_operands = 0 : i64, tpu.core_type = #tpu.core_type<tc>, window_params = [{transform_indices = @transform_0, window_bounds = array<i64: 1, 1, 676>}, {pipeline_mode = #tpu.pipeline_mode<synchronous>, transform_indices = @transform_1, window_bounds = array<i64: 8, 9>}, {pipeline_mode = #tpu.pipeline_mode<synchronous>, transform_indices = @transform_2, window_bounds = array<i64: 8, 1>}, {pipeline_mode = #tpu.pipeline_mode<synchronous>, transform_indices = @transform_3, window_bounds = array<i64: 9, 16, 8>}, {pipeline_mode = #tpu.pipeline_mode<synchronous>, transform_indices = @transform_4, window_bounds = array<i64: 16, 1>}, {pipeline_mode = #tpu.pipeline_mode<synchronous>, transform_indices = @transform_5, window_bounds = array<i64: 9, 20, 16>}, {pipeline_mode = #tpu.pipeline_mode<synchronous>, transform_indices = @transform_6, window_bounds = array<i64: 20, 1>}, {pipeline_mode = #tpu.pipeline_mode<synchronous>, transform_indices = @transform_7, window_bounds = array<i64: 4, 16>}, {pipeline_mode = #tpu.pipeline_mode<synchronous>, transform_indices = @transform_8, window_bounds = array<i64: 4, 1>}, {pipeline_mode = #tpu.pipeline_mode<synchronous>, transform_indices = @transform_9, window_bounds = array<i64: 16, 4>}, {pipeline_mode = #tpu.pipeline_mode<synchronous>, transform_indices = @transform_10, window_bounds = array<i64: 16, 1>}, {pipeline_mode = #tpu.pipeline_mode<synchronous>, transform_indices = @transform_11, window_bounds = array<i64: 9, 80, 20>}, {pipeline_mode = #tpu.pipeline_mode<synchronous>, transform_indices = @transform_12, window_bounds = array<i64: 80, 1>}, {pipeline_mode = #tpu.pipeline_mode<synchronous>, transform_indices = @transform_13, window_bounds = array<i64: 10, 80>}, {pipeline_mode = #tpu.pipeline_mode<synchronous>, transform_indices = @transform_14, window_bounds = array<i64: 10, 1>}, {pipeline_mode = #tpu.pipeline_mode<synchronous>, transform_indices = @transform_15, window_bounds = array<i64: 595, 196>}, {pipeline_mode = #tpu.pipeline_mode<synchronous>, transform_indices = @transform_16, window_bounds = array<i64: 151, 64>}, {pipeline_mode = #tpu.pipeline_mode<synchronous>, transform_indices = @transform_17, window_bounds = array<i64: 37, 9>}, {pipeline_mode = #tpu.pipeline_mode<synchronous>, transform_indices = @transform_18, window_bounds = array<i64: 166, 1>}, {transform_indices = @transform_19, window_bounds = array<i64: 1, 10, 1>}]} {
    %c0 = arith.constant 0 : index
    %c0_0 = arith.constant 0 : index
    %c0_1 = arith.constant 0 : index
    %0 = vector.load %arg1[%c0, %c0_0, %c0_1] : memref<1x1x676xf32, #tpu.memory_space<vmem>>, vector<1x1x676xf32>
    %1 = vector.shape_cast %0 : vector<1x1x676xf32> to vector<1x676xf32>
    %c0_2 = arith.constant 0 : index
    %c0_3 = arith.constant 0 : index
    %2 = vector.load %arg2[%c0_2, %c0_3] : memref<8x9xf32, #tpu.memory_space<vmem>>, vector<8x9xf32>
    %cst = arith.constant 0.000000e+00 : f32
    %3 = vector.broadcast %cst : f32 to vector<8x622xf32>
    %4 = vector.extract_strided_slice %2 {offsets = [0, 0], sizes = [8, 1], strides = [1, 1]} : vector<8x9xf32> to vector<8x1xf32>
    %5 = vector.extract_strided_slice %1 {offsets = [0, 0], sizes = [1, 622], strides = [1, 1]} : vector<1x676xf32> to vector<1x622xf32>
    %6 = vector.broadcast %4 : vector<8x1xf32> to vector<8x622xf32>
    %7 = vector.broadcast %5 : vector<1x622xf32> to vector<8x622xf32>
    %8 = arith.mulf %6, %7 : vector<8x622xf32>
    %9 = arith.addf %3, %8 : vector<8x622xf32>
    %10 = vector.extract_strided_slice %2 {offsets = [0, 1], sizes = [8, 1], strides = [1, 1]} : vector<8x9xf32> to vector<8x1xf32>
    %11 = vector.extract_strided_slice %1 {offsets = [0, 1], sizes = [1, 622], strides = [1, 1]} : vector<1x676xf32> to vector<1x622xf32>
    %12 = vector.broadcast %10 : vector<8x1xf32> to vector<8x622xf32>
    %13 = vector.broadcast %11 : vector<1x622xf32> to vector<8x622xf32>
    %14 = arith.mulf %12, %13 : vector<8x622xf32>
    %15 = arith.addf %9, %14 : vector<8x622xf32>
    %16 = vector.extract_strided_slice %2 {offsets = [0, 2], sizes = [8, 1], strides = [1, 1]} : vector<8x9xf32> to vector<8x1xf32>
    %17 = vector.extract_strided_slice %1 {offsets = [0, 2], sizes = [1, 622], strides = [1, 1]} : vector<1x676xf32> to vector<1x622xf32>
    %18 = vector.broadcast %16 : vector<8x1xf32> to vector<8x622xf32>
    %19 = vector.broadcast %17 : vector<1x622xf32> to vector<8x622xf32>
    %20 = arith.mulf %18, %19 : vector<8x622xf32>
    %21 = arith.addf %15, %20 : vector<8x622xf32>
    %22 = vector.extract_strided_slice %2 {offsets = [0, 3], sizes = [8, 1], strides = [1, 1]} : vector<8x9xf32> to vector<8x1xf32>
    %23 = vector.extract_strided_slice %1 {offsets = [0, 26], sizes = [1, 622], strides = [1, 1]} : vector<1x676xf32> to vector<1x622xf32>
    %24 = vector.broadcast %22 : vector<8x1xf32> to vector<8x622xf32>
    %25 = vector.broadcast %23 : vector<1x622xf32> to vector<8x622xf32>
    %26 = arith.mulf %24, %25 : vector<8x622xf32>
    %27 = arith.addf %21, %26 : vector<8x622xf32>
    %28 = vector.extract_strided_slice %2 {offsets = [0, 4], sizes = [8, 1], strides = [1, 1]} : vector<8x9xf32> to vector<8x1xf32>
    %29 = vector.extract_strided_slice %1 {offsets = [0, 27], sizes = [1, 622], strides = [1, 1]} : vector<1x676xf32> to vector<1x622xf32>
    %30 = vector.broadcast %28 : vector<8x1xf32> to vector<8x622xf32>
    %31 = vector.broadcast %29 : vector<1x622xf32> to vector<8x622xf32>
    %32 = arith.mulf %30, %31 : vector<8x622xf32>
    %33 = arith.addf %27, %32 : vector<8x622xf32>
    %34 = vector.extract_strided_slice %2 {offsets = [0, 5], sizes = [8, 1], strides = [1, 1]} : vector<8x9xf32> to vector<8x1xf32>
    %35 = vector.extract_strided_slice %1 {offsets = [0, 28], sizes = [1, 622], strides = [1, 1]} : vector<1x676xf32> to vector<1x622xf32>
    %36 = vector.broadcast %34 : vector<8x1xf32> to vector<8x622xf32>
    %37 = vector.broadcast %35 : vector<1x622xf32> to vector<8x622xf32>
    %38 = arith.mulf %36, %37 : vector<8x622xf32>
    %39 = arith.addf %33, %38 : vector<8x622xf32>
    %40 = vector.extract_strided_slice %2 {offsets = [0, 6], sizes = [8, 1], strides = [1, 1]} : vector<8x9xf32> to vector<8x1xf32>
    %41 = vector.extract_strided_slice %1 {offsets = [0, 52], sizes = [1, 622], strides = [1, 1]} : vector<1x676xf32> to vector<1x622xf32>
    %42 = vector.broadcast %40 : vector<8x1xf32> to vector<8x622xf32>
    %43 = vector.broadcast %41 : vector<1x622xf32> to vector<8x622xf32>
    %44 = arith.mulf %42, %43 : vector<8x622xf32>
    %45 = arith.addf %39, %44 : vector<8x622xf32>
    %46 = vector.extract_strided_slice %2 {offsets = [0, 7], sizes = [8, 1], strides = [1, 1]} : vector<8x9xf32> to vector<8x1xf32>
    %47 = vector.extract_strided_slice %1 {offsets = [0, 53], sizes = [1, 622], strides = [1, 1]} : vector<1x676xf32> to vector<1x622xf32>
    %48 = vector.broadcast %46 : vector<8x1xf32> to vector<8x622xf32>
    %49 = vector.broadcast %47 : vector<1x622xf32> to vector<8x622xf32>
    %50 = arith.mulf %48, %49 : vector<8x622xf32>
    %51 = arith.addf %45, %50 : vector<8x622xf32>
    %52 = vector.extract_strided_slice %2 {offsets = [0, 8], sizes = [8, 1], strides = [1, 1]} : vector<8x9xf32> to vector<8x1xf32>
    %53 = vector.extract_strided_slice %1 {offsets = [0, 54], sizes = [1, 622], strides = [1, 1]} : vector<1x676xf32> to vector<1x622xf32>
    %54 = vector.broadcast %52 : vector<8x1xf32> to vector<8x622xf32>
    %55 = vector.broadcast %53 : vector<1x622xf32> to vector<8x622xf32>
    %56 = arith.mulf %54, %55 : vector<8x622xf32>
    %57 = arith.addf %51, %56 : vector<8x622xf32>
    %c0_4 = arith.constant 0 : index
    %c0_5 = arith.constant 0 : index
    %58 = vector.load %arg3[%c0_4, %c0_5] : memref<8x1xf32, #tpu.memory_space<vmem>>, vector<8x1xf32>
    %59 = vector.broadcast %58 : vector<8x1xf32> to vector<8x622xf32>
    %60 = arith.addf %57, %59 : vector<8x622xf32>
    %cst_6 = arith.constant 1.000000e-01 : f32
    %61 = vector.broadcast %cst_6 : f32 to vector<8x622xf32>
    %62 = arith.mulf %61, %60 : vector<8x622xf32>
    %63 = arith.maximumf %60, %62 : vector<8x622xf32>
    %64 = vector.extract_strided_slice %63 {offsets = [0, 0], sizes = [8, 595], strides = [1, 1]} : vector<8x622xf32> to vector<8x595xf32>
    %65 = vector.extract_strided_slice %63 {offsets = [0, 1], sizes = [8, 595], strides = [1, 1]} : vector<8x622xf32> to vector<8x595xf32>
    %66 = arith.maximumf %64, %65 : vector<8x595xf32>
    %67 = vector.extract_strided_slice %63 {offsets = [0, 26], sizes = [8, 595], strides = [1, 1]} : vector<8x622xf32> to vector<8x595xf32>
    %68 = vector.extract_strided_slice %63 {offsets = [0, 27], sizes = [8, 595], strides = [1, 1]} : vector<8x622xf32> to vector<8x595xf32>
    %69 = arith.maximumf %67, %68 : vector<8x595xf32>
    %70 = arith.maximumf %66, %69 : vector<8x595xf32>
    %c0_7 = arith.constant 0 : index
    %c0_8 = arith.constant 0 : index
    %71 = vector.load %arg16[%c0_7, %c0_8] : memref<595x196xf32, #tpu.memory_space<vmem>>, vector<595x196xf32>
    %cst_9 = arith.constant dense<0.000000e+00> : vector<8x196xf32>
    %72 = tpu.matmul %70, %71, %cst_9 {dimension_numbers = #tpu.dot_dimension_numbers<[1], [0], [0], [1], [0, 0, 1, 1], [], []>} : vector<8x595xf32>, vector<595x196xf32>, vector<8x196xf32> -> vector<8x196xf32>
    %cst_10 = arith.constant 0.000000e+00 : f32
    %73 = vector.broadcast %cst_10 : f32 to vector<16x166xf32>
    %c0_11 = arith.constant 0 : index
    %c0_12 = arith.constant 0 : index
    %c0_13 = arith.constant 0 : index
    %74 = vector.load %arg4[%c0_11, %c0_12, %c0_13] : memref<9x16x8xf32, #tpu.memory_space<vmem>>, vector<1x16x8xf32>
    %75 = vector.shape_cast %74 : vector<1x16x8xf32> to vector<16x8xf32>
    %76 = vector.extract_strided_slice %72 {offsets = [0, 0], sizes = [8, 166], strides = [1, 1]} : vector<8x196xf32> to vector<8x166xf32>
    %cst_14 = arith.constant dense<0.000000e+00> : vector<16x166xf32>
    %77 = tpu.matmul %75, %76, %cst_14 {dimension_numbers = #tpu.dot_dimension_numbers<[1], [0], [0], [1], [0, 0, 1, 1], [], []>} : vector<16x8xf32>, vector<8x166xf32>, vector<16x166xf32> -> vector<16x166xf32>
    %78 = arith.addf %73, %77 : vector<16x166xf32>
    %c1 = arith.constant 1 : index
    %c0_15 = arith.constant 0 : index
    %c0_16 = arith.constant 0 : index
    %79 = vector.load %arg4[%c1, %c0_15, %c0_16] : memref<9x16x8xf32, #tpu.memory_space<vmem>>, vector<1x16x8xf32>
    %80 = vector.shape_cast %79 : vector<1x16x8xf32> to vector<16x8xf32>
    %81 = vector.extract_strided_slice %72 {offsets = [0, 1], sizes = [8, 166], strides = [1, 1]} : vector<8x196xf32> to vector<8x166xf32>
    %cst_17 = arith.constant dense<0.000000e+00> : vector<16x166xf32>
    %82 = tpu.matmul %80, %81, %cst_17 {dimension_numbers = #tpu.dot_dimension_numbers<[1], [0], [0], [1], [0, 0, 1, 1], [], []>} : vector<16x8xf32>, vector<8x166xf32>, vector<16x166xf32> -> vector<16x166xf32>
    %83 = arith.addf %78, %82 : vector<16x166xf32>
    %c2 = arith.constant 2 : index
    %c0_18 = arith.constant 0 : index
    %c0_19 = arith.constant 0 : index
    %84 = vector.load %arg4[%c2, %c0_18, %c0_19] : memref<9x16x8xf32, #tpu.memory_space<vmem>>, vector<1x16x8xf32>
    %85 = vector.shape_cast %84 : vector<1x16x8xf32> to vector<16x8xf32>
    %86 = vector.extract_strided_slice %72 {offsets = [0, 2], sizes = [8, 166], strides = [1, 1]} : vector<8x196xf32> to vector<8x166xf32>
    %cst_20 = arith.constant dense<0.000000e+00> : vector<16x166xf32>
    %87 = tpu.matmul %85, %86, %cst_20 {dimension_numbers = #tpu.dot_dimension_numbers<[1], [0], [0], [1], [0, 0, 1, 1], [], []>} : vector<16x8xf32>, vector<8x166xf32>, vector<16x166xf32> -> vector<16x166xf32>
    %88 = arith.addf %83, %87 : vector<16x166xf32>
    %c3 = arith.constant 3 : index
    %c0_21 = arith.constant 0 : index
    %c0_22 = arith.constant 0 : index
    %89 = vector.load %arg4[%c3, %c0_21, %c0_22] : memref<9x16x8xf32, #tpu.memory_space<vmem>>, vector<1x16x8xf32>
    %90 = vector.shape_cast %89 : vector<1x16x8xf32> to vector<16x8xf32>
    %91 = vector.extract_strided_slice %72 {offsets = [0, 14], sizes = [8, 166], strides = [1, 1]} : vector<8x196xf32> to vector<8x166xf32>
    %cst_23 = arith.constant dense<0.000000e+00> : vector<16x166xf32>
    %92 = tpu.matmul %90, %91, %cst_23 {dimension_numbers = #tpu.dot_dimension_numbers<[1], [0], [0], [1], [0, 0, 1, 1], [], []>} : vector<16x8xf32>, vector<8x166xf32>, vector<16x166xf32> -> vector<16x166xf32>
    %93 = arith.addf %88, %92 : vector<16x166xf32>
    %c4 = arith.constant 4 : index
    %c0_24 = arith.constant 0 : index
    %c0_25 = arith.constant 0 : index
    %94 = vector.load %arg4[%c4, %c0_24, %c0_25] : memref<9x16x8xf32, #tpu.memory_space<vmem>>, vector<1x16x8xf32>
    %95 = vector.shape_cast %94 : vector<1x16x8xf32> to vector<16x8xf32>
    %96 = vector.extract_strided_slice %72 {offsets = [0, 15], sizes = [8, 166], strides = [1, 1]} : vector<8x196xf32> to vector<8x166xf32>
    %cst_26 = arith.constant dense<0.000000e+00> : vector<16x166xf32>
    %97 = tpu.matmul %95, %96, %cst_26 {dimension_numbers = #tpu.dot_dimension_numbers<[1], [0], [0], [1], [0, 0, 1, 1], [], []>} : vector<16x8xf32>, vector<8x166xf32>, vector<16x166xf32> -> vector<16x166xf32>
    %98 = arith.addf %93, %97 : vector<16x166xf32>
    %c5 = arith.constant 5 : index
    %c0_27 = arith.constant 0 : index
    %c0_28 = arith.constant 0 : index
    %99 = vector.load %arg4[%c5, %c0_27, %c0_28] : memref<9x16x8xf32, #tpu.memory_space<vmem>>, vector<1x16x8xf32>
    %100 = vector.shape_cast %99 : vector<1x16x8xf32> to vector<16x8xf32>
    %101 = vector.extract_strided_slice %72 {offsets = [0, 16], sizes = [8, 166], strides = [1, 1]} : vector<8x196xf32> to vector<8x166xf32>
    %cst_29 = arith.constant dense<0.000000e+00> : vector<16x166xf32>
    %102 = tpu.matmul %100, %101, %cst_29 {dimension_numbers = #tpu.dot_dimension_numbers<[1], [0], [0], [1], [0, 0, 1, 1], [], []>} : vector<16x8xf32>, vector<8x166xf32>, vector<16x166xf32> -> vector<16x166xf32>
    %103 = arith.addf %98, %102 : vector<16x166xf32>
    %c6 = arith.constant 6 : index
    %c0_30 = arith.constant 0 : index
    %c0_31 = arith.constant 0 : index
    %104 = vector.load %arg4[%c6, %c0_30, %c0_31] : memref<9x16x8xf32, #tpu.memory_space<vmem>>, vector<1x16x8xf32>
    %105 = vector.shape_cast %104 : vector<1x16x8xf32> to vector<16x8xf32>
    %106 = vector.extract_strided_slice %72 {offsets = [0, 28], sizes = [8, 166], strides = [1, 1]} : vector<8x196xf32> to vector<8x166xf32>
    %cst_32 = arith.constant dense<0.000000e+00> : vector<16x166xf32>
    %107 = tpu.matmul %105, %106, %cst_32 {dimension_numbers = #tpu.dot_dimension_numbers<[1], [0], [0], [1], [0, 0, 1, 1], [], []>} : vector<16x8xf32>, vector<8x166xf32>, vector<16x166xf32> -> vector<16x166xf32>
    %108 = arith.addf %103, %107 : vector<16x166xf32>
    %c7 = arith.constant 7 : index
    %c0_33 = arith.constant 0 : index
    %c0_34 = arith.constant 0 : index
    %109 = vector.load %arg4[%c7, %c0_33, %c0_34] : memref<9x16x8xf32, #tpu.memory_space<vmem>>, vector<1x16x8xf32>
    %110 = vector.shape_cast %109 : vector<1x16x8xf32> to vector<16x8xf32>
    %111 = vector.extract_strided_slice %72 {offsets = [0, 29], sizes = [8, 166], strides = [1, 1]} : vector<8x196xf32> to vector<8x166xf32>
    %cst_35 = arith.constant dense<0.000000e+00> : vector<16x166xf32>
    %112 = tpu.matmul %110, %111, %cst_35 {dimension_numbers = #tpu.dot_dimension_numbers<[1], [0], [0], [1], [0, 0, 1, 1], [], []>} : vector<16x8xf32>, vector<8x166xf32>, vector<16x166xf32> -> vector<16x166xf32>
    %113 = arith.addf %108, %112 : vector<16x166xf32>
    %c8 = arith.constant 8 : index
    %c0_36 = arith.constant 0 : index
    %c0_37 = arith.constant 0 : index
    %114 = vector.load %arg4[%c8, %c0_36, %c0_37] : memref<9x16x8xf32, #tpu.memory_space<vmem>>, vector<1x16x8xf32>
    %115 = vector.shape_cast %114 : vector<1x16x8xf32> to vector<16x8xf32>
    %116 = vector.extract_strided_slice %72 {offsets = [0, 30], sizes = [8, 166], strides = [1, 1]} : vector<8x196xf32> to vector<8x166xf32>
    %cst_38 = arith.constant dense<0.000000e+00> : vector<16x166xf32>
    %117 = tpu.matmul %115, %116, %cst_38 {dimension_numbers = #tpu.dot_dimension_numbers<[1], [0], [0], [1], [0, 0, 1, 1], [], []>} : vector<16x8xf32>, vector<8x166xf32>, vector<16x166xf32> -> vector<16x166xf32>
    %118 = arith.addf %113, %117 : vector<16x166xf32>
    %c0_39 = arith.constant 0 : index
    %c0_40 = arith.constant 0 : index
    %119 = vector.load %arg5[%c0_39, %c0_40] : memref<16x1xf32, #tpu.memory_space<vmem>>, vector<16x1xf32>
    %120 = vector.broadcast %119 : vector<16x1xf32> to vector<16x166xf32>
    %121 = arith.addf %118, %120 : vector<16x166xf32>
    %cst_41 = arith.constant 1.000000e-01 : f32
    %122 = vector.broadcast %cst_41 : f32 to vector<16x166xf32>
    %123 = arith.mulf %122, %121 : vector<16x166xf32>
    %124 = arith.maximumf %121, %123 : vector<16x166xf32>
    %c0_42 = arith.constant 0 : index
    %c0_43 = arith.constant 0 : index
    %125 = vector.load %arg19[%c0_42, %c0_43] : memref<166x1xf32, #tpu.memory_space<vmem>>, vector<166x1xf32>
    %cst_44 = arith.constant dense<0.000000e+00> : vector<16x1xf32>
    %126 = tpu.matmul %124, %125, %cst_44 {dimension_numbers = #tpu.dot_dimension_numbers<[1], [0], [0], [1], [0, 0, 1, 1], [], []>} : vector<16x166xf32>, vector<166x1xf32>, vector<16x1xf32> -> vector<16x1xf32>
    %c0_45 = arith.constant 0 : index
    %c0_46 = arith.constant 0 : index
    %127 = vector.load %arg8[%c0_45, %c0_46] : memref<4x16xf32, #tpu.memory_space<vmem>>, vector<4x16xf32>
    %cst_47 = arith.constant dense<0.000000e+00> : vector<4x1xf32>
    %128 = tpu.matmul %127, %126, %cst_47 {dimension_numbers = #tpu.dot_dimension_numbers<[1], [0], [0], [1], [0, 0, 1, 1], [], []>} : vector<4x16xf32>, vector<16x1xf32>, vector<4x1xf32> -> vector<4x1xf32>
    %c0_48 = arith.constant 0 : index
    %c0_49 = arith.constant 0 : index
    %129 = vector.load %arg9[%c0_48, %c0_49] : memref<4x1xf32, #tpu.memory_space<vmem>>, vector<4x1xf32>
    %130 = arith.addf %128, %129 : vector<4x1xf32>
    %cst_50 = arith.constant 0.000000e+00 : f32
    %131 = vector.broadcast %cst_50 : f32 to vector<4x1xf32>
    %132 = arith.maximumf %130, %131 : vector<4x1xf32>
    %c0_51 = arith.constant 0 : index
    %c0_52 = arith.constant 0 : index
    %133 = vector.load %arg10[%c0_51, %c0_52] : memref<16x4xf32, #tpu.memory_space<vmem>>, vector<16x4xf32>
    %cst_53 = arith.constant dense<0.000000e+00> : vector<16x1xf32>
    %134 = tpu.matmul %133, %132, %cst_53 {dimension_numbers = #tpu.dot_dimension_numbers<[1], [0], [0], [1], [0, 0, 1, 1], [], []>} : vector<16x4xf32>, vector<4x1xf32>, vector<16x1xf32> -> vector<16x1xf32>
    %c0_54 = arith.constant 0 : index
    %c0_55 = arith.constant 0 : index
    %135 = vector.load %arg11[%c0_54, %c0_55] : memref<16x1xf32, #tpu.memory_space<vmem>>, vector<16x1xf32>
    %136 = arith.addf %134, %135 : vector<16x1xf32>
    %cst_56 = arith.constant 0.000000e+00 : f32
    %137 = vector.broadcast %cst_56 : f32 to vector<16x1xf32>
    %138 = arith.subf %137, %136 : vector<16x1xf32>
    %139 = math.exp %138 : vector<16x1xf32>
    %cst_57 = arith.constant 1.000000e+00 : f32
    %140 = vector.broadcast %cst_57 : f32 to vector<16x1xf32>
    %141 = arith.addf %140, %139 : vector<16x1xf32>
    %cst_58 = arith.constant 1.000000e+00 : f32
    %142 = vector.broadcast %cst_58 : f32 to vector<16x1xf32>
    %143 = arith.divf %142, %141 : vector<16x1xf32>
    %144 = vector.broadcast %143 : vector<16x1xf32> to vector<16x166xf32>
    %145 = arith.mulf %124, %144 : vector<16x166xf32>
    %146 = vector.extract_strided_slice %145 {offsets = [0, 0], sizes = [16, 151], strides = [1, 1]} : vector<16x166xf32> to vector<16x151xf32>
    %147 = vector.extract_strided_slice %145 {offsets = [0, 1], sizes = [16, 151], strides = [1, 1]} : vector<16x166xf32> to vector<16x151xf32>
    %148 = arith.maximumf %146, %147 : vector<16x151xf32>
    %149 = vector.extract_strided_slice %145 {offsets = [0, 14], sizes = [16, 151], strides = [1, 1]} : vector<16x166xf32> to vector<16x151xf32>
    %150 = vector.extract_strided_slice %145 {offsets = [0, 15], sizes = [16, 151], strides = [1, 1]} : vector<16x166xf32> to vector<16x151xf32>
    %151 = arith.maximumf %149, %150 : vector<16x151xf32>
    %152 = arith.maximumf %148, %151 : vector<16x151xf32>
    %c0_59 = arith.constant 0 : index
    %c0_60 = arith.constant 0 : index
    %153 = vector.load %arg17[%c0_59, %c0_60] : memref<151x64xf32, #tpu.memory_space<vmem>>, vector<151x64xf32>
    %cst_61 = arith.constant dense<0.000000e+00> : vector<16x64xf32>
    %154 = tpu.matmul %152, %153, %cst_61 {dimension_numbers = #tpu.dot_dimension_numbers<[1], [0], [0], [1], [0, 0, 1, 1], [], []>} : vector<16x151xf32>, vector<151x64xf32>, vector<16x64xf32> -> vector<16x64xf32>
    %cst_62 = arith.constant 0.000000e+00 : f32
    %155 = vector.broadcast %cst_62 : f32 to vector<20x46xf32>
    %c0_63 = arith.constant 0 : index
    %c0_64 = arith.constant 0 : index
    %c0_65 = arith.constant 0 : index
    %156 = vector.load %arg6[%c0_63, %c0_64, %c0_65] : memref<9x20x16xf32, #tpu.memory_space<vmem>>, vector<1x20x16xf32>
    %157 = vector.shape_cast %156 : vector<1x20x16xf32> to vector<20x16xf32>
    %158 = vector.extract_strided_slice %154 {offsets = [0, 0], sizes = [16, 46], strides = [1, 1]} : vector<16x64xf32> to vector<16x46xf32>
    %cst_66 = arith.constant dense<0.000000e+00> : vector<20x46xf32>
    %159 = tpu.matmul %157, %158, %cst_66 {dimension_numbers = #tpu.dot_dimension_numbers<[1], [0], [0], [1], [0, 0, 1, 1], [], []>} : vector<20x16xf32>, vector<16x46xf32>, vector<20x46xf32> -> vector<20x46xf32>
    %160 = arith.addf %155, %159 : vector<20x46xf32>
    %c1_67 = arith.constant 1 : index
    %c0_68 = arith.constant 0 : index
    %c0_69 = arith.constant 0 : index
    %161 = vector.load %arg6[%c1_67, %c0_68, %c0_69] : memref<9x20x16xf32, #tpu.memory_space<vmem>>, vector<1x20x16xf32>
    %162 = vector.shape_cast %161 : vector<1x20x16xf32> to vector<20x16xf32>
    %163 = vector.extract_strided_slice %154 {offsets = [0, 1], sizes = [16, 46], strides = [1, 1]} : vector<16x64xf32> to vector<16x46xf32>
    %cst_70 = arith.constant dense<0.000000e+00> : vector<20x46xf32>
    %164 = tpu.matmul %162, %163, %cst_70 {dimension_numbers = #tpu.dot_dimension_numbers<[1], [0], [0], [1], [0, 0, 1, 1], [], []>} : vector<20x16xf32>, vector<16x46xf32>, vector<20x46xf32> -> vector<20x46xf32>
    %165 = arith.addf %160, %164 : vector<20x46xf32>
    %c2_71 = arith.constant 2 : index
    %c0_72 = arith.constant 0 : index
    %c0_73 = arith.constant 0 : index
    %166 = vector.load %arg6[%c2_71, %c0_72, %c0_73] : memref<9x20x16xf32, #tpu.memory_space<vmem>>, vector<1x20x16xf32>
    %167 = vector.shape_cast %166 : vector<1x20x16xf32> to vector<20x16xf32>
    %168 = vector.extract_strided_slice %154 {offsets = [0, 2], sizes = [16, 46], strides = [1, 1]} : vector<16x64xf32> to vector<16x46xf32>
    %cst_74 = arith.constant dense<0.000000e+00> : vector<20x46xf32>
    %169 = tpu.matmul %167, %168, %cst_74 {dimension_numbers = #tpu.dot_dimension_numbers<[1], [0], [0], [1], [0, 0, 1, 1], [], []>} : vector<20x16xf32>, vector<16x46xf32>, vector<20x46xf32> -> vector<20x46xf32>
    %170 = arith.addf %165, %169 : vector<20x46xf32>
    %c3_75 = arith.constant 3 : index
    %c0_76 = arith.constant 0 : index
    %c0_77 = arith.constant 0 : index
    %171 = vector.load %arg6[%c3_75, %c0_76, %c0_77] : memref<9x20x16xf32, #tpu.memory_space<vmem>>, vector<1x20x16xf32>
    %172 = vector.shape_cast %171 : vector<1x20x16xf32> to vector<20x16xf32>
    %173 = vector.extract_strided_slice %154 {offsets = [0, 8], sizes = [16, 46], strides = [1, 1]} : vector<16x64xf32> to vector<16x46xf32>
    %cst_78 = arith.constant dense<0.000000e+00> : vector<20x46xf32>
    %174 = tpu.matmul %172, %173, %cst_78 {dimension_numbers = #tpu.dot_dimension_numbers<[1], [0], [0], [1], [0, 0, 1, 1], [], []>} : vector<20x16xf32>, vector<16x46xf32>, vector<20x46xf32> -> vector<20x46xf32>
    %175 = arith.addf %170, %174 : vector<20x46xf32>
    %c4_79 = arith.constant 4 : index
    %c0_80 = arith.constant 0 : index
    %c0_81 = arith.constant 0 : index
    %176 = vector.load %arg6[%c4_79, %c0_80, %c0_81] : memref<9x20x16xf32, #tpu.memory_space<vmem>>, vector<1x20x16xf32>
    %177 = vector.shape_cast %176 : vector<1x20x16xf32> to vector<20x16xf32>
    %178 = vector.extract_strided_slice %154 {offsets = [0, 9], sizes = [16, 46], strides = [1, 1]} : vector<16x64xf32> to vector<16x46xf32>
    %cst_82 = arith.constant dense<0.000000e+00> : vector<20x46xf32>
    %179 = tpu.matmul %177, %178, %cst_82 {dimension_numbers = #tpu.dot_dimension_numbers<[1], [0], [0], [1], [0, 0, 1, 1], [], []>} : vector<20x16xf32>, vector<16x46xf32>, vector<20x46xf32> -> vector<20x46xf32>
    %180 = arith.addf %175, %179 : vector<20x46xf32>
    %c5_83 = arith.constant 5 : index
    %c0_84 = arith.constant 0 : index
    %c0_85 = arith.constant 0 : index
    %181 = vector.load %arg6[%c5_83, %c0_84, %c0_85] : memref<9x20x16xf32, #tpu.memory_space<vmem>>, vector<1x20x16xf32>
    %182 = vector.shape_cast %181 : vector<1x20x16xf32> to vector<20x16xf32>
    %183 = vector.extract_strided_slice %154 {offsets = [0, 10], sizes = [16, 46], strides = [1, 1]} : vector<16x64xf32> to vector<16x46xf32>
    %cst_86 = arith.constant dense<0.000000e+00> : vector<20x46xf32>
    %184 = tpu.matmul %182, %183, %cst_86 {dimension_numbers = #tpu.dot_dimension_numbers<[1], [0], [0], [1], [0, 0, 1, 1], [], []>} : vector<20x16xf32>, vector<16x46xf32>, vector<20x46xf32> -> vector<20x46xf32>
    %185 = arith.addf %180, %184 : vector<20x46xf32>
    %c6_87 = arith.constant 6 : index
    %c0_88 = arith.constant 0 : index
    %c0_89 = arith.constant 0 : index
    %186 = vector.load %arg6[%c6_87, %c0_88, %c0_89] : memref<9x20x16xf32, #tpu.memory_space<vmem>>, vector<1x20x16xf32>
    %187 = vector.shape_cast %186 : vector<1x20x16xf32> to vector<20x16xf32>
    %188 = vector.extract_strided_slice %154 {offsets = [0, 16], sizes = [16, 46], strides = [1, 1]} : vector<16x64xf32> to vector<16x46xf32>
    %cst_90 = arith.constant dense<0.000000e+00> : vector<20x46xf32>
    %189 = tpu.matmul %187, %188, %cst_90 {dimension_numbers = #tpu.dot_dimension_numbers<[1], [0], [0], [1], [0, 0, 1, 1], [], []>} : vector<20x16xf32>, vector<16x46xf32>, vector<20x46xf32> -> vector<20x46xf32>
    %190 = arith.addf %185, %189 : vector<20x46xf32>
    %c7_91 = arith.constant 7 : index
    %c0_92 = arith.constant 0 : index
    %c0_93 = arith.constant 0 : index
    %191 = vector.load %arg6[%c7_91, %c0_92, %c0_93] : memref<9x20x16xf32, #tpu.memory_space<vmem>>, vector<1x20x16xf32>
    %192 = vector.shape_cast %191 : vector<1x20x16xf32> to vector<20x16xf32>
    %193 = vector.extract_strided_slice %154 {offsets = [0, 17], sizes = [16, 46], strides = [1, 1]} : vector<16x64xf32> to vector<16x46xf32>
    %cst_94 = arith.constant dense<0.000000e+00> : vector<20x46xf32>
    %194 = tpu.matmul %192, %193, %cst_94 {dimension_numbers = #tpu.dot_dimension_numbers<[1], [0], [0], [1], [0, 0, 1, 1], [], []>} : vector<20x16xf32>, vector<16x46xf32>, vector<20x46xf32> -> vector<20x46xf32>
    %195 = arith.addf %190, %194 : vector<20x46xf32>
    %c8_95 = arith.constant 8 : index
    %c0_96 = arith.constant 0 : index
    %c0_97 = arith.constant 0 : index
    %196 = vector.load %arg6[%c8_95, %c0_96, %c0_97] : memref<9x20x16xf32, #tpu.memory_space<vmem>>, vector<1x20x16xf32>
    %197 = vector.shape_cast %196 : vector<1x20x16xf32> to vector<20x16xf32>
    %198 = vector.extract_strided_slice %154 {offsets = [0, 18], sizes = [16, 46], strides = [1, 1]} : vector<16x64xf32> to vector<16x46xf32>
    %cst_98 = arith.constant dense<0.000000e+00> : vector<20x46xf32>
    %199 = tpu.matmul %197, %198, %cst_98 {dimension_numbers = #tpu.dot_dimension_numbers<[1], [0], [0], [1], [0, 0, 1, 1], [], []>} : vector<20x16xf32>, vector<16x46xf32>, vector<20x46xf32> -> vector<20x46xf32>
    %200 = arith.addf %195, %199 : vector<20x46xf32>
    %c0_99 = arith.constant 0 : index
    %c0_100 = arith.constant 0 : index
    %201 = vector.load %arg7[%c0_99, %c0_100] : memref<20x1xf32, #tpu.memory_space<vmem>>, vector<20x1xf32>
    %202 = vector.broadcast %201 : vector<20x1xf32> to vector<20x46xf32>
    %203 = arith.addf %200, %202 : vector<20x46xf32>
    %cst_101 = arith.constant 1.000000e-01 : f32
    %204 = vector.broadcast %cst_101 : f32 to vector<20x46xf32>
    %205 = arith.mulf %204, %203 : vector<20x46xf32>
    %206 = arith.maximumf %203, %205 : vector<20x46xf32>
    %207 = vector.extract_strided_slice %206 {offsets = [0, 0], sizes = [20, 37], strides = [1, 1]} : vector<20x46xf32> to vector<20x37xf32>
    %208 = vector.extract_strided_slice %206 {offsets = [0, 1], sizes = [20, 37], strides = [1, 1]} : vector<20x46xf32> to vector<20x37xf32>
    %209 = arith.maximumf %207, %208 : vector<20x37xf32>
    %210 = vector.extract_strided_slice %206 {offsets = [0, 8], sizes = [20, 37], strides = [1, 1]} : vector<20x46xf32> to vector<20x37xf32>
    %211 = vector.extract_strided_slice %206 {offsets = [0, 9], sizes = [20, 37], strides = [1, 1]} : vector<20x46xf32> to vector<20x37xf32>
    %212 = arith.maximumf %210, %211 : vector<20x37xf32>
    %213 = arith.maximumf %209, %212 : vector<20x37xf32>
    %c0_102 = arith.constant 0 : index
    %c0_103 = arith.constant 0 : index
    %214 = vector.load %arg18[%c0_102, %c0_103] : memref<37x9xf32, #tpu.memory_space<vmem>>, vector<37x9xf32>
    %cst_104 = arith.constant dense<0.000000e+00> : vector<20x9xf32>
    %215 = tpu.matmul %213, %214, %cst_104 {dimension_numbers = #tpu.dot_dimension_numbers<[1], [0], [0], [1], [0, 0, 1, 1], [], []>} : vector<20x37xf32>, vector<37x9xf32>, vector<20x9xf32> -> vector<20x9xf32>
    %c0_105 = arith.constant 0 : index
    %c0_106 = arith.constant 0 : index
    %216 = vector.load %arg13[%c0_105, %c0_106] : memref<80x1xf32, #tpu.memory_space<vmem>>, vector<80x1xf32>
    %c0_107 = arith.constant 0 : index
    %c0_108 = arith.constant 0 : index
    %c0_109 = arith.constant 0 : index
    %217 = vector.load %arg12[%c0_107, %c0_108, %c0_109] : memref<9x80x20xf32, #tpu.memory_space<vmem>>, vector<1x80x20xf32>
    %218 = vector.shape_cast %217 : vector<1x80x20xf32> to vector<80x20xf32>
    %219 = vector.extract_strided_slice %215 {offsets = [0, 0], sizes = [20, 1], strides = [1, 1]} : vector<20x9xf32> to vector<20x1xf32>
    %cst_110 = arith.constant dense<0.000000e+00> : vector<80x1xf32>
    %220 = tpu.matmul %218, %219, %cst_110 {dimension_numbers = #tpu.dot_dimension_numbers<[1], [0], [0], [1], [0, 0, 1, 1], [], []>} : vector<80x20xf32>, vector<20x1xf32>, vector<80x1xf32> -> vector<80x1xf32>
    %221 = arith.addf %216, %220 : vector<80x1xf32>
    %c1_111 = arith.constant 1 : index
    %c0_112 = arith.constant 0 : index
    %c0_113 = arith.constant 0 : index
    %222 = vector.load %arg12[%c1_111, %c0_112, %c0_113] : memref<9x80x20xf32, #tpu.memory_space<vmem>>, vector<1x80x20xf32>
    %223 = vector.shape_cast %222 : vector<1x80x20xf32> to vector<80x20xf32>
    %224 = vector.extract_strided_slice %215 {offsets = [0, 1], sizes = [20, 1], strides = [1, 1]} : vector<20x9xf32> to vector<20x1xf32>
    %cst_114 = arith.constant dense<0.000000e+00> : vector<80x1xf32>
    %225 = tpu.matmul %223, %224, %cst_114 {dimension_numbers = #tpu.dot_dimension_numbers<[1], [0], [0], [1], [0, 0, 1, 1], [], []>} : vector<80x20xf32>, vector<20x1xf32>, vector<80x1xf32> -> vector<80x1xf32>
    %226 = arith.addf %221, %225 : vector<80x1xf32>
    %c2_115 = arith.constant 2 : index
    %c0_116 = arith.constant 0 : index
    %c0_117 = arith.constant 0 : index
    %227 = vector.load %arg12[%c2_115, %c0_116, %c0_117] : memref<9x80x20xf32, #tpu.memory_space<vmem>>, vector<1x80x20xf32>
    %228 = vector.shape_cast %227 : vector<1x80x20xf32> to vector<80x20xf32>
    %229 = vector.extract_strided_slice %215 {offsets = [0, 2], sizes = [20, 1], strides = [1, 1]} : vector<20x9xf32> to vector<20x1xf32>
    %cst_118 = arith.constant dense<0.000000e+00> : vector<80x1xf32>
    %230 = tpu.matmul %228, %229, %cst_118 {dimension_numbers = #tpu.dot_dimension_numbers<[1], [0], [0], [1], [0, 0, 1, 1], [], []>} : vector<80x20xf32>, vector<20x1xf32>, vector<80x1xf32> -> vector<80x1xf32>
    %231 = arith.addf %226, %230 : vector<80x1xf32>
    %c3_119 = arith.constant 3 : index
    %c0_120 = arith.constant 0 : index
    %c0_121 = arith.constant 0 : index
    %232 = vector.load %arg12[%c3_119, %c0_120, %c0_121] : memref<9x80x20xf32, #tpu.memory_space<vmem>>, vector<1x80x20xf32>
    %233 = vector.shape_cast %232 : vector<1x80x20xf32> to vector<80x20xf32>
    %234 = vector.extract_strided_slice %215 {offsets = [0, 3], sizes = [20, 1], strides = [1, 1]} : vector<20x9xf32> to vector<20x1xf32>
    %cst_122 = arith.constant dense<0.000000e+00> : vector<80x1xf32>
    %235 = tpu.matmul %233, %234, %cst_122 {dimension_numbers = #tpu.dot_dimension_numbers<[1], [0], [0], [1], [0, 0, 1, 1], [], []>} : vector<80x20xf32>, vector<20x1xf32>, vector<80x1xf32> -> vector<80x1xf32>
    %236 = arith.addf %231, %235 : vector<80x1xf32>
    %c4_123 = arith.constant 4 : index
    %c0_124 = arith.constant 0 : index
    %c0_125 = arith.constant 0 : index
    %237 = vector.load %arg12[%c4_123, %c0_124, %c0_125] : memref<9x80x20xf32, #tpu.memory_space<vmem>>, vector<1x80x20xf32>
    %238 = vector.shape_cast %237 : vector<1x80x20xf32> to vector<80x20xf32>
    %239 = vector.extract_strided_slice %215 {offsets = [0, 4], sizes = [20, 1], strides = [1, 1]} : vector<20x9xf32> to vector<20x1xf32>
    %cst_126 = arith.constant dense<0.000000e+00> : vector<80x1xf32>
    %240 = tpu.matmul %238, %239, %cst_126 {dimension_numbers = #tpu.dot_dimension_numbers<[1], [0], [0], [1], [0, 0, 1, 1], [], []>} : vector<80x20xf32>, vector<20x1xf32>, vector<80x1xf32> -> vector<80x1xf32>
    %241 = arith.addf %236, %240 : vector<80x1xf32>
    %c5_127 = arith.constant 5 : index
    %c0_128 = arith.constant 0 : index
    %c0_129 = arith.constant 0 : index
    %242 = vector.load %arg12[%c5_127, %c0_128, %c0_129] : memref<9x80x20xf32, #tpu.memory_space<vmem>>, vector<1x80x20xf32>
    %243 = vector.shape_cast %242 : vector<1x80x20xf32> to vector<80x20xf32>
    %244 = vector.extract_strided_slice %215 {offsets = [0, 5], sizes = [20, 1], strides = [1, 1]} : vector<20x9xf32> to vector<20x1xf32>
    %cst_130 = arith.constant dense<0.000000e+00> : vector<80x1xf32>
    %245 = tpu.matmul %243, %244, %cst_130 {dimension_numbers = #tpu.dot_dimension_numbers<[1], [0], [0], [1], [0, 0, 1, 1], [], []>} : vector<80x20xf32>, vector<20x1xf32>, vector<80x1xf32> -> vector<80x1xf32>
    %246 = arith.addf %241, %245 : vector<80x1xf32>
    %c6_131 = arith.constant 6 : index
    %c0_132 = arith.constant 0 : index
    %c0_133 = arith.constant 0 : index
    %247 = vector.load %arg12[%c6_131, %c0_132, %c0_133] : memref<9x80x20xf32, #tpu.memory_space<vmem>>, vector<1x80x20xf32>
    %248 = vector.shape_cast %247 : vector<1x80x20xf32> to vector<80x20xf32>
    %249 = vector.extract_strided_slice %215 {offsets = [0, 6], sizes = [20, 1], strides = [1, 1]} : vector<20x9xf32> to vector<20x1xf32>
    %cst_134 = arith.constant dense<0.000000e+00> : vector<80x1xf32>
    %250 = tpu.matmul %248, %249, %cst_134 {dimension_numbers = #tpu.dot_dimension_numbers<[1], [0], [0], [1], [0, 0, 1, 1], [], []>} : vector<80x20xf32>, vector<20x1xf32>, vector<80x1xf32> -> vector<80x1xf32>
    %251 = arith.addf %246, %250 : vector<80x1xf32>
    %c7_135 = arith.constant 7 : index
    %c0_136 = arith.constant 0 : index
    %c0_137 = arith.constant 0 : index
    %252 = vector.load %arg12[%c7_135, %c0_136, %c0_137] : memref<9x80x20xf32, #tpu.memory_space<vmem>>, vector<1x80x20xf32>
    %253 = vector.shape_cast %252 : vector<1x80x20xf32> to vector<80x20xf32>
    %254 = vector.extract_strided_slice %215 {offsets = [0, 7], sizes = [20, 1], strides = [1, 1]} : vector<20x9xf32> to vector<20x1xf32>
    %cst_138 = arith.constant dense<0.000000e+00> : vector<80x1xf32>
    %255 = tpu.matmul %253, %254, %cst_138 {dimension_numbers = #tpu.dot_dimension_numbers<[1], [0], [0], [1], [0, 0, 1, 1], [], []>} : vector<80x20xf32>, vector<20x1xf32>, vector<80x1xf32> -> vector<80x1xf32>
    %256 = arith.addf %251, %255 : vector<80x1xf32>
    %c8_139 = arith.constant 8 : index
    %c0_140 = arith.constant 0 : index
    %c0_141 = arith.constant 0 : index
    %257 = vector.load %arg12[%c8_139, %c0_140, %c0_141] : memref<9x80x20xf32, #tpu.memory_space<vmem>>, vector<1x80x20xf32>
    %258 = vector.shape_cast %257 : vector<1x80x20xf32> to vector<80x20xf32>
    %259 = vector.extract_strided_slice %215 {offsets = [0, 8], sizes = [20, 1], strides = [1, 1]} : vector<20x9xf32> to vector<20x1xf32>
    %cst_142 = arith.constant dense<0.000000e+00> : vector<80x1xf32>
    %260 = tpu.matmul %258, %259, %cst_142 {dimension_numbers = #tpu.dot_dimension_numbers<[1], [0], [0], [1], [0, 0, 1, 1], [], []>} : vector<80x20xf32>, vector<20x1xf32>, vector<80x1xf32> -> vector<80x1xf32>
    %261 = arith.addf %256, %260 : vector<80x1xf32>
    %cst_143 = arith.constant 1.000000e-01 : f32
    %262 = vector.broadcast %cst_143 : f32 to vector<80x1xf32>
    %263 = arith.mulf %262, %261 : vector<80x1xf32>
    %264 = arith.maximumf %261, %263 : vector<80x1xf32>
    %c0_144 = arith.constant 0 : index
    %c0_145 = arith.constant 0 : index
    %265 = vector.load %arg14[%c0_144, %c0_145] : memref<10x80xf32, #tpu.memory_space<vmem>>, vector<10x80xf32>
    %cst_146 = arith.constant dense<0.000000e+00> : vector<10x1xf32>
    %266 = tpu.matmul %265, %264, %cst_146 {dimension_numbers = #tpu.dot_dimension_numbers<[1], [0], [0], [1], [0, 0, 1, 1], [], []>} : vector<10x80xf32>, vector<80x1xf32>, vector<10x1xf32> -> vector<10x1xf32>
    %c0_147 = arith.constant 0 : index
    %c0_148 = arith.constant 0 : index
    %267 = vector.load %arg15[%c0_147, %c0_148] : memref<10x1xf32, #tpu.memory_space<vmem>>, vector<10x1xf32>
    %268 = arith.addf %266, %267 : vector<10x1xf32>
    %c0_149 = arith.constant 0 : index
    %c0_150 = arith.constant 0 : index
    %c0_151 = arith.constant 0 : index
    %269 = vector.load %arg20[%c0_149, %c0_150, %c0_151] : memref<1x10x1xf32, #tpu.memory_space<vmem>>, vector<1x10x1xf32>
    %270 = vector.shape_cast %269 : vector<1x10x1xf32> to vector<10x1xf32>
    %271 = vector.shape_cast %268 : vector<10x1xf32> to vector<1x10x1xf32>
    tpu.vector_store %arg20[%c0_149, %c0_150, %c0_151], %271 {strides = array<i32>} : memref<1x10x1xf32, #tpu.memory_space<vmem>>, vector<1x10x1xf32>,
    return
  }
  func.func @transform_0(%arg0: i32) -> (i32, i32, i32) {
    %c0_i32 = arith.constant 0 : i32
    %c0_i32_0 = arith.constant 0 : i32
    %c0_i32_1 = arith.constant 0 : i32
    return %arg0, %c0_i32, %c0_i32_0 : i32, i32, i32
  }
  func.func @transform_1(%arg0: i32) -> (i32, i32) {
    %c0_i32 = arith.constant 0 : i32
    %c0_i32_0 = arith.constant 0 : i32
    %c0_i32_1 = arith.constant 0 : i32
    return %c0_i32, %c0_i32_0 : i32, i32
  }
  func.func @transform_2(%arg0: i32) -> (i32, i32) {
    %c0_i32 = arith.constant 0 : i32
    %c0_i32_0 = arith.constant 0 : i32
    %c0_i32_1 = arith.constant 0 : i32
    return %c0_i32, %c0_i32_0 : i32, i32
  }
  func.func @transform_3(%arg0: i32) -> (i32, i32, i32) {
    %c0_i32 = arith.constant 0 : i32
    %c0_i32_0 = arith.constant 0 : i32
    %c0_i32_1 = arith.constant 0 : i32
    %c0_i32_2 = arith.constant 0 : i32
    return %c0_i32, %c0_i32_0, %c0_i32_1 : i32, i32, i32
  }
  func.func @transform_4(%arg0: i32) -> (i32, i32) {
    %c0_i32 = arith.constant 0 : i32
    %c0_i32_0 = arith.constant 0 : i32
    %c0_i32_1 = arith.constant 0 : i32
    return %c0_i32, %c0_i32_0 : i32, i32
  }
  func.func @transform_5(%arg0: i32) -> (i32, i32, i32) {
    %c0_i32 = arith.constant 0 : i32
    %c0_i32_0 = arith.constant 0 : i32
    %c0_i32_1 = arith.constant 0 : i32
    %c0_i32_2 = arith.constant 0 : i32
    return %c0_i32, %c0_i32_0, %c0_i32_1 : i32, i32, i32
  }
  func.func @transform_6(%arg0: i32) -> (i32, i32) {
    %c0_i32 = arith.constant 0 : i32
    %c0_i32_0 = arith.constant 0 : i32
    %c0_i32_1 = arith.constant 0 : i32
    return %c0_i32, %c0_i32_0 : i32, i32
  }
  func.func @transform_7(%arg0: i32) -> (i32, i32) {
    %c0_i32 = arith.constant 0 : i32
    %c0_i32_0 = arith.constant 0 : i32
    %c0_i32_1 = arith.constant 0 : i32
    return %c0_i32, %c0_i32_0 : i32, i32
  }
  func.func @transform_8(%arg0: i32) -> (i32, i32) {
    %c0_i32 = arith.constant 0 : i32
    %c0_i32_0 = arith.constant 0 : i32
    %c0_i32_1 = arith.constant 0 : i32
    return %c0_i32, %c0_i32_0 : i32, i32
  }
  func.func @transform_9(%arg0: i32) -> (i32, i32) {
    %c0_i32 = arith.constant 0 : i32
    %c0_i32_0 = arith.constant 0 : i32
    %c0_i32_1 = arith.constant 0 : i32
    return %c0_i32, %c0_i32_0 : i32, i32
  }
  func.func @transform_10(%arg0: i32) -> (i32, i32) {
    %c0_i32 = arith.constant 0 : i32
    %c0_i32_0 = arith.constant 0 : i32
    %c0_i32_1 = arith.constant 0 : i32
    return %c0_i32, %c0_i32_0 : i32, i32
  }
  func.func @transform_11(%arg0: i32) -> (i32, i32, i32) {
    %c0_i32 = arith.constant 0 : i32
    %c0_i32_0 = arith.constant 0 : i32
    %c0_i32_1 = arith.constant 0 : i32
    %c0_i32_2 = arith.constant 0 : i32
    return %c0_i32, %c0_i32_0, %c0_i32_1 : i32, i32, i32
  }
  func.func @transform_12(%arg0: i32) -> (i32, i32) {
    %c0_i32 = arith.constant 0 : i32
    %c0_i32_0 = arith.constant 0 : i32
    %c0_i32_1 = arith.constant 0 : i32
    return %c0_i32, %c0_i32_0 : i32, i32
  }
  func.func @transform_13(%arg0: i32) -> (i32, i32) {
    %c0_i32 = arith.constant 0 : i32
    %c0_i32_0 = arith.constant 0 : i32
    %c0_i32_1 = arith.constant 0 : i32
    return %c0_i32, %c0_i32_0 : i32, i32
  }
  func.func @transform_14(%arg0: i32) -> (i32, i32) {
    %c0_i32 = arith.constant 0 : i32
    %c0_i32_0 = arith.constant 0 : i32
    %c0_i32_1 = arith.constant 0 : i32
    return %c0_i32, %c0_i32_0 : i32, i32
  }
  func.func @transform_15(%arg0: i32) -> (i32, i32) {
    %c0_i32 = arith.constant 0 : i32
    %c0_i32_0 = arith.constant 0 : i32
    %c0_i32_1 = arith.constant 0 : i32
    return %c0_i32, %c0_i32_0 : i32, i32
  }
  func.func @transform_16(%arg0: i32) -> (i32, i32) {
    %c0_i32 = arith.constant 0 : i32
    %c0_i32_0 = arith.constant 0 : i32
    %c0_i32_1 = arith.constant 0 : i32
    return %c0_i32, %c0_i32_0 : i32, i32
  }
  func.func @transform_17(%arg0: i32) -> (i32, i32) {
    %c0_i32 = arith.constant 0 : i32
    %c0_i32_0 = arith.constant 0 : i32
    %c0_i32_1 = arith.constant 0 : i32
    return %c0_i32, %c0_i32_0 : i32, i32
  }
  func.func @transform_18(%arg0: i32) -> (i32, i32) {
    %c0_i32 = arith.constant 0 : i32
    %c0_i32_0 = arith.constant 0 : i32
    %c0_i32_1 = arith.constant 0 : i32
    return %c0_i32, %c0_i32_0 : i32, i32
  }
  func.func @transform_19(%arg0: i32) -> (i32, i32, i32) {
    %c0_i32 = arith.constant 0 : i32
    %c0_i32_0 = arith.constant 0 : i32
    %c0_i32_1 = arith.constant 0 : i32
    return %arg0, %c0_i32, %c0_i32_0 : i32, i32, i32
  }
}

</mosaic_0001>

<llo_original>
// kernel: simple_cnn_forward.1
$region0: #{simple_cnn_forward.1}
  #allocation0 [shape = 'u32[]', space=smem, size = 0x4, offset = 0x4, fixed_abs, tag = 'smem constant byte address 0x4 - core index']
  #allocation1 [shape = 'u32[72,128]{1,0:T(1,128)}', space=vmem, size = 0x9000, scoped, tag = 'internal scratch']
  %s0 = inlined_call_operand.vmem [shape: f32[2,1,676], index: 0, kind: input, shape index: {}]
  %s1 = inlined_call_operand.vmem [shape: f32[8,9], index: 1, kind: input, shape index: {}]
  %s2 = inlined_call_operand.vmem [shape: f32[8,1], index: 2, kind: input, shape index: {}]
  %s3 = inlined_call_operand.vmem [shape: f32[9,16,8], index: 3, kind: input, shape index: {}]
  %s4 = inlined_call_operand.vmem [shape: f32[16,1], index: 4, kind: input, shape index: {}]
  %s5 = inlined_call_operand.vmem [shape: f32[9,20,16], index: 5, kind: input, shape index: {}]
  %s6 = inlined_call_operand.vmem [shape: f32[20,1], index: 6, kind: input, shape index: {}]
  %s7 = inlined_call_operand.vmem [shape: f32[4,16], index: 7, kind: input, shape index: {}]
  %s8 = inlined_call_operand.vmem [shape: f32[4,1], index: 8, kind: input, shape index: {}]
  %s9 = inlined_call_operand.vmem [shape: f32[16,4], index: 9, kind: input, shape index: {}]
  %s10 = inlined_call_operand.vmem [shape: f32[16,1], index: 10, kind: input, shape index: {}]
  %s11 = inlined_call_operand.vmem [shape: f32[9,80,20], index: 11, kind: input, shape index: {}]
  %s12 = inlined_call_operand.vmem [shape: f32[80,1], index: 12, kind: input, shape index: {}]
  %s13 = inlined_call_operand.vmem [shape: f32[10,80], index: 13, kind: input, shape index: {}]
  %s14 = inlined_call_operand.vmem [shape: f32[10,1], index: 14, kind: input, shape index: {}]
  %s15 = inlined_call_operand.vmem [shape: f32[595,196], index: 15, kind: input, shape index: {}]
  %s16 = inlined_call_operand.vmem [shape: f32[151,64], index: 16, kind: input, shape index: {}]
  %s17 = inlined_call_operand.vmem [shape: f32[37,9], index: 17, kind: input, shape index: {}]
  %s18 = inlined_call_operand.vmem [shape: f32[166,1], index: 18, kind: input, shape index: {}]
  %s19 = inlined_call_operand.vmem [shape: f32[2,10,1], index: 19, kind: output, shape index: {}]
  %s20 = sld [smem:[#allocation0]]
  $region109: #{simple_cnn_forward.1} parent=0
    _
  %s22 = ssub.s32 1, %s20
  %s23 = scalar_select 0, %s22, %s20
  loop: start=0, step=1, limit=4
  $region2: #{simple_cnn_forward.1} parent=0 // loop_pre_header
    _
  $region3: #{simple_cnn_forward.1} parent=0 // loop_header
    %s25 = sphi 0, %s29
    %p26 = scmp.ge.s32.totalorder %s25, 4
    %s35 = sphi 0, %s37
    %s38 = sphi 0, %s35
    %s39 = sphi 0, %s38
    %s55 = sphi 0, %s39
    %s59 = sphi 0, %s59
    %s61 = sphi 0, %s59
    %s62 = sphi 0, %s61
    %s76 = sphi 0, %s62
    %s80 = sphi 0, %s80
    %s82 = sphi 0, %s80
    %s83 = sphi 0, %s82
    %s97 = sphi 0, %s83
    %s101 = sphi 0, %s101
    %s103 = sphi 0, %s101
    %s104 = sphi 0, %s103
    %s118 = sphi 0, %s104
    %s122 = sphi 0, %s122
    %s124 = sphi 0, %s122
    %s125 = sphi 0, %s124
    %s139 = sphi 0, %s125
    %s143 = sphi 0, %s143
    %s145 = sphi 0, %s143
    %s146 = sphi 0, %s145
    %s160 = sphi 0, %s146
    %s164 = sphi 0, %s164
    %s166 = sphi 0, %s164
    %s167 = sphi 0, %s166
    %s181 = sphi 0, %s167
    %s185 = sphi 0, %s185
    %s187 = sphi 0, %s185
    %s188 = sphi 0, %s187
    %s202 = sphi 0, %s188
    %s206 = sphi 0, %s206
    %s208 = sphi 0, %s206
    %s209 = sphi 0, %s208
    %s223 = sphi 0, %s209
    %s227 = sphi 0, %s227
    %s229 = sphi 0, %s227
    %s230 = sphi 0, %s229
    %s244 = sphi 0, %s230
    %s248 = sphi 0, %s248
    %s250 = sphi 0, %s248
    %s251 = sphi 0, %s250
    %s265 = sphi 0, %s251
    %s269 = sphi 0, %s269
    %s271 = sphi 0, %s269
    %s272 = sphi 0, %s271
    %s286 = sphi 0, %s272
    %s290 = sphi 0, %s290
    %s292 = sphi 0, %s290
    %s293 = sphi 0, %s292
    %s307 = sphi 0, %s293
    %s311 = sphi 0, %s311
    %s313 = sphi 0, %s311
    %s314 = sphi 0, %s313
    %s328 = sphi 0, %s314
    %s332 = sphi 0, %s332
    %s334 = sphi 0, %s332
    %s335 = sphi 0, %s334
    %s349 = sphi 0, %s335
    %s353 = sphi 0, %s353
    %s355 = sphi 0, %s353
    %s356 = sphi 0, %s355
    %s370 = sphi 0, %s356
    %s374 = sphi 0, %s374
    %s376 = sphi 0, %s374
    %s377 = sphi 0, %s376
    %s391 = sphi 0, %s377
    %s395 = sphi 0, %s395
    %s397 = sphi 0, %s395
    %s398 = sphi 0, %s397
    %s412 = sphi 0, %s398
    %s416 = sphi 0, %s416
    %s418 = sphi 0, %s416
    %s419 = sphi 0, %s418
    %s433 = sphi 0, %s419
    %s439 = sphi 0, %s441
    %s442 = sphi 0, %s439
    %s443 = sphi 0, %s442
    %s459 = sphi 0, %s443
  $region4: #{simple_cnn_forward.1} parent=0 // loop_header_branch
    %28 = sbr.rel (%p26) target = $region8
  $region5: #{simple_cnn_forward.1} parent=0 // loop_body
    %s30 = ssub.s32 %s25, 1
    %s31 = ssub.s32 %s25, 2
    %s32 = sadd.s32 %s25, 1
    %s33 = ssub.s32 %s25, %s32
    %p34 = scmp.eq.s32.totalorder %s33, 0
    %s36 = sadd.s32 %s35, 1
    %s37 = scalar_select %p34, %s35, %s36
    %p40 = pneg %p34
    %p41 = scmp.eq.s32.totalorder %s25, 1
    %p42 = por %p40, %p41
    %p43 = scmp.ne.s32.totalorder %s35, %s38
    %p44 = scmp.eq.s32.totalorder %s25, 0
    %p45 = por %p43, %p44
    %p46 = scmp.ne.s32.totalorder %s35, %s38
    %p47 = scmp.eq.s32.totalorder %s30, 1
    %p48 = por %p46, %p47
    %p49 = scmp.ne.s32.totalorder %s38, %s39
    %p50 = scmp.eq.s32.totalorder %s30, 0
    %p51 = por %p49, %p50
    %p52 = scmp.ne.s32.totalorder %s38, %s39
    %p53 = scmp.eq.s32.totalorder %s31, 1
    %p54 = por %p52, %p53
    %p56 = scmp.ne.s32.totalorder %s39, %s55
    %p57 = scmp.eq.s32.totalorder %s31, 0
    %p58 = por %p56, %p57
    %s60 = sadd.s32 %s59, 1
    %p63 = scmp.eq.s32.totalorder %s25, 1
    %p64 = scmp.ne.s32.totalorder %s59, %s61
    %p65 = scmp.eq.s32.totalorder %s25, 0
    %p66 = por %p64, %p65
    %p67 = scmp.ne.s32.totalorder %s59, %s61
    %p68 = scmp.eq.s32.totalorder %s30, 1
    %p69 = por %p67, %p68
    %p70 = scmp.ne.s32.totalorder %s61, %s62
    %p71 = scmp.eq.s32.totalorder %s30, 0
    %p72 = por %p70, %p71
    %p73 = scmp.ne.s32.totalorder %s61, %s62
    %p74 = scmp.eq.s32.totalorder %s31, 1
    %p75 = por %p73, %p74
    %p77 = scmp.ne.s32.totalorder %s62, %s76
    %p78 = scmp.eq.s32.totalorder %s31, 0
    %p79 = por %p77, %p78
    %s81 = sadd.s32 %s80, 1
    %p84 = scmp.eq.s32.totalorder %s25, 1
    %p85 = scmp.ne.s32.totalorder %s80, %s82
    %p86 = scmp.eq.s32.totalorder %s25, 0
    %p87 = por %p85, %p86
    %p88 = scmp.ne.s32.totalorder %s80, %s82
    %p89 = scmp.eq.s32.totalorder %s30, 1
    %p90 = por %p88, %p89
    %p91 = scmp.ne.s32.totalorder %s82, %s83
    %p92 = scmp.eq.s32.totalorder %s30, 0
    %p93 = por %p91, %p92
    %p94 = scmp.ne.s32.totalorder %s82, %s83
    %p95 = scmp.eq.s32.totalorder %s31, 1
    %p96 = por %p94, %p95
    %p98 = scmp.ne.s32.totalorder %s83, %s97
    %p99 = scmp.eq.s32.totalorder %s31, 0
    %p100 = por %p98, %p99
    %s102 = sadd.s32 %s101, 1
    %p105 = scmp.eq.s32.totalorder %s25, 1
    %p106 = scmp.ne.s32.totalorder %s101, %s103
    %p107 = scmp.eq.s32.totalorder %s25, 0
    %p108 = por %p106, %p107
    %p109 = scmp.ne.s32.totalorder %s101, %s103
    %p110 = scmp.eq.s32.totalorder %s30, 1
    %p111 = por %p109, %p110
    %p112 = scmp.ne.s32.totalorder %s103, %s104
    %p113 = scmp.eq.s32.totalorder %s30, 0
    %p114 = por %p112, %p113
    %p115 = scmp.ne.s32.totalorder %s103, %s104
    %p116 = scmp.eq.s32.totalorder %s31, 1
    %p117 = por %p115, %p116
    %p119 = scmp.ne.s32.totalorder %s104, %s118
    %p120 = scmp.eq.s32.totalorder %s31, 0
    %p121 = por %p119, %p120
    %s123 = sadd.s32 %s122, 1
    %p126 = scmp.eq.s32.totalorder %s25, 1
    %p127 = scmp.ne.s32.totalorder %s122, %s124
    %p128 = scmp.eq.s32.totalorder %s25, 0
    %p129 = por %p127, %p128
    %p130 = scmp.ne.s32.totalorder %s122, %s124
    %p131 = scmp.eq.s32.totalorder %s30, 1
    %p132 = por %p130, %p131
    %p133 = scmp.ne.s32.totalorder %s124, %s125
    %p134 = scmp.eq.s32.totalorder %s30, 0
    %p135 = por %p133, %p134
    %p136 = scmp.ne.s32.totalorder %s124, %s125
    %p137 = scmp.eq.s32.totalorder %s31, 1
    %p138 = por %p136, %p137
    %p140 = scmp.ne.s32.totalorder %s125, %s139
    %p141 = scmp.eq.s32.totalorder %s31, 0
    %p142 = por %p140, %p141
    %s144 = sadd.s32 %s143, 1
    %p147 = scmp.eq.s32.totalorder %s25, 1
    %p148 = scmp.ne.s32.totalorder %s143, %s145
    %p149 = scmp.eq.s32.totalorder %s25, 0
    %p150 = por %p148, %p149
    %p151 = scmp.ne.s32.totalorder %s143, %s145
    %p152 = scmp.eq.s32.totalorder %s30, 1
    %p153 = por %p151, %p152
    %p154 = scmp.ne.s32.totalorder %s145, %s146
    %p155 = scmp.eq.s32.totalorder %s30, 0
    %p156 = por %p154, %p155
    %p157 = scmp.ne.s32.totalorder %s145, %s146
    %p158 = scmp.eq.s32.totalorder %s31, 1
    %p159 = por %p157, %p158
    %p161 = scmp.ne.s32.totalorder %s146, %s160
    %p162 = scmp.eq.s32.totalorder %s31, 0
    %p163 = por %p161, %p162
    %s165 = sadd.s32 %s164, 1
    %p168 = scmp.eq.s32.totalorder %s25, 1
    %p169 = scmp.ne.s32.totalorder %s164, %s166
    %p170 = scmp.eq.s32.totalorder %s25, 0
    %p171 = por %p169, %p170
    %p172 = scmp.ne.s32.totalorder %s164, %s166
    %p173 = scmp.eq.s32.totalorder %s30, 1
    %p174 = por %p172, %p173
    %p175 = scmp.ne.s32.totalorder %s166, %s167
    %p176 = scmp.eq.s32.totalorder %s30, 0
    %p177 = por %p175, %p176
    %p178 = scmp.ne.s32.totalorder %s166, %s167
    %p179 = scmp.eq.s32.totalorder %s31, 1
    %p180 = por %p178, %p179
    %p182 = scmp.ne.s32.totalorder %s167, %s181
    %p183 = scmp.eq.s32.totalorder %s31, 0
    %p184 = por %p182, %p183
    %s186 = sadd.s32 %s185, 1
    %p189 = scmp.eq.s32.totalorder %s25, 1
    %p190 = scmp.ne.s32.totalorder %s185, %s187
    %p191 = scmp.eq.s32.totalorder %s25, 0
    %p192 = por %p190, %p191
    %p193 = scmp.ne.s32.totalorder %s185, %s187
    %p194 = scmp.eq.s32.totalorder %s30, 1
    %p195 = por %p193, %p194
    %p196 = scmp.ne.s32.totalorder %s187, %s188
    %p197 = scmp.eq.s32.totalorder %s30, 0
    %p198 = por %p196, %p197
    %p199 = scmp.ne.s32.totalorder %s187, %s188
    %p200 = scmp.eq.s32.totalorder %s31, 1
    %p201 = por %p199, %p200
    %p203 = scmp.ne.s32.totalorder %s188, %s202
    %p204 = scmp.eq.s32.totalorder %s31, 0
    %p205 = por %p203, %p204
    %s207 = sadd.s32 %s206, 1
    %p210 = scmp.eq.s32.totalorder %s25, 1
    %p211 = scmp.ne.s32.totalorder %s206, %s208
    %p212 = scmp.eq.s32.totalorder %s25, 0
    %p213 = por %p211, %p212
    %p214 = scmp.ne.s32.totalorder %s206, %s208
    %p215 = scmp.eq.s32.totalorder %s30, 1
    %p216 = por %p214, %p215
    %p217 = scmp.ne.s32.totalorder %s208, %s209
    %p218 = scmp.eq.s32.totalorder %s30, 0
    %p219 = por %p217, %p218
    %p220 = scmp.ne.s32.totalorder %s208, %s209
    %p221 = scmp.eq.s32.totalorder %s31, 1
    %p222 = por %p220, %p221
    %p224 = scmp.ne.s32.totalorder %s209, %s223
    %p225 = scmp.eq.s32.totalorder %s31, 0
    %p226 = por %p224, %p225
    %s228 = sadd.s32 %s227, 1
    %p231 = scmp.eq.s32.totalorder %s25, 1
    %p232 = scmp.ne.s32.totalorder %s227, %s229
    %p233 = scmp.eq.s32.totalorder %s25, 0
    %p234 = por %p232, %p233
    %p235 = scmp.ne.s32.totalorder %s227, %s229
    %p236 = scmp.eq.s32.totalorder %s30, 1
    %p237 = por %p235, %p236
    %p238 = scmp.ne.s32.totalorder %s229, %s230
    %p239 = scmp.eq.s32.totalorder %s30, 0
    %p240 = por %p238, %p239
    %p241 = scmp.ne.s32.totalorder %s229, %s230
    %p242 = scmp.eq.s32.totalorder %s31, 1
    %p243 = por %p241, %p242
    %p245 = scmp.ne.s32.totalorder %s230, %s244
    %p246 = scmp.eq.s32.totalorder %s31, 0
    %p247 = por %p245, %p246
    %s249 = sadd.s32 %s248, 1
    %p252 = scmp.eq.s32.totalorder %s25, 1
    %p253 = scmp.ne.s32.totalorder %s248, %s250
    %p254 = scmp.eq.s32.totalorder %s25, 0
    %p255 = por %p253, %p254
    %p256 = scmp.ne.s32.totalorder %s248, %s250
    %p257 = scmp.eq.s32.totalorder %s30, 1
    %p258 = por %p256, %p257
    %p259 = scmp.ne.s32.totalorder %s250, %s251
    %p260 = scmp.eq.s32.totalorder %s30, 0
    %p261 = por %p259, %p260
    %p262 = scmp.ne.s32.totalorder %s250, %s251
    %p263 = scmp.eq.s32.totalorder %s31, 1
    %p264 = por %p262, %p263
    %p266 = scmp.ne.s32.totalorder %s251, %s265
    %p267 = scmp.eq.s32.totalorder %s31, 0
    %p268 = por %p266, %p267
    %s270 = sadd.s32 %s269, 1
    %p273 = scmp.eq.s32.totalorder %s25, 1
    %p274 = scmp.ne.s32.totalorder %s269, %s271
    %p275 = scmp.eq.s32.totalorder %s25, 0
    %p276 = por %p274, %p275
    %p277 = scmp.ne.s32.totalorder %s269, %s271
    %p278 = scmp.eq.s32.totalorder %s30, 1
    %p279 = por %p277, %p278
    %p280 = scmp.ne.s32.totalorder %s271, %s272
    %p281 = scmp.eq.s32.totalorder %s30, 0
    %p282 = por %p280, %p281
    %p283 = scmp.ne.s32.totalorder %s271, %s272
    %p284 = scmp.eq.s32.totalorder %s31, 1
    %p285 = por %p283, %p284
    %p287 = scmp.ne.s32.totalorder %s272, %s286
    %p288 = scmp.eq.s32.totalorder %s31, 0
    %p289 = por %p287, %p288
    %s291 = sadd.s32 %s290, 1
    %p294 = scmp.eq.s32.totalorder %s25, 1
    %p295 = scmp.ne.s32.totalorder %s290, %s292
    %p296 = scmp.eq.s32.totalorder %s25, 0
    %p297 = por %p295, %p296
    %p298 = scmp.ne.s32.totalorder %s290, %s292
    %p299 = scmp.eq.s32.totalorder %s30, 1
    %p300 = por %p298, %p299
    %p301 = scmp.ne.s32.totalorder %s292, %s293
    %p302 = scmp.eq.s32.totalorder %s30, 0
    %p303 = por %p301, %p302
    %p304 = scmp.ne.s32.totalorder %s292, %s293
    %p305 = scmp.eq.s32.totalorder %s31, 1
    %p306 = por %p304, %p305
    %p308 = scmp.ne.s32.totalorder %s293, %s307
    %p309 = scmp.eq.s32.totalorder %s31, 0
    %p310 = por %p308, %p309
    %s312 = sadd.s32 %s311, 1
    %p315 = scmp.eq.s32.totalorder %s25, 1
    %p316 = scmp.ne.s32.totalorder %s311, %s313
    %p317 = scmp.eq.s32.totalorder %s25, 0
    %p318 = por %p316, %p317
    %p319 = scmp.ne.s32.totalorder %s311, %s313
    %p320 = scmp.eq.s32.totalorder %s30, 1
    %p321 = por %p319, %p320
    %p322 = scmp.ne.s32.totalorder %s313, %s314
    %p323 = scmp.eq.s32.totalorder %s30, 0
    %p324 = por %p322, %p323
    %p325 = scmp.ne.s32.totalorder %s313, %s314
    %p326 = scmp.eq.s32.totalorder %s31, 1
    %p327 = por %p325, %p326
    %p329 = scmp.ne.s32.totalorder %s314, %s328
    %p330 = scmp.eq.s32.totalorder %s31, 0
    %p331 = por %p329, %p330
    %s333 = sadd.s32 %s332, 1
    %p336 = scmp.eq.s32.totalorder %s25, 1
    %p337 = scmp.ne.s32.totalorder %s332, %s334
    %p338 = scmp.eq.s32.totalorder %s25, 0
    %p339 = por %p337, %p338
    %p340 = scmp.ne.s32.totalorder %s332, %s334
    %p341 = scmp.eq.s32.totalorder %s30, 1
    %p342 = por %p340, %p341
    %p343 = scmp.ne.s32.totalorder %s334, %s335
    %p344 = scmp.eq.s32.totalorder %s30, 0
    %p345 = por %p343, %p344
    %p346 = scmp.ne.s32.totalorder %s334, %s335
    %p347 = scmp.eq.s32.totalorder %s31, 1
    %p348 = por %p346, %p347
    %p350 = scmp.ne.s32.totalorder %s335, %s349
    %p351 = scmp.eq.s32.totalorder %s31, 0
    %p352 = por %p350, %p351
    %s354 = sadd.s32 %s353, 1
    %p357 = scmp.eq.s32.totalorder %s25, 1
    %p358 = scmp.ne.s32.totalorder %s353, %s355
    %p359 = scmp.eq.s32.totalorder %s25, 0
    %p360 = por %p358, %p359
    %p361 = scmp.ne.s32.totalorder %s353, %s355
    %p362 = scmp.eq.s32.totalorder %s30, 1
    %p363 = por %p361, %p362
    %p364 = scmp.ne.s32.totalorder %s355, %s356
    %p365 = scmp.eq.s32.totalorder %s30, 0
    %p366 = por %p364, %p365
    %p367 = scmp.ne.s32.totalorder %s355, %s356
    %p368 = scmp.eq.s32.totalorder %s31, 1
    %p369 = por %p367, %p368
    %p371 = scmp.ne.s32.totalorder %s356, %s370
    %p372 = scmp.eq.s32.totalorder %s31, 0
    %p373 = por %p371, %p372
    %s375 = sadd.s32 %s374, 1
    %p378 = scmp.eq.s32.totalorder %s25, 1
    %p379 = scmp.ne.s32.totalorder %s374, %s376
    %p380 = scmp.eq.s32.totalorder %s25, 0
    %p381 = por %p379, %p380
    %p382 = scmp.ne.s32.totalorder %s374, %s376
    %p383 = scmp.eq.s32.totalorder %s30, 1
    %p384 = por %p382, %p383
    %p385 = scmp.ne.s32.totalorder %s376, %s377
    %p386 = scmp.eq.s32.totalorder %s30, 0
    %p387 = por %p385, %p386
    %p388 = scmp.ne.s32.totalorder %s376, %s377
    %p389 = scmp.eq.s32.totalorder %s31, 1
    %p390 = por %p388, %p389
    %p392 = scmp.ne.s32.totalorder %s377, %s391
    %p393 = scmp.eq.s32.totalorder %s31, 0
    %p394 = por %p392, %p393
    %s396 = sadd.s32 %s395, 1
    %p399 = scmp.eq.s32.totalorder %s25, 1
    %p400 = scmp.ne.s32.totalorder %s395, %s397
    %p401 = scmp.eq.s32.totalorder %s25, 0
    %p402 = por %p400, %p401
    %p403 = scmp.ne.s32.totalorder %s395, %s397
    %p404 = scmp.eq.s32.totalorder %s30, 1
    %p405 = por %p403, %p404
    %p406 = scmp.ne.s32.totalorder %s397, %s398
    %p407 = scmp.eq.s32.totalorder %s30, 0
    %p408 = por %p406, %p407
    %p409 = scmp.ne.s32.totalorder %s397, %s398
    %p410 = scmp.eq.s32.totalorder %s31, 1
    %p411 = por %p409, %p410
    %p413 = scmp.ne.s32.totalorder %s398, %s412
    %p414 = scmp.eq.s32.totalorder %s31, 0
    %p415 = por %p413, %p414
    %s417 = sadd.s32 %s416, 1
    %p420 = scmp.eq.s32.totalorder %s25, 1
    %p421 = scmp.ne.s32.totalorder %s416, %s418
    %p422 = scmp.eq.s32.totalorder %s25, 0
    %p423 = por %p421, %p422
    %p424 = scmp.ne.s32.totalorder %s416, %s418
    %p425 = scmp.eq.s32.totalorder %s30, 1
    %p426 = por %p424, %p425
    %p427 = scmp.ne.s32.totalorder %s418, %s419
    %p428 = scmp.eq.s32.totalorder %s30, 0
    %p429 = por %p427, %p428
    %p430 = scmp.ne.s32.totalorder %s418, %s419
    %p431 = scmp.eq.s32.totalorder %s31, 1
    %p432 = por %p430, %p431
    %p434 = scmp.ne.s32.totalorder %s419, %s433
    %p435 = scmp.eq.s32.totalorder %s31, 0
    %p436 = por %p434, %p435
    %s437 = ssub.s32 %s25, %s32
    %p438 = scmp.eq.s32.totalorder %s437, 0
    %s440 = sadd.s32 %s439, 1
    %s441 = scalar_select %p438, %s439, %s440
    %p444 = pneg %p438
    %p445 = scmp.eq.s32.totalorder %s25, 1
    %p446 = por %p444, %p445
    %p447 = scmp.ne.s32.totalorder %s439, %s442
    %p448 = scmp.eq.s32.totalorder %s25, 0
    %p449 = por %p447, %p448
    %p450 = scmp.ne.s32.totalorder %s439, %s442
    %p451 = scmp.eq.s32.totalorder %s30, 1
    %p452 = por %p450, %p451
    %p453 = scmp.ne.s32.totalorder %s442, %s443
    %p454 = scmp.eq.s32.totalorder %s30, 0
    %p455 = por %p453, %p454
    %p456 = scmp.ne.s32.totalorder %s442, %s443
    %p457 = scmp.eq.s32.totalorder %s31, 1
    %p458 = por %p456, %p457
    %p460 = scmp.ne.s32.totalorder %s443, %s459
    %p461 = scmp.eq.s32.totalorder %s31, 0
    %p462 = por %p460, %p461
    %p463 = scmp.le.s32.totalorder 1, %s25
    %p464 = scmp.lt.s32.totalorder %s25, 3
    %p465 = pnand %p463, %p464
    %p466 = pneg %p465
    // Predicated region
    $region9: #{simple_cnn_forward.1} parent=5 // pred_check
      _
    $region10: #{simple_cnn_forward.1} parent=5 // pred_check_branch
      %468 = sbr.rel (%p465) target = $region12
    $region11: #{simple_cnn_forward.1} parent=5 // pred_region
      %s469 = ssub.s32 %s25, 1
      // Predicated region
      $region13: #{simple_cnn_forward.1} parent=11 // pred_check
        %p470 = pneg %p72
      $region14: #{simple_cnn_forward.1} parent=11 // pred_check_branch
        %472 = sbr.rel (%p470) target = $region16
      $region15: #{simple_cnn_forward.1} parent=11 // pred_region
        _
      $region16: #{simple_cnn_forward.1} parent=11 // pred_fallthru
        _
      // Predicated region
      $region17: #{simple_cnn_forward.1} parent=11 // pred_check
        %p473 = pneg %p93
      $region18: #{simple_cnn_forward.1} parent=11 // pred_check_branch
        %475 = sbr.rel (%p473) target = $region20
      $region19: #{simple_cnn_forward.1} parent=11 // pred_region
        _
      $region20: #{simple_cnn_forward.1} parent=11 // pred_fallthru
        _
      // Predicated region
      $region21: #{simple_cnn_forward.1} parent=11 // pred_check
        %p476 = pneg %p114
      $region22: #{simple_cnn_forward.1} parent=11 // pred_check_branch
        %478 = sbr.rel (%p476) target = $region24
      $region23: #{simple_cnn_forward.1} parent=11 // pred_region
        _
      $region24: #{simple_cnn_forward.1} parent=11 // pred_fallthru
        _
      // Predicated region
      $region25: #{simple_cnn_forward.1} parent=11 // pred_check
        %p479 = pneg %p135
      $region26: #{simple_cnn_forward.1} parent=11 // pred_check_branch
        %481 = sbr.rel (%p479) target = $region28
      $region27: #{simple_cnn_forward.1} parent=11 // pred_region
        _
      $region28: #{simple_cnn_forward.1} parent=11 // pred_fallthru
        _
      // Predicated region
      $region29: #{simple_cnn_forward.1} parent=11 // pred_check
        %p482 = pneg %p156
      $region30: #{simple_cnn_forward.1} parent=11 // pred_check_branch
        %484 = sbr.rel (%p482) target = $region32
      $region31: #{simple_cnn_forward.1} parent=11 // pred_region
        _
      $region32: #{simple_cnn_forward.1} parent=11 // pred_fallthru
        _
      // Predicated region
      $region33: #{simple_cnn_forward.1} parent=11 // pred_check
        %p485 = pneg %p177
      $region34: #{simple_cnn_forward.1} parent=11 // pred_check_branch
        %487 = sbr.rel (%p485) target = $region36
      $region35: #{simple_cnn_forward.1} parent=11 // pred_region
        _
      $region36: #{simple_cnn_forward.1} parent=11 // pred_fallthru
        _
      // Predicated region
      $region37: #{simple_cnn_forward.1} parent=11 // pred_check
        %p488 = pneg %p198
      $region38: #{simple_cnn_forward.1} parent=11 // pred_check_branch
        %490 = sbr.rel (%p488) target = $region40
      $region39: #{simple_cnn_forward.1} parent=11 // pred_region
        _
      $region40: #{simple_cnn_forward.1} parent=11 // pred_fallthru
        _
      // Predicated region
      $region41: #{simple_cnn_forward.1} parent=11 // pred_check
        %p491 = pneg %p219
      $region42: #{simple_cnn_forward.1} parent=11 // pred_check_branch
        %493 = sbr.rel (%p491) target = $region44
      $region43: #{simple_cnn_forward.1} parent=11 // pred_region
        _
      $region44: #{simple_cnn_forward.1} parent=11 // pred_fallthru
        _
      // Predicated region
      $region45: #{simple_cnn_forward.1} parent=11 // pred_check
        %p494 = pneg %p240
      $region46: #{simple_cnn_forward.1} parent=11 // pred_check_branch
        %496 = sbr.rel (%p494) target = $region48
      $region47: #{simple_cnn_forward.1} parent=11 // pred_region
        _
      $region48: #{simple_cnn_forward.1} parent=11 // pred_fallthru
        _
      // Predicated region
      $region49: #{simple_cnn_forward.1} parent=11 // pred_check
        %p497 = pneg %p261
      $region50: #{simple_cnn_forward.1} parent=11 // pred_check_branch
        %499 = sbr.rel (%p497) target = $region52
      $region51: #{simple_cnn_forward.1} parent=11 // pred_region
        _
      $region52: #{simple_cnn_forward.1} parent=11 // pred_fallthru
        _
      // Predicated region
      $region53: #{simple_cnn_forward.1} parent=11 // pred_check
        %p500 = pneg %p282
      $region54: #{simple_cnn_forward.1} parent=11 // pred_check_branch
        %502 = sbr.rel (%p500) target = $region56
      $region55: #{simple_cnn_forward.1} parent=11 // pred_region
        _
      $region56: #{simple_cnn_forward.1} parent=11 // pred_fallthru
        _
      // Predicated region
      $region57: #{simple_cnn_forward.1} parent=11 // pred_check
        %p503 = pneg %p303
      $region58: #{simple_cnn_forward.1} parent=11 // pred_check_branch
        %505 = sbr.rel (%p503) target = $region60
      $region59: #{simple_cnn_forward.1} parent=11 // pred_region
        _
      $region60: #{simple_cnn_forward.1} parent=11 // pred_fallthru
        _
      // Predicated region
      $region61: #{simple_cnn_forward.1} parent=11 // pred_check
        %p506 = pneg %p324
      $region62: #{simple_cnn_forward.1} parent=11 // pred_check_branch
        %508 = sbr.rel (%p506) target = $region64
      $region63: #{simple_cnn_forward.1} parent=11 // pred_region
        _
      $region64: #{simple_cnn_forward.1} parent=11 // pred_fallthru
        _
      // Predicated region
      $region65: #{simple_cnn_forward.1} parent=11 // pred_check
        %p509 = pneg %p345
      $region66: #{simple_cnn_forward.1} parent=11 // pred_check_branch
        %511 = sbr.rel (%p509) target = $region68
      $region67: #{simple_cnn_forward.1} parent=11 // pred_region
        _
      $region68: #{simple_cnn_forward.1} parent=11 // pred_fallthru
        _
      // Predicated region
      $region69: #{simple_cnn_forward.1} parent=11 // pred_check
        %p512 = pneg %p366
      $region70: #{simple_cnn_forward.1} parent=11 // pred_check_branch
        %514 = sbr.rel (%p512) target = $region72
      $region71: #{simple_cnn_forward.1} parent=11 // pred_region
        _
      $region72: #{simple_cnn_forward.1} parent=11 // pred_fallthru
        _
      // Predicated region
      $region73: #{simple_cnn_forward.1} parent=11 // pred_check
        %p515 = pneg %p387
      $region74: #{simple_cnn_forward.1} parent=11 // pred_check_branch
        %517 = sbr.rel (%p515) target = $region76
      $region75: #{simple_cnn_forward.1} parent=11 // pred_region
        _
      $region76: #{simple_cnn_forward.1} parent=11 // pred_fallthru
        _
      // Predicated region
      $region77: #{simple_cnn_forward.1} parent=11 // pred_check
        %p518 = pneg %p408
      $region78: #{simple_cnn_forward.1} parent=11 // pred_check_branch
        %520 = sbr.rel (%p518) target = $region80
      $region79: #{simple_cnn_forward.1} parent=11 // pred_region
        _
      $region80: #{simple_cnn_forward.1} parent=11 // pred_fallthru
        _
      // Predicated region
      $region81: #{simple_cnn_forward.1} parent=11 // pred_check
        %p521 = pneg %p429
      $region82: #{simple_cnn_forward.1} parent=11 // pred_check_branch
        %523 = sbr.rel (%p521) target = $region84
      $region83: #{simple_cnn_forward.1} parent=11 // pred_region
        _
      $region84: #{simple_cnn_forward.1} parent=11 // pred_fallthru
        _
    $region12: #{simple_cnn_forward.1} parent=5 // pred_fallthru
      _
    %p524 = scmp.lt.s32.totalorder %s25, 2
    // Predicated region
    $region85: #{simple_cnn_forward.1} parent=5 // pred_check
      %p525 = pneg %p524
    $region86: #{simple_cnn_forward.1} parent=5 // pred_check_branch
      %527 = sbr.rel (%p525) target = $region88
    $region87: #{simple_cnn_forward.1} parent=5 // pred_region
      // Predicated region
      $region89: #{simple_cnn_forward.1} parent=87 // pred_check
        %p528 = pneg %p45
      $region90: #{simple_cnn_forward.1} parent=87 // pred_check_branch
        %530 = sbr.rel (%p528) target = $region92
      $region91: #{simple_cnn_forward.1} parent=87 // pred_region
        %p531 = scmp.lt.s32.totalorder %s25, 1
        %s532 = scalar_select %p531, %s25, 1
        %s533 = smul.addr %s532, 6
        %s534 = scalar_lea.vmem %s0, %s533
      $region92: #{simple_cnn_forward.1} parent=87 // pred_fallthru
        _
    $region88: #{simple_cnn_forward.1} parent=5 // pred_fallthru
      _
    %p535 = scmp.le.s32.totalorder 1, %s25
    %p536 = scmp.lt.s32.totalorder %s25, 3
    %p537 = pnand %p535, %p536
    %p538 = pneg %p537
    // Predicated region
    $region93: #{simple_cnn_forward.1} parent=5 // pred_check
      _
    $region94: #{simple_cnn_forward.1} parent=5 // pred_check_branch
      %540 = sbr.rel (%p537) target = $region96
    $region95: #{simple_cnn_forward.1} parent=5 // pred_region
      %s541 = ssub.s32 %s25, 1
      %p542 = scmp.lt.s32.totalorder %s30, 1
      %s543 = scalar_select %p542, %s30, 1
      %s544 = smul.addr %s543, 6
      %s545 = scalar_lea.vmem %s0, %s544
      %p546 = pneg %p51
      %p547 = pneg %p48
      %p548 = pneg %p72
      %p549 = pneg %p69
      %p550 = pneg %p93
      %p551 = pneg %p90
      %p552 = pneg %p114
      %p553 = pneg %p111
      %p554 = pneg %p135
      %p555 = pneg %p132
      %p556 = pneg %p156
      %p557 = pneg %p153
      %p558 = pneg %p177
      %p559 = pneg %p174
      %p560 = pneg %p198
      %p561 = pneg %p195
      %p562 = pneg %p219
      %p563 = pneg %p216
      %p564 = pneg %p240
      %p565 = pneg %p237
      %p566 = pneg %p261
      %p567 = pneg %p258
      %p568 = pneg %p282
      %p569 = pneg %p279
      %p570 = pneg %p303
      %p571 = pneg %p300
      %p572 = pneg %p324
      %p573 = pneg %p321
      %p574 = pneg %p345
      %p575 = pneg %p342
      %p576 = pneg %p366
      %p577 = pneg %p363
      %p578 = pneg %p387
      %p579 = pneg %p384
      %p580 = pneg %p408
      %p581 = pneg %p405
      %p582 = pneg %p429
      %p583 = pneg %p426
      %p584 = pneg %p455
      %p585 = pneg %p452
      %p586 = scmp.lt.s32.totalorder %s30, 1
      %s587 = scalar_select %p586, %s30, 1
      %s588 = smul.addr %s587, 2
      %s589 = smul.addr %s588, 8
      %s590 = scalar_lea.vmem %s19, %s589
      %p591 = scmp.lt.s32.totalorder %s30, 1
      %s592 = scalar_select %p591, %s30, 1
      %s593 = smul.addr %s592, 6
      %s594 = scalar_lea.vmem %s0, %s593
      %p595 = scmp.lt.s32.totalorder %s30, 1
      %s596 = scalar_select %p595, %s30, 1
      %s597 = smul.addr %s596, 2
      %s598 = smul.addr %s597, 8
      %s599 = scalar_lea.vmem %s19, %s598
      %v600 = vld [vmem:[%s594] sm:$0x3f]
      %v601 = vld [vmem:[%s1] sm:$0xff]
      %603 = vset.pattern.permute.xlu0 0
      %604 = vperm.xlu0 %603, %v601
      %v605 = vpop.permute.xlu0 %604
      %v608 = vperm.slane %v600, 0
      %v609 = vperm.slane %v600, 1
      %v610 = vperm.slane %v600, 2
      %v611 = vperm.slane %v600, 3
      %v612 = vperm.slane %v600, 4
      %v618 = vmul.f32 %v605, %v608
      %v619 = vmul.f32 %v605, %v609
      %v620 = vmul.f32 %v605, %v610
      %v621 = vmul.f32 %v605, %v611
      %v622 = vmul.f32 %v605, %v612
      %v623 = vadd.f32 %v618, 0.0
      %v624 = vadd.f32 %v619, 0.0
      %v625 = vadd.f32 %v620, 0.0
      %v626 = vadd.f32 %v621, 0.0
      %v627 = vadd.f32 %v622, 0.0
      %628 = vset.pattern.permute.xlu0 1
      %629 = vperm.xlu0 %628, %v601
      %v630 = vpop.permute.xlu0 %629
      %v632 = vmul.f32 %v630, %v608
      %v633 = vmul.f32 %v630, %v609
      %v634 = vmul.f32 %v630, %v610
      %v635 = vmul.f32 %v630, %v611
      %v636 = vmul.f32 %v630, %v612
      %642 = vrot.lane.b32.xlu0 %v632, 127
      %v643 = vpop.permute.xlu0 %642
      %644 = vrot.lane.b32.xlu0 %v633, 127
      %v645 = vpop.permute.xlu0 %644
      %646 = vrot.lane.b32.xlu0 %v634, 127
      %v647 = vpop.permute.xlu0 %646
      %648 = vrot.lane.b32.xlu0 %v635, 127
      %v649 = vpop.permute.xlu0 %648
      %650 = vrot.lane.b32.xlu0 %v636, 127
      %v651 = vpop.permute.xlu0 %650
      %vm652 = vcmask 1039360
      %v653 = vsel %vm652, %v643, %v645
      %v654 = vsel %vm652, %v645, %v647
      %v655 = vsel %vm652, %v647, %v649
      %v656 = vsel %vm652, %v649, %v651
      %v662 = vadd.f32 %v623, %v653
      %v663 = vadd.f32 %v624, %v654
      %v664 = vadd.f32 %v625, %v655
      %v665 = vadd.f32 %v626, %v656
      %v666 = vadd.f32 %v627, %v651
      %667 = vset.pattern.permute.xlu0 2
      %668 = vperm.xlu0 %667, %v601
      %v669 = vpop.permute.xlu0 %668
      %v671 = vmul.f32 %v669, %v608
      %v672 = vmul.f32 %v669, %v609
      %v673 = vmul.f32 %v669, %v610
      %v674 = vmul.f32 %v669, %v611
      %v675 = vmul.f32 %v669, %v612
      %681 = vrot.lane.b32.xlu0 %v671, 126
      %v682 = vpop.permute.xlu0 %681
      %683 = vrot.lane.b32.xlu0 %v672, 126
      %v684 = vpop.permute.xlu0 %683
      %685 = vrot.lane.b32.xlu0 %v673, 126
      %v686 = vpop.permute.xlu0 %685
      %687 = vrot.lane.b32.xlu0 %v674, 126
      %v688 = vpop.permute.xlu0 %687
      %689 = vrot.lane.b32.xlu0 %v675, 126
      %v690 = vpop.permute.xlu0 %689
      %vm691 = vcmask 1031168
      %v692 = vsel %vm691, %v682, %v684
      %v693 = vsel %vm691, %v684, %v686
      %v694 = vsel %vm691, %v686, %v688
      %v695 = vsel %vm691, %v688, %v690
      %v701 = vadd.f32 %v662, %v692
      %v702 = vadd.f32 %v663, %v693
      %v703 = vadd.f32 %v664, %v694
      %v704 = vadd.f32 %v665, %v695
      %v705 = vadd.f32 %v666, %v690
      %706 = vset.pattern.permute.xlu0 3
      %707 = vperm.xlu0 %706, %v601
      %v708 = vpop.permute.xlu0 %707
      %v710 = vperm.slane %v600, 5
      %v712 = vmul.f32 %v708, %v608
      %v713 = vmul.f32 %v708, %v609
      %v714 = vmul.f32 %v708, %v610
      %v715 = vmul.f32 %v708, %v611
      %v716 = vmul.f32 %v708, %v612
      %v717 = vmul.f32 %v708, %v710
      %724 = vrot.lane.b32.xlu0 %v712, 102
      %v725 = vpop.permute.xlu0 %724
      %726 = vrot.lane.b32.xlu0 %v713, 102
      %v727 = vpop.permute.xlu0 %726
      %728 = vrot.lane.b32.xlu0 %v714, 102
      %v729 = vpop.permute.xlu0 %728
      %730 = vrot.lane.b32.xlu0 %v715, 102
      %v731 = vpop.permute.xlu0 %730
      %732 = vrot.lane.b32.xlu0 %v716, 102
      %v733 = vpop.permute.xlu0 %732
      %734 = vrot.lane.b32.xlu0 %v717, 102
      %v735 = vpop.permute.xlu0 %734
      %vm736 = vcmask 834560
      %v737 = vsel %vm736, %v725, %v727
      %v738 = vsel %vm736, %v727, %v729
      %v739 = vsel %vm736, %v729, %v731
      %v740 = vsel %vm736, %v731, %v733
      %v741 = vsel %vm736, %v733, %v735
      %v747 = vadd.f32 %v701, %v737
      %v748 = vadd.f32 %v702, %v738
      %v749 = vadd.f32 %v703, %v739
      %v750 = vadd.f32 %v704, %v740
      %v751 = vadd.f32 %v705, %v741
      %752 = vset.pattern.permute.xlu0 4
      %753 = vperm.xlu0 %752, %v601
      %v754 = vpop.permute.xlu0 %753
      %v756 = vmul.f32 %v754, %v608
      %v757 = vmul.f32 %v754, %v609
      %v758 = vmul.f32 %v754, %v610
      %v759 = vmul.f32 %v754, %v611
      %v760 = vmul.f32 %v754, %v612
      %v761 = vmul.f32 %v754, %v710
      %768 = vrot.lane.b32.xlu0 %v756, 101
      %v769 = vpop.permute.xlu0 %768
      %770 = vrot.lane.b32.xlu0 %v757, 101
      %v771 = vpop.permute.xlu0 %770
      %772 = vrot.lane.b32.xlu0 %v758, 101
      %v773 = vpop.permute.xlu0 %772
      %774 = vrot.lane.b32.xlu0 %v759, 101
      %v775 = vpop.permute.xlu0 %774
      %776 = vrot.lane.b32.xlu0 %v760, 101
      %v777 = vpop.permute.xlu0 %776
      %778 = vrot.lane.b32.xlu0 %v761, 101
      %v779 = vpop.permute.xlu0 %778
      %vm780 = vcmask 826368
      %v781 = vsel %vm780, %v769, %v771
      %v782 = vsel %vm780, %v771, %v773
      %v783 = vsel %vm780, %v773, %v775
      %v784 = vsel %vm780, %v775, %v777
      %v785 = vsel %vm780, %v777, %v779
      %v791 = vadd.f32 %v747, %v781
      %v792 = vadd.f32 %v748, %v782
      %v793 = vadd.f32 %v749, %v783
      %v794 = vadd.f32 %v750, %v784
      %v795 = vadd.f32 %v751, %v785
      %796 = vset.pattern.permute.xlu0 5
      %797 = vperm.xlu0 %796, %v601
      %v798 = vpop.permute.xlu0 %797
      %v800 = vmul.f32 %v798, %v608
      %v801 = vmul.f32 %v798, %v609
      %v802 = vmul.f32 %v798, %v610
      %v803 = vmul.f32 %v798, %v611
      %v804 = vmul.f32 %v798, %v612
      %v805 = vmul.f32 %v798, %v710
      %812 = vrot.lane.b32.xlu0 %v800, 100
      %v813 = vpop.permute.xlu0 %812
      %814 = vrot.lane.b32.xlu0 %v801, 100
      %v815 = vpop.permute.xlu0 %814
      %816 = vrot.lane.b32.xlu0 %v802, 100
      %v817 = vpop.permute.xlu0 %816
      %818 = vrot.lane.b32.xlu0 %v803, 100
      %v819 = vpop.permute.xlu0 %818
      %820 = vrot.lane.b32.xlu0 %v804, 100
      %v821 = vpop.permute.xlu0 %820
      %822 = vrot.lane.b32.xlu0 %v805, 100
      %v823 = vpop.permute.xlu0 %822
      %vm824 = vcmask 818176
      %v825 = vsel %vm824, %v813, %v815
      %v826 = vsel %vm824, %v815, %v817
      %v827 = vsel %vm824, %v817, %v819
      %v828 = vsel %vm824, %v819, %v821
      %v829 = vsel %vm824, %v821, %v823
      %v835 = vadd.f32 %v791, %v825
      %v836 = vadd.f32 %v792, %v826
      %v837 = vadd.f32 %v793, %v827
      %v838 = vadd.f32 %v794, %v828
      %v839 = vadd.f32 %v795, %v829
      %840 = vset.pattern.permute.xlu0 6
      %841 = vperm.xlu0 %840, %v601
      %v842 = vpop.permute.xlu0 %841
      %v844 = vmul.f32 %v842, %v608
      %v845 = vmul.f32 %v842, %v609
      %v846 = vmul.f32 %v842, %v610
      %v847 = vmul.f32 %v842, %v611
      %v848 = vmul.f32 %v842, %v612
      %v849 = vmul.f32 %v842, %v710
      %856 = vrot.lane.b32.xlu0 %v844, 76
      %v857 = vpop.permute.xlu0 %856
      %858 = vrot.lane.b32.xlu0 %v845, 76
      %v859 = vpop.permute.xlu0 %858
      %860 = vrot.lane.b32.xlu0 %v846, 76
      %v861 = vpop.permute.xlu0 %860
      %862 = vrot.lane.b32.xlu0 %v847, 76
      %v863 = vpop.permute.xlu0 %862
      %864 = vrot.lane.b32.xlu0 %v848, 76
      %v865 = vpop.permute.xlu0 %864
      %866 = vrot.lane.b32.xlu0 %v849, 76
      %v867 = vpop.permute.xlu0 %866
      %vm868 = vcmask 621568
      %v869 = vsel %vm868, %v857, %v859
      %v870 = vsel %vm868, %v859, %v861
      %v871 = vsel %vm868, %v861, %v863
      %v872 = vsel %vm868, %v863, %v865
      %v873 = vsel %vm868, %v865, %v867
      %v879 = vadd.f32 %v835, %v869
      %v880 = vadd.f32 %v836, %v870
      %v881 = vadd.f32 %v837, %v871
      %v882 = vadd.f32 %v838, %v872
      %v883 = vadd.f32 %v839, %v873
      %884 = vset.pattern.permute.xlu0 7
      %885 = vperm.xlu0 %884, %v601
      %v886 = vpop.permute.xlu0 %885
      %v888 = vmul.f32 %v886, %v608
      %v889 = vmul.f32 %v886, %v609
      %v890 = vmul.f32 %v886, %v610
      %v891 = vmul.f32 %v886, %v611
      %v892 = vmul.f32 %v886, %v612
      %v893 = vmul.f32 %v886, %v710
      %900 = vrot.lane.b32.xlu0 %v888, 75
      %v901 = vpop.permute.xlu0 %900
      %902 = vrot.lane.b32.xlu0 %v889, 75
      %v903 = vpop.permute.xlu0 %902
      %904 = vrot.lane.b32.xlu0 %v890, 75
      %v905 = vpop.permute.xlu0 %904
      %906 = vrot.lane.b32.xlu0 %v891, 75
      %v907 = vpop.permute.xlu0 %906
      %908 = vrot.lane.b32.xlu0 %v892, 75
      %v909 = vpop.permute.xlu0 %908
      %910 = vrot.lane.b32.xlu0 %v893, 75
      %v911 = vpop.permute.xlu0 %910
      %vm912 = vcmask 613376
      %v913 = vsel %vm912, %v901, %v903
      %v914 = vsel %vm912, %v903, %v905
      %v915 = vsel %vm912, %v905, %v907
      %v916 = vsel %vm912, %v907, %v909
      %v917 = vsel %vm912, %v909, %v911
      %v923 = vadd.f32 %v879, %v913
      %v924 = vadd.f32 %v880, %v914
      %v925 = vadd.f32 %v881, %v915
      %v926 = vadd.f32 %v882, %v916
      %v927 = vadd.f32 %v883, %v917
      %928 = vset.pattern.permute.xlu0 8
      %929 = vperm.xlu0 %928, %v601
      %v930 = vpop.permute.xlu0 %929
      %v932 = vmul.f32 %v930, %v608
      %v933 = vmul.f32 %v930, %v609
      %v934 = vmul.f32 %v930, %v610
      %v935 = vmul.f32 %v930, %v611
      %v936 = vmul.f32 %v930, %v612
      %v937 = vmul.f32 %v930, %v710
      %944 = vrot.lane.b32.xlu0 %v932, 74
      %v945 = vpop.permute.xlu0 %944
      %946 = vrot.lane.b32.xlu0 %v933, 74
      %v947 = vpop.permute.xlu0 %946
      %948 = vrot.lane.b32.xlu0 %v934, 74
      %v949 = vpop.permute.xlu0 %948
      %950 = vrot.lane.b32.xlu0 %v935, 74
      %v951 = vpop.permute.xlu0 %950
      %952 = vrot.lane.b32.xlu0 %v936, 74
      %v953 = vpop.permute.xlu0 %952
      %954 = vrot.lane.b32.xlu0 %v937, 74
      %v955 = vpop.permute.xlu0 %954
      %vm956 = vcmask 605184
      %v957 = vsel %vm956, %v945, %v947
      %v958 = vsel %vm956, %v947, %v949
      %v959 = vsel %vm956, %v949, %v951
      %v960 = vsel %vm956, %v951, %v953
      %v961 = vsel %vm956, %v953, %v955
      %v967 = vadd.f32 %v923, %v957
      %v968 = vadd.f32 %v924, %v958
      %v969 = vadd.f32 %v925, %v959
      %v970 = vadd.f32 %v926, %v960
      %v971 = vadd.f32 %v927, %v961
      %v972 = vld [vmem:[%s2] sm:$0xff]
      %974 = vset.pattern.permute.xlu0 0
      %975 = vperm.xlu0 %974, %v972
      %v976 = vpop.permute.xlu0 %975
      %v978 = vadd.f32 %v967, %v976
      %v979 = vadd.f32 %v968, %v976
      %v980 = vadd.f32 %v969, %v976
      %v981 = vadd.f32 %v970, %v976
      %v982 = vadd.f32 %v971, %v976
      %v983 = vmul.f32 %v978, 0.1
      %v984 = vmul.f32 %v979, 0.1
      %v985 = vmul.f32 %v980, 0.1
      %v986 = vmul.f32 %v981, 0.1
      %v987 = vmul.f32 %v982, 0.1
      %v988 = vmax.f32 %v978, %v983
      %v989 = vmax.f32 %v979, %v984
      %v990 = vmax.f32 %v980, %v985
      %v991 = vmax.f32 %v981, %v986
      %v992 = vmax.f32 %v982, %v987
      %998 = vrot.lane.b32.xlu0 %v988, 127
      %v999 = vpop.permute.xlu0 %998
      %1000 = vrot.lane.b32.xlu0 %v989, 127
      %v1001 = vpop.permute.xlu0 %1000
      %1002 = vrot.lane.b32.xlu0 %v990, 127
      %v1003 = vpop.permute.xlu0 %1002
      %1004 = vrot.lane.b32.xlu0 %v991, 127
      %v1005 = vpop.permute.xlu0 %1004
      %1006 = vrot.lane.b32.xlu0 %v992, 127
      %v1007 = vpop.permute.xlu0 %1006
      %v1008 = vsel %vm652, %v999, %v1001
      %v1009 = vsel %vm652, %v1001, %v1003
      %v1010 = vsel %vm652, %v1003, %v1005
      %v1011 = vsel %vm652, %v1005, %v1007
      %v1017 = vmax.f32 %v988, %v1008
      %v1018 = vmax.f32 %v989, %v1009
      %v1019 = vmax.f32 %v990, %v1010
      %v1020 = vmax.f32 %v991, %v1011
      %v1021 = vmax.f32 %v992, %v1007
      %1027 = vrot.lane.b32.xlu0 %v1017, 102
      %v1028 = vpop.permute.xlu0 %1027
      %1029 = vrot.lane.b32.xlu0 %v1018, 102
      %v1030 = vpop.permute.xlu0 %1029
      %1031 = vrot.lane.b32.xlu0 %v1019, 102
      %v1032 = vpop.permute.xlu0 %1031
      %1033 = vrot.lane.b32.xlu0 %v1020, 102
      %v1034 = vpop.permute.xlu0 %1033
      %1035 = vrot.lane.b32.xlu0 %v1021, 102
      %v1036 = vpop.permute.xlu0 %1035
      %v1037 = vsel %vm736, %v1028, %v1030
      %v1038 = vsel %vm736, %v1030, %v1032
      %v1039 = vsel %vm736, %v1032, %v1034
      %v1040 = vsel %vm736, %v1034, %v1036
      %v1046 = vmax.f32 %v1017, %v1037
      %v1047 = vmax.f32 %v1018, %v1038
      %v1048 = vmax.f32 %v1019, %v1039
      %v1049 = vmax.f32 %v1020, %v1040
      %v1050 = vmax.f32 %v1021, %v1036
      %v1051 = vld [vmem:[%s15] sm:$0xff]
      %v1052 = vld [vmem:[%s15 + $0x8] sm:$0xff]
      %v1053 = vld [vmem:[%s15 + $0x10] sm:$0xff]
      %v1054 = vld [vmem:[%s15 + $0x18] sm:$0xff]
      %v1055 = vld [vmem:[%s15 + $0x20] sm:$0xff]
      %v1056 = vld [vmem:[%s15 + $0x28] sm:$0xff]
      %v1057 = vld [vmem:[%s15 + $0x30] sm:$0xff]
      %v1058 = vld [vmem:[%s15 + $0x38] sm:$0xff]
      %v1059 = vld [vmem:[%s15 + $0x40] sm:$0xff]
      %v1060 = vld [vmem:[%s15 + $0x48] sm:$0xff]
      %v1061 = vld [vmem:[%s15 + $0x50] sm:$0xff]
      %v1062 = vld [vmem:[%s15 + $0x58] sm:$0xff]
      %v1063 = vld [vmem:[%s15 + $0x60] sm:$0xff]
      %v1064 = vld [vmem:[%s15 + $0x68] sm:$0xff]
      %v1065 = vld [vmem:[%s15 + $0x70] sm:$0xff]
      %v1066 = vld [vmem:[%s15 + $0x78] sm:$0xff]
      %v1067 = vld [vmem:[%s15 + $0x80] sm:$0xff]
      %v1068 = vld [vmem:[%s15 + $0x88] sm:$0xff]
      %v1069 = vld [vmem:[%s15 + $0x90] sm:$0xff]
      %v1070 = vld [vmem:[%s15 + $0x98] sm:$0xff]
      %v1071 = vld [vmem:[%s15 + $0xa0] sm:$0xff]
      %v1072 = vld [vmem:[%s15 + $0xa8] sm:$0xff]
      %v1073 = vld [vmem:[%s15 + $0xb0] sm:$0xff]
      %v1074 = vld [vmem:[%s15 + $0xb8] sm:$0xff]
      %v1075 = vld [vmem:[%s15 + $0xc0] sm:$0xff]
      %v1076 = vld [vmem:[%s15 + $0xc8] sm:$0xff]
      %v1077 = vld [vmem:[%s15 + $0xd0] sm:$0xff]
      %v1078 = vld [vmem:[%s15 + $0xd8] sm:$0xff]
      %v1079 = vld [vmem:[%s15 + $0xe0] sm:$0xff]
      %v1080 = vld [vmem:[%s15 + $0xe8] sm:$0xff]
      %v1081 = vld [vmem:[%s15 + $0xf0] sm:$0xff]
      %v1082 = vld [vmem:[%s15 + $0xf8] sm:$0xff]
      %v1083 = vld [vmem:[%s15 + $0x100] sm:$0xff]
      %v1084 = vld [vmem:[%s15 + $0x108] sm:$0xff]
      %v1085 = vld [vmem:[%s15 + $0x110] sm:$0xff]
      %v1086 = vld [vmem:[%s15 + $0x118] sm:$0xff]
      %v1087 = vld [vmem:[%s15 + $0x120] sm:$0xff]
      %v1088 = vld [vmem:[%s15 + $0x128] sm:$0xff]
      %v1089 = vld [vmem:[%s15 + $0x130] sm:$0xff]
      %v1090 = vld [vmem:[%s15 + $0x138] sm:$0xff]
      %v1091 = vld [vmem:[%s15 + $0x140] sm:$0xff]
      %v1092 = vld [vmem:[%s15 + $0x148] sm:$0xff]
      %v1093 = vld [vmem:[%s15 + $0x150] sm:$0xff]
      %v1094 = vld [vmem:[%s15 + $0x158] sm:$0xff]
      %v1095 = vld [vmem:[%s15 + $0x160] sm:$0xff]
      %v1096 = vld [vmem:[%s15 + $0x168] sm:$0xff]
      %v1097 = vld [vmem:[%s15 + $0x170] sm:$0xff]
      %v1098 = vld [vmem:[%s15 + $0x178] sm:$0xff]
      %v1099 = vld [vmem:[%s15 + $0x180] sm:$0xff]
      %v1100 = vld [vmem:[%s15 + $0x188] sm:$0xff]
      %v1101 = vld [vmem:[%s15 + $0x190] sm:$0xff]
      %v1102 = vld [vmem:[%s15 + $0x198] sm:$0xff]
      %v1103 = vld [vmem:[%s15 + $0x1a0] sm:$0xff]
      %v1104 = vld [vmem:[%s15 + $0x1a8] sm:$0xff]
      %v1105 = vld [vmem:[%s15 + $0x1b0] sm:$0xff]
      %v1106 = vld [vmem:[%s15 + $0x1b8] sm:$0xff]
      %v1107 = vld [vmem:[%s15 + $0x1c0] sm:$0xff]
      %v1108 = vld [vmem:[%s15 + $0x1c8] sm:$0xff]
      %v1109 = vld [vmem:[%s15 + $0x1d0] sm:$0xff]
      %v1110 = vld [vmem:[%s15 + $0x1d8] sm:$0xff]
      %v1111 = vld [vmem:[%s15 + $0x1e0] sm:$0xff]
      %v1112 = vld [vmem:[%s15 + $0x1e8] sm:$0xff]
      %v1113 = vld [vmem:[%s15 + $0x1f0] sm:$0xff]
      %v1114 = vld [vmem:[%s15 + $0x1f8] sm:$0xff]
      %v1115 = vld [vmem:[%s15 + $0x200] sm:$0xff]
      %v1116 = vld [vmem:[%s15 + $0x208] sm:$0xff]
      %v1117 = vld [vmem:[%s15 + $0x210] sm:$0xff]
      %v1118 = vld [vmem:[%s15 + $0x218] sm:$0xff]
      %v1119 = vld [vmem:[%s15 + $0x220] sm:$0xff]
      %v1120 = vld [vmem:[%s15 + $0x228] sm:$0xff]
      %v1121 = vld [vmem:[%s15 + $0x230] sm:$0xff]
      %v1122 = vld [vmem:[%s15 + $0x238] sm:$0xff]
      %v1123 = vld [vmem:[%s15 + $0x240] sm:$0xff]
      %v1124 = vld [vmem:[%s15 + $0x248] sm:$0xff]
      %v1125 = vld [vmem:[%s15 + $0x250] sm:$0xff]
      %v1126 = vld [vmem:[%s15 + $0x258] sm:$0xff]
      %v1127 = vld [vmem:[%s15 + $0x260] sm:$0xff]
      %v1128 = vld [vmem:[%s15 + $0x268] sm:$0xff]
      %v1129 = vld [vmem:[%s15 + $0x270] sm:$0xff]
      %v1130 = vld [vmem:[%s15 + $0x278] sm:$0xff]
      %v1131 = vld [vmem:[%s15 + $0x280] sm:$0xff]
      %v1132 = vld [vmem:[%s15 + $0x288] sm:$0xff]
      %v1133 = vld [vmem:[%s15 + $0x290] sm:$0xff]
      %v1134 = vld [vmem:[%s15 + $0x298] sm:$0xff]
      %v1135 = vld [vmem:[%s15 + $0x2a0] sm:$0xff]
      %v1136 = vld [vmem:[%s15 + $0x2a8] sm:$0xff]
      %v1137 = vld [vmem:[%s15 + $0x2b0] sm:$0xff]
      %v1138 = vld [vmem:[%s15 + $0x2b8] sm:$0xff]
      %v1139 = vld [vmem:[%s15 + $0x2c0] sm:$0xff]
      %v1140 = vld [vmem:[%s15 + $0x2c8] sm:$0xff]
      %v1141 = vld [vmem:[%s15 + $0x2d0] sm:$0xff]
      %v1142 = vld [vmem:[%s15 + $0x2d8] sm:$0xff]
      %v1143 = vld [vmem:[%s15 + $0x2e0] sm:$0xff]
      %v1144 = vld [vmem:[%s15 + $0x2e8] sm:$0xff]
      %v1145 = vld [vmem:[%s15 + $0x2f0] sm:$0xff]
      %v1146 = vld [vmem:[%s15 + $0x2f8] sm:$0xff]
      %v1147 = vld [vmem:[%s15 + $0x300] sm:$0xff]
      %v1148 = vld [vmem:[%s15 + $0x308] sm:$0xff]
      %v1149 = vld [vmem:[%s15 + $0x310] sm:$0xff]
      %v1150 = vld [vmem:[%s15 + $0x318] sm:$0xff]
      %v1151 = vld [vmem:[%s15 + $0x320] sm:$0xff]
      %v1152 = vld [vmem:[%s15 + $0x328] sm:$0xff]
      %v1153 = vld [vmem:[%s15 + $0x330] sm:$0xff]
      %v1154 = vld [vmem:[%s15 + $0x338] sm:$0xff]
      %v1155 = vld [vmem:[%s15 + $0x340] sm:$0xff]
      %v1156 = vld [vmem:[%s15 + $0x348] sm:$0xff]
      %v1157 = vld [vmem:[%s15 + $0x350] sm:$0xff]
      %v1158 = vld [vmem:[%s15 + $0x358] sm:$0xff]
      %v1159 = vld [vmem:[%s15 + $0x360] sm:$0xff]
      %v1160 = vld [vmem:[%s15 + $0x368] sm:$0xff]
      %v1161 = vld [vmem:[%s15 + $0x370] sm:$0xff]
      %v1162 = vld [vmem:[%s15 + $0x378] sm:$0xff]
      %v1163 = vld [vmem:[%s15 + $0x380] sm:$0xff]
      %v1164 = vld [vmem:[%s15 + $0x388] sm:$0xff]
      %v1165 = vld [vmem:[%s15 + $0x390] sm:$0xff]
      %v1166 = vld [vmem:[%s15 + $0x398] sm:$0xff]
      %v1167 = vld [vmem:[%s15 + $0x3a0] sm:$0xff]
      %v1168 = vld [vmem:[%s15 + $0x3a8] sm:$0xff]
      %v1169 = vld [vmem:[%s15 + $0x3b0] sm:$0xff]
      %v1170 = vld [vmem:[%s15 + $0x3b8] sm:$0xff]
      %v1171 = vld [vmem:[%s15 + $0x3c0] sm:$0xff]
      %v1172 = vld [vmem:[%s15 + $0x3c8] sm:$0xff]
      %v1173 = vld [vmem:[%s15 + $0x3d0] sm:$0xff]
      %v1174 = vld [vmem:[%s15 + $0x3d8] sm:$0xff]
      %v1175 = vld [vmem:[%s15 + $0x3e0] sm:$0xff]
      %v1176 = vld [vmem:[%s15 + $0x3e8] sm:$0xff]
      %v1177 = vld [vmem:[%s15 + $0x3f0] sm:$0xff]
      %v1178 = vld [vmem:[%s15 + $0x3f8] sm:$0xff]
      %v1179 = vld [vmem:[%s15 + $0x400] sm:$0xff]
      %v1180 = vld [vmem:[%s15 + $0x408] sm:$0xff]
      %v1181 = vld [vmem:[%s15 + $0x410] sm:$0xff]
      %v1182 = vld [vmem:[%s15 + $0x418] sm:$0xff]
      %v1183 = vld [vmem:[%s15 + $0x420] sm:$0xff]
      %v1184 = vld [vmem:[%s15 + $0x428] sm:$0xff]
      %v1185 = vld [vmem:[%s15 + $0x430] sm:$0xff]
      %v1186 = vld [vmem:[%s15 + $0x438] sm:$0xff]
      %v1187 = vld [vmem:[%s15 + $0x440] sm:$0xff]
      %v1188 = vld [vmem:[%s15 + $0x448] sm:$0xff]
      %v1189 = vld [vmem:[%s15 + $0x450] sm:$0xff]
      %v1190 = vld [vmem:[%s15 + $0x458] sm:$0xff]
      %v1191 = vld [vmem:[%s15 + $0x460] sm:$0xff]
      %v1192 = vld [vmem:[%s15 + $0x468] sm:$0xff]
      %v1193 = vld [vmem:[%s15 + $0x470] sm:$0xff]
      %v1194 = vld [vmem:[%s15 + $0x478] sm:$0xff]
      %v1195 = vld [vmem:[%s15 + $0x480] sm:$0xff]
      %v1196 = vld [vmem:[%s15 + $0x488] sm:$0xff]
      %v1197 = vld [vmem:[%s15 + $0x490] sm:$0xff]
      %v1198 = vld [vmem:[%s15 + $0x498] sm:$0xff]
      %v1199 = vld [vmem:[%s15 + $0x4a0] sm:$0x7]
      %v1200 = vld [vmem:[%s15 + $0x4a8] sm:$0x7]
      %vm1201 = vcmask 678912
      %v1203 = vsel %vm1201, %v1050, 0
      %vm1205 = vcmask 1042432
      %v1207 = vsel %vm1205, %v1199, 0
      %v1210 = vsel %vm1205, %v1200, 0
      %1212 = vmatpush.msra.mxu0 %v1081
      %1213 = vmatpush.msra.mxu0 %v1079
      %1214 = vmatpush.msra.mxu0 %v1077
      %1215 = vmatpush.msra.mxu0 %v1075
      %1216 = vmatpush.msra.mxu0 %v1073
      %1217 = vmatpush.msra.mxu0 %v1071
      %1218 = vmatpush.msra.mxu0 %v1069
      %1219 = vmatpush.msra.mxu0 %v1067
      %1220 = vmatpush.msra.mxu0 %v1065
      %1221 = vmatpush.msra.mxu0 %v1063
      %1222 = vmatpush.msra.mxu0 %v1061
      %1223 = vmatpush.msra.mxu0 %v1059
      %1224 = vmatpush.msra.mxu0 %v1057
      %1225 = vmatpush.msra.mxu0 %v1055
      %1226 = vmatpush.msra.mxu0 %v1053
      %1227 = vmatpush.msra.mxu0 %v1051
      %1228 = vmatmul.f32.gmra.mxu0 %v1046
      %v1229 = vpop.f32.mrf.mxu0
      %v1230 = vadd.f32 0.0, %v1229
      %1231 = vdwg.mxu0
      %1232 = vmatpush.msra.mxu0 %v1113
      %1233 = vmatpush.msra.mxu0 %v1111
      %1234 = vmatpush.msra.mxu0 %v1109
      %1235 = vmatpush.msra.mxu0 %v1107
      %1236 = vmatpush.msra.mxu0 %v1105
      %1237 = vmatpush.msra.mxu0 %v1103
      %1238 = vmatpush.msra.mxu0 %v1101
      %1239 = vmatpush.msra.mxu0 %v1099
      %1240 = vmatpush.msra.mxu0 %v1097
      %1241 = vmatpush.msra.mxu0 %v1095
      %1242 = vmatpush.msra.mxu0 %v1093
      %1243 = vmatpush.msra.mxu0 %v1091
      %1244 = vmatpush.msra.mxu0 %v1089
      %1245 = vmatpush.msra.mxu0 %v1087
      %1246 = vmatpush.msra.mxu0 %v1085
      %1247 = vmatpush.msra.mxu0 %v1083
      %1248 = vmatmul.f32.gmra.mxu0 %v1047
      %v1249 = vpop.f32.mrf.mxu0
      %v1250 = vadd.f32 %v1230, %v1249
      %1251 = vdwg.mxu0
      %1252 = vmatpush.msra.mxu0 %v1145
      %1253 = vmatpush.msra.mxu0 %v1143
      %1254 = vmatpush.msra.mxu0 %v1141
      %1255 = vmatpush.msra.mxu0 %v1139
      %1256 = vmatpush.msra.mxu0 %v1137
      %1257 = vmatpush.msra.mxu0 %v1135
      %1258 = vmatpush.msra.mxu0 %v1133
      %1259 = vmatpush.msra.mxu0 %v1131
      %1260 = vmatpush.msra.mxu0 %v1129
      %1261 = vmatpush.msra.mxu0 %v1127
      %1262 = vmatpush.msra.mxu0 %v1125
      %1263 = vmatpush.msra.mxu0 %v1123
      %1264 = vmatpush.msra.mxu0 %v1121
      %1265 = vmatpush.msra.mxu0 %v1119
      %1266 = vmatpush.msra.mxu0 %v1117
      %1267 = vmatpush.msra.mxu0 %v1115
      %1268 = vmatmul.f32.gmra.mxu0 %v1048
      %v1269 = vpop.f32.mrf.mxu0
      %v1270 = vadd.f32 %v1250, %v1269
      %1271 = vdwg.mxu0
      %1272 = vmatpush.msra.mxu0 %v1177
      %1273 = vmatpush.msra.mxu0 %v1175
      %1274 = vmatpush.msra.mxu0 %v1173
      %1275 = vmatpush.msra.mxu0 %v1171
      %1276 = vmatpush.msra.mxu0 %v1169
      %1277 = vmatpush.msra.mxu0 %v1167
      %1278 = vmatpush.msra.mxu0 %v1165
      %1279 = vmatpush.msra.mxu0 %v1163
      %1280 = vmatpush.msra.mxu0 %v1161
      %1281 = vmatpush.msra.mxu0 %v1159
      %1282 = vmatpush.msra.mxu0 %v1157
      %1283 = vmatpush.msra.mxu0 %v1155
      %1284 = vmatpush.msra.mxu0 %v1153
      %1285 = vmatpush.msra.mxu0 %v1151
      %1286 = vmatpush.msra.mxu0 %v1149
      %1287 = vmatpush.msra.mxu0 %v1147
      %1288 = vmatmul.f32.gmra.mxu0 %v1049
      %v1289 = vpop.f32.mrf.mxu0
      %v1290 = vadd.f32 %v1270, %v1289
      %1291 = vdwg.mxu0
      %1292 = vmatpush.msra.mxu0 0.0
      %1293 = vmatpush.msra.mxu0 0.0
      %1294 = vmatpush.msra.mxu0 0.0
      %1295 = vmatpush.msra.mxu0 0.0
      %1296 = vmatpush.msra.mxu0 0.0
      %1297 = vmatpush.msra.mxu0 %v1207
      %1298 = vmatpush.msra.mxu0 %v1197
      %1299 = vmatpush.msra.mxu0 %v1195
      %1300 = vmatpush.msra.mxu0 %v1193
      %1301 = vmatpush.msra.mxu0 %v1191
      %1302 = vmatpush.msra.mxu0 %v1189
      %1303 = vmatpush.msra.mxu0 %v1187
      %1304 = vmatpush.msra.mxu0 %v1185
      %1305 = vmatpush.msra.mxu0 %v1183
      %1306 = vmatpush.msra.mxu0 %v1181
      %1307 = vmatpush.msra.mxu0 %v1179
      %1308 = vmatmul.f32.gmra.mxu0 %v1203
      %v1309 = vpop.f32.mrf.mxu0
      %v1310 = vadd.f32 %v1290, %v1309
      %1311 = vdwg.mxu0
      %1312 = vmatpush.msra.mxu0 %v1082
      %1313 = vmatpush.msra.mxu0 %v1080
      %1314 = vmatpush.msra.mxu0 %v1078
      %1315 = vmatpush.msra.mxu0 %v1076
      %1316 = vmatpush.msra.mxu0 %v1074
      %1317 = vmatpush.msra.mxu0 %v1072
      %1318 = vmatpush.msra.mxu0 %v1070
      %1319 = vmatpush.msra.mxu0 %v1068
      %1320 = vmatpush.msra.mxu0 %v1066
      %1321 = vmatpush.msra.mxu0 %v1064
      %1322 = vmatpush.msra.mxu0 %v1062
      %1323 = vmatpush.msra.mxu0 %v1060
      %1324 = vmatpush.msra.mxu0 %v1058
      %1325 = vmatpush.msra.mxu0 %v1056
      %1326 = vmatpush.msra.mxu0 %v1054
      %1327 = vmatpush.msra.mxu0 %v1052
      %1328 = vmatmul.f32.gmra.mxu0 %v1046
      %v1329 = vpop.f32.mrf.mxu0
      %v1330 = vadd.f32 0.0, %v1329
      %1331 = vdwg.mxu0
      %1332 = vmatpush.msra.mxu0 %v1114
      %1333 = vmatpush.msra.mxu0 %v1112
      %1334 = vmatpush.msra.mxu0 %v1110
      %1335 = vmatpush.msra.mxu0 %v1108
      %1336 = vmatpush.msra.mxu0 %v1106
      %1337 = vmatpush.msra.mxu0 %v1104
      %1338 = vmatpush.msra.mxu0 %v1102
      %1339 = vmatpush.msra.mxu0 %v1100
      %1340 = vmatpush.msra.mxu0 %v1098
      %1341 = vmatpush.msra.mxu0 %v1096
      %1342 = vmatpush.msra.mxu0 %v1094
      %1343 = vmatpush.msra.mxu0 %v1092
      %1344 = vmatpush.msra.mxu0 %v1090
      %1345 = vmatpush.msra.mxu0 %v1088
      %1346 = vmatpush.msra.mxu0 %v1086
      %1347 = vmatpush.msra.mxu0 %v1084
      %1348 = vmatmul.f32.gmra.mxu0 %v1047
      %v1349 = vpop.f32.mrf.mxu0
      %v1350 = vadd.f32 %v1330, %v1349
      %1351 = vdwg.mxu0
      %1352 = vmatpush.msra.mxu0 %v1146
      %1353 = vmatpush.msra.mxu0 %v1144
      %1354 = vmatpush.msra.mxu0 %v1142
      %1355 = vmatpush.msra.mxu0 %v1140
      %1356 = vmatpush.msra.mxu0 %v1138
      %1357 = vmatpush.msra.mxu0 %v1136
      %1358 = vmatpush.msra.mxu0 %v1134
      %1359 = vmatpush.msra.mxu0 %v1132
      %1360 = vmatpush.msra.mxu0 %v1130
      %1361 = vmatpush.msra.mxu0 %v1128
      %1362 = vmatpush.msra.mxu0 %v1126
      %1363 = vmatpush.msra.mxu0 %v1124
      %1364 = vmatpush.msra.mxu0 %v1122
      %1365 = vmatpush.msra.mxu0 %v1120
      %1366 = vmatpush.msra.mxu0 %v1118
      %1367 = vmatpush.msra.mxu0 %v1116
      %1368 = vmatmul.f32.gmra.mxu0 %v1048
      %v1369 = vpop.f32.mrf.mxu0
      %v1370 = vadd.f32 %v1350, %v1369
      %1371 = vdwg.mxu0
      %1372 = vmatpush.msra.mxu0 %v1178
      %1373 = vmatpush.msra.mxu0 %v1176
      %1374 = vmatpush.msra.mxu0 %v1174
      %1375 = vmatpush.msra.mxu0 %v1172
      %1376 = vmatpush.msra.mxu0 %v1170
      %1377 = vmatpush.msra.mxu0 %v1168
      %1378 = vmatpush.msra.mxu0 %v1166
      %1379 = vmatpush.msra.mxu0 %v1164
      %1380 = vmatpush.msra.mxu0 %v1162
      %1381 = vmatpush.msra.mxu0 %v1160
      %1382 = vmatpush.msra.mxu0 %v1158
      %1383 = vmatpush.msra.mxu0 %v1156
      %1384 = vmatpush.msra.mxu0 %v1154
      %1385 = vmatpush.msra.mxu0 %v1152
      %1386 = vmatpush.msra.mxu0 %v1150
      %1387 = vmatpush.msra.mxu0 %v1148
      %1388 = vmatmul.f32.gmra.mxu0 %v1049
      %v1389 = vpop.f32.mrf.mxu0
      %v1390 = vadd.f32 %v1370, %v1389
      %1391 = vdwg.mxu0
      %1392 = vmatpush.msra.mxu0 0.0
      %1393 = vmatpush.msra.mxu0 0.0
      %1394 = vmatpush.msra.mxu0 0.0
      %1395 = vmatpush.msra.mxu0 0.0
      %1396 = vmatpush.msra.mxu0 0.0
      %1397 = vmatpush.msra.mxu0 %v1210
      %1398 = vmatpush.msra.mxu0 %v1198
      %1399 = vmatpush.msra.mxu0 %v1196
      %1400 = vmatpush.msra.mxu0 %v1194
      %1401 = vmatpush.msra.mxu0 %v1192
      %1402 = vmatpush.msra.mxu0 %v1190
      %1403 = vmatpush.msra.mxu0 %v1188
      %1404 = vmatpush.msra.mxu0 %v1186
      %1405 = vmatpush.msra.mxu0 %v1184
      %1406 = vmatpush.msra.mxu0 %v1182
      %1407 = vmatpush.msra.mxu0 %v1180
      %1408 = vmatmul.f32.gmra.mxu0 %v1203
      %v1409 = vpop.f32.mrf.mxu0
      %v1410 = vadd.f32 %v1390, %v1409
      %1411 = vdwg.mxu0
      %v1412 = vld [vmem:[%s3] sm:$0xff]
      %v1413 = vld [vmem:[%s3 + $0x8] sm:$0xff]
      %s1414 = scalar_lea.vmem %s3, 16
      %v1415 = vld [vmem:[%s1414] sm:$0xff]
      %v1416 = vld [vmem:[%s1414 + $0x8] sm:$0xff]
      %1419 = vrot.lane.b32.xlu0 %v1310, 127
      %v1420 = vpop.permute.xlu0 %1419
      %1421 = vrot.lane.b32.xlu0 %v1410, 127
      %v1422 = vpop.permute.xlu0 %1421
      %v1423 = vsel %vm652, %v1420, %v1422
      %vm1426 = vcmask 64512
      %v1428 = vsel %vm1426, %v1415, 0
      %v1431 = vsel %vm1426, %v1416, 0
      %1433 = vmatpush.msra.mxu0 0.0
      %1434 = vmatpush.msra.mxu0 0.0
      %1435 = vmatpush.msra.mxu0 0.0
      %1436 = vmatpush.msra.mxu0 0.0
      %1437 = vmatpush.msra.mxu0 0.0
      %1438 = vmatpush.msra.mxu0 0.0
      %1439 = vmatpush.msra.mxu0 0.0
      %1440 = vmatpush.msra.mxu0 0.0
      %1441 = vmatpush.msra.mxu0 0.0
      %1442 = vmatpush.msra.mxu0 0.0
      %1443 = vmatpush.msra.mxu0 0.0
      %1444 = vmatpush.msra.mxu0 0.0
      %1445 = vmatpush.msra.mxu0 0.0
      %1446 = vmatpush.msra.mxu0 0.0
      %1447 = vmatpush.msra.mxu0 0.0
      %1448 = vmatpush.msra.mxu0 %v1423
      %1449 = vmatmul.f32.gmra.mxu0 %v1428
      %v1450 = vpop.f32.mrf.mxu0
      %v1451 = vadd.f32 0.0, %v1450
      %1452 = vmatmul.f32.gmra.mxu0 %v1431
      %v1453 = vpop.f32.mrf.mxu0
      %v1454 = vadd.f32 0.0, %v1453
      %1455 = vdwg.mxu0
      %1456 = vmatpush.msra.mxu0 0.0
      %1457 = vmatpush.msra.mxu0 0.0
      %1458 = vmatpush.msra.mxu0 0.0
      %1459 = vmatpush.msra.mxu0 0.0
      %1460 = vmatpush.msra.mxu0 0.0
      %1461 = vmatpush.msra.mxu0 0.0
      %1462 = vmatpush.msra.mxu0 0.0
      %1463 = vmatpush.msra.mxu0 0.0
      %1464 = vmatpush.msra.mxu0 0.0
      %1465 = vmatpush.msra.mxu0 0.0
      %1466 = vmatpush.msra.mxu0 0.0
      %1467 = vmatpush.msra.mxu0 0.0
      %1468 = vmatpush.msra.mxu0 0.0
      %1469 = vmatpush.msra.mxu0 0.0
      %1470 = vmatpush.msra.mxu0 0.0
      %1471 = vmatpush.msra.mxu0 %v1422
      %1472 = vmatmul.f32.gmra.mxu0 %v1428
      %v1473 = vpop.f32.mrf.mxu0
      %v1474 = vadd.f32 0.0, %v1473
      %1475 = vmatmul.f32.gmra.mxu0 %v1431
      %v1476 = vpop.f32.mrf.mxu0
      %v1477 = vadd.f32 0.0, %v1476
      %1478 = vdwg.mxu0
      %v1480 = vsel %vm1426, %v1412, 0
      %v1483 = vsel %vm1426, %v1413, 0
      %1485 = vmatpush.msra.mxu0 0.0
      %1486 = vmatpush.msra.mxu0 0.0
      %1487 = vmatpush.msra.mxu0 0.0
      %1488 = vmatpush.msra.mxu0 0.0
      %1489 = vmatpush.msra.mxu0 0.0
      %1490 = vmatpush.msra.mxu0 0.0
      %1491 = vmatpush.msra.mxu0 0.0
      %1492 = vmatpush.msra.mxu0 0.0
      %1493 = vmatpush.msra.mxu0 0.0
      %1494 = vmatpush.msra.mxu0 0.0
      %1495 = vmatpush.msra.mxu0 0.0
      %1496 = vmatpush.msra.mxu0 0.0
      %1497 = vmatpush.msra.mxu0 0.0
      %1498 = vmatpush.msra.mxu0 0.0
      %1499 = vmatpush.msra.mxu0 0.0
      %1500 = vmatpush.msra.mxu0 %v1310
      %1501 = vmatmul.f32.gmra.mxu0 %v1480
      %v1502 = vpop.f32.mrf.mxu0
      %v1503 = vadd.f32 %v1451, %v1502
      %1504 = vmatmul.f32.gmra.mxu0 %v1483
      %v1505 = vpop.f32.mrf.mxu0
      %v1506 = vadd.f32 %v1454, %v1505
      %1507 = vdwg.mxu0
      %1508 = vmatpush.msra.mxu0 0.0
      %1509 = vmatpush.msra.mxu0 0.0
      %1510 = vmatpush.msra.mxu0 0.0
      %1511 = vmatpush.msra.mxu0 0.0
      %1512 = vmatpush.msra.mxu0 0.0
      %1513 = vmatpush.msra.mxu0 0.0
      %1514 = vmatpush.msra.mxu0 0.0
      %1515 = vmatpush.msra.mxu0 0.0
      %1516 = vmatpush.msra.mxu0 0.0
      %1517 = vmatpush.msra.mxu0 0.0
      %1518 = vmatpush.msra.mxu0 0.0
      %1519 = vmatpush.msra.mxu0 0.0
      %1520 = vmatpush.msra.mxu0 0.0
      %1521 = vmatpush.msra.mxu0 0.0
      %1522 = vmatpush.msra.mxu0 0.0
      %1523 = vmatpush.msra.mxu0 %v1410
      %1524 = vmatmul.f32.gmra.mxu0 %v1480
      %v1525 = vpop.f32.mrf.mxu0
      %v1526 = vadd.f32 %v1474, %v1525
      %1527 = vmatmul.f32.gmra.mxu0 %v1483
      %v1528 = vpop.f32.mrf.mxu0
      %v1529 = vadd.f32 %v1477, %v1528
      %1530 = vdwg.mxu0
      %s1531 = scalar_lea.vmem %s3, 32
      %v1532 = vld [vmem:[%s1531] sm:$0xff]
      %v1533 = vld [vmem:[%s1531 + $0x8] sm:$0xff]
      %1534 = vrot.lane.b32.xlu0 %v1310, 126
      %v1535 = vpop.permute.xlu0 %1534
      %1536 = vrot.lane.b32.xlu0 %v1410, 126
      %v1537 = vpop.permute.xlu0 %1536
      %v1538 = vsel %vm691, %v1535, %v1537
      %v1542 = vsel %vm1426, %v1532, 0
      %v1545 = vsel %vm1426, %v1533, 0
      %1547 = vmatpush.msra.mxu0 0.0
      %1548 = vmatpush.msra.mxu0 0.0
      %1549 = vmatpush.msra.mxu0 0.0
      %1550 = vmatpush.msra.mxu0 0.0
      %1551 = vmatpush.msra.mxu0 0.0
      %1552 = vmatpush.msra.mxu0 0.0
      %1553 = vmatpush.msra.mxu0 0.0
      %1554 = vmatpush.msra.mxu0 0.0
      %1555 = vmatpush.msra.mxu0 0.0
      %1556 = vmatpush.msra.mxu0 0.0
      %1557 = vmatpush.msra.mxu0 0.0
      %1558 = vmatpush.msra.mxu0 0.0
      %1559 = vmatpush.msra.mxu0 0.0
      %1560 = vmatpush.msra.mxu0 0.0
      %1561 = vmatpush.msra.mxu0 0.0
      %1562 = vmatpush.msra.mxu0 %v1538
      %1563 = vmatmul.f32.gmra.mxu0 %v1542
      %v1564 = vpop.f32.mrf.mxu0
      %v1565 = vadd.f32 0.0, %v1564
      %1566 = vmatmul.f32.gmra.mxu0 %v1545
      %v1567 = vpop.f32.mrf.mxu0
      %v1568 = vadd.f32 0.0, %v1567
      %1569 = vdwg.mxu0
      %1570 = vmatpush.msra.mxu0 0.0
      %1571 = vmatpush.msra.mxu0 0.0
      %1572 = vmatpush.msra.mxu0 0.0
      %1573 = vmatpush.msra.mxu0 0.0
      %1574 = vmatpush.msra.mxu0 0.0
      %1575 = vmatpush.msra.mxu0 0.0
      %1576 = vmatpush.msra.mxu0 0.0
      %1577 = vmatpush.msra.mxu0 0.0
      %1578 = vmatpush.msra.mxu0 0.0
      %1579 = vmatpush.msra.mxu0 0.0
      %1580 = vmatpush.msra.mxu0 0.0
      %1581 = vmatpush.msra.mxu0 0.0
      %1582 = vmatpush.msra.mxu0 0.0
      %1583 = vmatpush.msra.mxu0 0.0
      %1584 = vmatpush.msra.mxu0 0.0
      %1585 = vmatpush.msra.mxu0 %v1537
      %1586 = vmatmul.f32.gmra.mxu0 %v1542
      %v1587 = vpop.f32.mrf.mxu0
      %v1588 = vadd.f32 0.0, %v1587
      %1589 = vmatmul.f32.gmra.mxu0 %v1545
      %v1590 = vpop.f32.mrf.mxu0
      %v1591 = vadd.f32 0.0, %v1590
      %1592 = vdwg.mxu0
      %v1593 = vadd.f32 %v1503, %v1565
      %v1594 = vadd.f32 %v1526, %v1588
      %v1595 = vadd.f32 %v1506, %v1568
      %v1596 = vadd.f32 %v1529, %v1591
      %s1597 = scalar_lea.vmem %s3, 48
      %v1598 = vld [vmem:[%s1597] sm:$0xff]
      %v1599 = vld [vmem:[%s1597 + $0x8] sm:$0xff]
      %1600 = vrot.lane.b32.xlu0 %v1310, 114
      %v1601 = vpop.permute.xlu0 %1600
      %1602 = vrot.lane.b32.xlu0 %v1410, 114
      %v1603 = vpop.permute.xlu0 %1602
      %vm1604 = vcmask 932864
      %v1605 = vsel %vm1604, %v1601, %v1603
      %v1609 = vsel %vm1426, %v1598, 0
      %v1612 = vsel %vm1426, %v1599, 0
      %1614 = vmatpush.msra.mxu0 0.0
      %1615 = vmatpush.msra.mxu0 0.0
      %1616 = vmatpush.msra.mxu0 0.0
      %1617 = vmatpush.msra.mxu0 0.0
      %1618 = vmatpush.msra.mxu0 0.0
      %1619 = vmatpush.msra.mxu0 0.0
      %1620 = vmatpush.msra.mxu0 0.0
      %1621 = vmatpush.msra.mxu0 0.0
      %1622 = vmatpush.msra.mxu0 0.0
      %1623 = vmatpush.msra.mxu0 0.0
      %1624 = vmatpush.msra.mxu0 0.0
      %1625 = vmatpush.msra.mxu0 0.0
      %1626 = vmatpush.msra.mxu0 0.0
      %1627 = vmatpush.msra.mxu0 0.0
      %1628 = vmatpush.msra.mxu0 0.0
      %1629 = vmatpush.msra.mxu0 %v1605
      %1630 = vmatmul.f32.gmra.mxu0 %v1609
      %v1631 = vpop.f32.mrf.mxu0
      %v1632 = vadd.f32 0.0, %v1631
      %1633 = vmatmul.f32.gmra.mxu0 %v1612
      %v1634 = vpop.f32.mrf.mxu0
      %v1635 = vadd.f32 0.0, %v1634
      %1636 = vdwg.mxu0
      %1637 = vmatpush.msra.mxu0 0.0
      %1638 = vmatpush.msra.mxu0 0.0
      %1639 = vmatpush.msra.mxu0 0.0
      %1640 = vmatpush.msra.mxu0 0.0
      %1641 = vmatpush.msra.mxu0 0.0
      %1642 = vmatpush.msra.mxu0 0.0
      %1643 = vmatpush.msra.mxu0 0.0
      %1644 = vmatpush.msra.mxu0 0.0
      %1645 = vmatpush.msra.mxu0 0.0
      %1646 = vmatpush.msra.mxu0 0.0
      %1647 = vmatpush.msra.mxu0 0.0
      %1648 = vmatpush.msra.mxu0 0.0
      %1649 = vmatpush.msra.mxu0 0.0
      %1650 = vmatpush.msra.mxu0 0.0
      %1651 = vmatpush.msra.mxu0 0.0
      %1652 = vmatpush.msra.mxu0 %v1603
      %1653 = vmatmul.f32.gmra.mxu0 %v1609
      %v1654 = vpop.f32.mrf.mxu0
      %v1655 = vadd.f32 0.0, %v1654
      %1656 = vmatmul.f32.gmra.mxu0 %v1612
      %v1657 = vpop.f32.mrf.mxu0
      %v1658 = vadd.f32 0.0, %v1657
      %1659 = vdwg.mxu0
      %v1660 = vadd.f32 %v1593, %v1632
      %v1661 = vadd.f32 %v1594, %v1655
      %v1662 = vadd.f32 %v1595, %v1635
      %v1663 = vadd.f32 %v1596, %v1658
      %s1664 = scalar_lea.vmem %s3, 64
      %v1665 = vld [vmem:[%s1664] sm:$0xff]
      %v1666 = vld [vmem:[%s1664 + $0x8] sm:$0xff]
      %1667 = vrot.lane.b32.xlu0 %v1310, 113
      %v1668 = vpop.permute.xlu0 %1667
      %1669 = vrot.lane.b32.xlu0 %v1410, 113
      %v1670 = vpop.permute.xlu0 %1669
      %vm1671 = vcmask 924672
      %v1672 = vsel %vm1671, %v1668, %v1670
      %v1676 = vsel %vm1426, %v1665, 0
      %v1679 = vsel %vm1426, %v1666, 0
      %1681 = vmatpush.msra.mxu0 0.0
      %1682 = vmatpush.msra.mxu0 0.0
      %1683 = vmatpush.msra.mxu0 0.0
      %1684 = vmatpush.msra.mxu0 0.0
      %1685 = vmatpush.msra.mxu0 0.0
      %1686 = vmatpush.msra.mxu0 0.0
      %1687 = vmatpush.msra.mxu0 0.0
      %1688 = vmatpush.msra.mxu0 0.0
      %1689 = vmatpush.msra.mxu0 0.0
      %1690 = vmatpush.msra.mxu0 0.0
      %1691 = vmatpush.msra.mxu0 0.0
      %1692 = vmatpush.msra.mxu0 0.0
      %1693 = vmatpush.msra.mxu0 0.0
      %1694 = vmatpush.msra.mxu0 0.0
      %1695 = vmatpush.msra.mxu0 0.0
      %1696 = vmatpush.msra.mxu0 %v1672
      %1697 = vmatmul.f32.gmra.mxu0 %v1676
      %v1698 = vpop.f32.mrf.mxu0
      %v1699 = vadd.f32 0.0, %v1698
      %1700 = vmatmul.f32.gmra.mxu0 %v1679
      %v1701 = vpop.f32.mrf.mxu0
      %v1702 = vadd.f32 0.0, %v1701
      %1703 = vdwg.mxu0
      %1704 = vmatpush.msra.mxu0 0.0
      %1705 = vmatpush.msra.mxu0 0.0
      %1706 = vmatpush.msra.mxu0 0.0
      %1707 = vmatpush.msra.mxu0 0.0
      %1708 = vmatpush.msra.mxu0 0.0
      %1709 = vmatpush.msra.mxu0 0.0
      %1710 = vmatpush.msra.mxu0 0.0
      %1711 = vmatpush.msra.mxu0 0.0
      %1712 = vmatpush.msra.mxu0 0.0
      %1713 = vmatpush.msra.mxu0 0.0
      %1714 = vmatpush.msra.mxu0 0.0
      %1715 = vmatpush.msra.mxu0 0.0
      %1716 = vmatpush.msra.mxu0 0.0
      %1717 = vmatpush.msra.mxu0 0.0
      %1718 = vmatpush.msra.mxu0 0.0
      %1719 = vmatpush.msra.mxu0 %v1670
      %1720 = vmatmul.f32.gmra.mxu0 %v1676
      %v1721 = vpop.f32.mrf.mxu0
      %v1722 = vadd.f32 0.0, %v1721
      %1723 = vmatmul.f32.gmra.mxu0 %v1679
      %v1724 = vpop.f32.mrf.mxu0
      %v1725 = vadd.f32 0.0, %v1724
      %1726 = vdwg.mxu0
      %v1727 = vadd.f32 %v1660, %v1699
      %v1728 = vadd.f32 %v1661, %v1722
      %v1729 = vadd.f32 %v1662, %v1702
      %v1730 = vadd.f32 %v1663, %v1725
      %s1731 = scalar_lea.vmem %s3, 80
      %v1732 = vld [vmem:[%s1731] sm:$0xff]
      %v1733 = vld [vmem:[%s1731 + $0x8] sm:$0xff]
      %1734 = vrot.lane.b32.xlu0 %v1310, 112
      %v1735 = vpop.permute.xlu0 %1734
      %1736 = vrot.lane.b32.xlu0 %v1410, 112
      %v1737 = vpop.permute.xlu0 %1736
      %vm1738 = vcmask 916480
      %v1739 = vsel %vm1738, %v1735, %v1737
      %v1743 = vsel %vm1426, %v1732, 0
      %v1746 = vsel %vm1426, %v1733, 0
      %1748 = vmatpush.msra.mxu0 0.0
      %1749 = vmatpush.msra.mxu0 0.0
      %1750 = vmatpush.msra.mxu0 0.0
      %1751 = vmatpush.msra.mxu0 0.0
      %1752 = vmatpush.msra.mxu0 0.0
      %1753 = vmatpush.msra.mxu0 0.0
      %1754 = vmatpush.msra.mxu0 0.0
      %1755 = vmatpush.msra.mxu0 0.0
      %1756 = vmatpush.msra.mxu0 0.0
      %1757 = vmatpush.msra.mxu0 0.0
      %1758 = vmatpush.msra.mxu0 0.0
      %1759 = vmatpush.msra.mxu0 0.0
      %1760 = vmatpush.msra.mxu0 0.0
      %1761 = vmatpush.msra.mxu0 0.0
      %1762 = vmatpush.msra.mxu0 0.0
      %1763 = vmatpush.msra.mxu0 %v1739
      %1764 = vmatmul.f32.gmra.mxu0 %v1743
      %v1765 = vpop.f32.mrf.mxu0
      %v1766 = vadd.f32 0.0, %v1765
      %1767 = vmatmul.f32.gmra.mxu0 %v1746
      %v1768 = vpop.f32.mrf.mxu0
      %v1769 = vadd.f32 0.0, %v1768
      %1770 = vdwg.mxu0
      %1771 = vmatpush.msra.mxu0 0.0
      %1772 = vmatpush.msra.mxu0 0.0
      %1773 = vmatpush.msra.mxu0 0.0
      %1774 = vmatpush.msra.mxu0 0.0
      %1775 = vmatpush.msra.mxu0 0.0
      %1776 = vmatpush.msra.mxu0 0.0
      %1777 = vmatpush.msra.mxu0 0.0
      %1778 = vmatpush.msra.mxu0 0.0
      %1779 = vmatpush.msra.mxu0 0.0
      %1780 = vmatpush.msra.mxu0 0.0
      %1781 = vmatpush.msra.mxu0 0.0
      %1782 = vmatpush.msra.mxu0 0.0
      %1783 = vmatpush.msra.mxu0 0.0
      %1784 = vmatpush.msra.mxu0 0.0
      %1785 = vmatpush.msra.mxu0 0.0
      %1786 = vmatpush.msra.mxu0 %v1737
      %1787 = vmatmul.f32.gmra.mxu0 %v1743
      %v1788 = vpop.f32.mrf.mxu0
      %v1789 = vadd.f32 0.0, %v1788
      %1790 = vmatmul.f32.gmra.mxu0 %v1746
      %v1791 = vpop.f32.mrf.mxu0
      %v1792 = vadd.f32 0.0, %v1791
      %1793 = vdwg.mxu0
      %v1794 = vadd.f32 %v1727, %v1766
      %v1795 = vadd.f32 %v1728, %v1789
      %v1796 = vadd.f32 %v1729, %v1769
      %v1797 = vadd.f32 %v1730, %v1792
      %s1798 = scalar_lea.vmem %s3, 96
      %v1799 = vld [vmem:[%s1798] sm:$0xff]
      %v1800 = vld [vmem:[%s1798 + $0x8] sm:$0xff]
      %1801 = vrot.lane.b32.xlu0 %v1310, 100
      %v1802 = vpop.permute.xlu0 %1801
      %1803 = vrot.lane.b32.xlu0 %v1410, 100
      %v1804 = vpop.permute.xlu0 %1803
      %v1805 = vsel %vm824, %v1802, %v1804
      %v1809 = vsel %vm1426, %v1799, 0
      %v1812 = vsel %vm1426, %v1800, 0
      %1814 = vmatpush.msra.mxu0 0.0
      %1815 = vmatpush.msra.mxu0 0.0
      %1816 = vmatpush.msra.mxu0 0.0
      %1817 = vmatpush.msra.mxu0 0.0
      %1818 = vmatpush.msra.mxu0 0.0
      %1819 = vmatpush.msra.mxu0 0.0
      %1820 = vmatpush.msra.mxu0 0.0
      %1821 = vmatpush.msra.mxu0 0.0
      %1822 = vmatpush.msra.mxu0 0.0
      %1823 = vmatpush.msra.mxu0 0.0
      %1824 = vmatpush.msra.mxu0 0.0
      %1825 = vmatpush.msra.mxu0 0.0
      %1826 = vmatpush.msra.mxu0 0.0
      %1827 = vmatpush.msra.mxu0 0.0
      %1828 = vmatpush.msra.mxu0 0.0
      %1829 = vmatpush.msra.mxu0 %v1805
      %1830 = vmatmul.f32.gmra.mxu0 %v1809
      %v1831 = vpop.f32.mrf.mxu0
      %v1832 = vadd.f32 0.0, %v1831
      %1833 = vmatmul.f32.gmra.mxu0 %v1812
      %v1834 = vpop.f32.mrf.mxu0
      %v1835 = vadd.f32 0.0, %v1834
      %1836 = vdwg.mxu0
      %1837 = vmatpush.msra.mxu0 0.0
      %1838 = vmatpush.msra.mxu0 0.0
      %1839 = vmatpush.msra.mxu0 0.0
      %1840 = vmatpush.msra.mxu0 0.0
      %1841 = vmatpush.msra.mxu0 0.0
      %1842 = vmatpush.msra.mxu0 0.0
      %1843 = vmatpush.msra.mxu0 0.0
      %1844 = vmatpush.msra.mxu0 0.0
      %1845 = vmatpush.msra.mxu0 0.0
      %1846 = vmatpush.msra.mxu0 0.0
      %1847 = vmatpush.msra.mxu0 0.0
      %1848 = vmatpush.msra.mxu0 0.0
      %1849 = vmatpush.msra.mxu0 0.0
      %1850 = vmatpush.msra.mxu0 0.0
      %1851 = vmatpush.msra.mxu0 0.0
      %1852 = vmatpush.msra.mxu0 %v1804
      %1853 = vmatmul.f32.gmra.mxu0 %v1809
      %v1854 = vpop.f32.mrf.mxu0
      %v1855 = vadd.f32 0.0, %v1854
      %1856 = vmatmul.f32.gmra.mxu0 %v1812
      %v1857 = vpop.f32.mrf.mxu0
      %v1858 = vadd.f32 0.0, %v1857
      %1859 = vdwg.mxu0
      %v1860 = vadd.f32 %v1794, %v1832
      %v1861 = vadd.f32 %v1795, %v1855
      %v1862 = vadd.f32 %v1796, %v1835
      %v1863 = vadd.f32 %v1797, %v1858
      %s1864 = scalar_lea.vmem %s3, 112
      %v1865 = vld [vmem:[%s1864] sm:$0xff]
      %v1866 = vld [vmem:[%s1864 + $0x8] sm:$0xff]
      %1867 = vrot.lane.b32.xlu0 %v1310, 99
      %v1868 = vpop.permute.xlu0 %1867
      %1869 = vrot.lane.b32.xlu0 %v1410, 99
      %v1870 = vpop.permute.xlu0 %1869
      %vm1871 = vcmask 809984
      %v1872 = vsel %vm1871, %v1868, %v1870
      %v1876 = vsel %vm1426, %v1865, 0
      %v1879 = vsel %vm1426, %v1866, 0
      %1881 = vmatpush.msra.mxu0 0.0
      %1882 = vmatpush.msra.mxu0 0.0
      %1883 = vmatpush.msra.mxu0 0.0
      %1884 = vmatpush.msra.mxu0 0.0
      %1885 = vmatpush.msra.mxu0 0.0
      %1886 = vmatpush.msra.mxu0 0.0
      %1887 = vmatpush.msra.mxu0 0.0
      %1888 = vmatpush.msra.mxu0 0.0
      %1889 = vmatpush.msra.mxu0 0.0
      %1890 = vmatpush.msra.mxu0 0.0
      %1891 = vmatpush.msra.mxu0 0.0
      %1892 = vmatpush.msra.mxu0 0.0
      %1893 = vmatpush.msra.mxu0 0.0
      %1894 = vmatpush.msra.mxu0 0.0
      %1895 = vmatpush.msra.mxu0 0.0
      %1896 = vmatpush.msra.mxu0 %v1872
      %1897 = vmatmul.f32.gmra.mxu0 %v1876
      %v1898 = vpop.f32.mrf.mxu0
      %v1899 = vadd.f32 0.0, %v1898
      %1900 = vmatmul.f32.gmra.mxu0 %v1879
      %v1901 = vpop.f32.mrf.mxu0
      %v1902 = vadd.f32 0.0, %v1901
      %1903 = vdwg.mxu0
      %1904 = vmatpush.msra.mxu0 0.0
      %1905 = vmatpush.msra.mxu0 0.0
      %1906 = vmatpush.msra.mxu0 0.0
      %1907 = vmatpush.msra.mxu0 0.0
      %1908 = vmatpush.msra.mxu0 0.0
      %1909 = vmatpush.msra.mxu0 0.0
      %1910 = vmatpush.msra.mxu0 0.0
      %1911 = vmatpush.msra.mxu0 0.0
      %1912 = vmatpush.msra.mxu0 0.0
      %1913 = vmatpush.msra.mxu0 0.0
      %1914 = vmatpush.msra.mxu0 0.0
      %1915 = vmatpush.msra.mxu0 0.0
      %1916 = vmatpush.msra.mxu0 0.0
      %1917 = vmatpush.msra.mxu0 0.0
      %1918 = vmatpush.msra.mxu0 0.0
      %1919 = vmatpush.msra.mxu0 %v1870
      %1920 = vmatmul.f32.gmra.mxu0 %v1876
      %v1921 = vpop.f32.mrf.mxu0
      %v1922 = vadd.f32 0.0, %v1921
      %1923 = vmatmul.f32.gmra.mxu0 %v1879
      %v1924 = vpop.f32.mrf.mxu0
      %v1925 = vadd.f32 0.0, %v1924
      %1926 = vdwg.mxu0
      %v1927 = vadd.f32 %v1860, %v1899
      %v1928 = vadd.f32 %v1861, %v1922
      %v1929 = vadd.f32 %v1862, %v1902
      %v1930 = vadd.f32 %v1863, %v1925
      %s1931 = scalar_lea.vmem %s3, 128
      %v1932 = vld [vmem:[%s1931] sm:$0xff]
      %v1933 = vld [vmem:[%s1931 + $0x8] sm:$0xff]
      %1934 = vrot.lane.b32.xlu0 %v1310, 98
      %v1935 = vpop.permute.xlu0 %1934
      %1936 = vrot.lane.b32.xlu0 %v1410, 98
      %v1937 = vpop.permute.xlu0 %1936
      %vm1938 = vcmask 801792
      %v1939 = vsel %vm1938, %v1935, %v1937
      %v1943 = vsel %vm1426, %v1932, 0
      %v1946 = vsel %vm1426, %v1933, 0
      %1948 = vmatpush.msra.mxu0 0.0
      %1949 = vmatpush.msra.mxu0 0.0
      %1950 = vmatpush.msra.mxu0 0.0
      %1951 = vmatpush.msra.mxu0 0.0
      %1952 = vmatpush.msra.mxu0 0.0
      %1953 = vmatpush.msra.mxu0 0.0
      %1954 = vmatpush.msra.mxu0 0.0
      %1955 = vmatpush.msra.mxu0 0.0
      %1956 = vmatpush.msra.mxu0 0.0
      %1957 = vmatpush.msra.mxu0 0.0
      %1958 = vmatpush.msra.mxu0 0.0
      %1959 = vmatpush.msra.mxu0 0.0
      %1960 = vmatpush.msra.mxu0 0.0
      %1961 = vmatpush.msra.mxu0 0.0
      %1962 = vmatpush.msra.mxu0 0.0
      %1963 = vmatpush.msra.mxu0 %v1939
      %1964 = vmatmul.f32.gmra.mxu0 %v1943
      %v1965 = vpop.f32.mrf.mxu0
      %v1966 = vadd.f32 0.0, %v1965
      %1967 = vmatmul.f32.gmra.mxu0 %v1946
      %v1968 = vpop.f32.mrf.mxu0
      %v1969 = vadd.f32 0.0, %v1968
      %1970 = vdwg.mxu0
      %1971 = vmatpush.msra.mxu0 0.0
      %1972 = vmatpush.msra.mxu0 0.0
      %1973 = vmatpush.msra.mxu0 0.0
      %1974 = vmatpush.msra.mxu0 0.0
      %1975 = vmatpush.msra.mxu0 0.0
      %1976 = vmatpush.msra.mxu0 0.0
      %1977 = vmatpush.msra.mxu0 0.0
      %1978 = vmatpush.msra.mxu0 0.0
      %1979 = vmatpush.msra.mxu0 0.0
      %1980 = vmatpush.msra.mxu0 0.0
      %1981 = vmatpush.msra.mxu0 0.0
      %1982 = vmatpush.msra.mxu0 0.0
      %1983 = vmatpush.msra.mxu0 0.0
      %1984 = vmatpush.msra.mxu0 0.0
      %1985 = vmatpush.msra.mxu0 0.0
      %1986 = vmatpush.msra.mxu0 %v1937
      %1987 = vmatmul.f32.gmra.mxu0 %v1943
      %v1988 = vpop.f32.mrf.mxu0
      %v1989 = vadd.f32 0.0, %v1988
      %1990 = vmatmul.f32.gmra.mxu0 %v1946
      %v1991 = vpop.f32.mrf.mxu0
      %v1992 = vadd.f32 0.0, %v1991
      %1993 = vdwg.mxu0
      %v1994 = vadd.f32 %v1927, %v1966
      %v1995 = vadd.f32 %v1928, %v1989
      %v1996 = vadd.f32 %v1929, %v1969
      %v1997 = vadd.f32 %v1930, %v1992
      %v1998 = vld [vmem:[%s4] sm:$0xff]
      %v1999 = vld [vmem:[%s4 + $0x8] sm:$0xff]
      %2001 = vset.pattern.permute.xlu0 0
      %2002 = vperm.xlu0 %2001, %v1998
      %v2003 = vpop.permute.xlu0 %2002
      %2006 = vset.pattern.permute.xlu0 0
      %2007 = vperm.xlu0 %2006, %v1999
      %v2008 = vpop.permute.xlu0 %2007
      %v2010 = vadd.f32 %v1994, %v2003
      %v2011 = vadd.f32 %v1995, %v2003
      %v2012 = vadd.f32 %v1996, %v2008
      %v2013 = vadd.f32 %v1997, %v2008
      %v2014 = vmul.f32 %v2010, 0.1
      %v2015 = vmul.f32 %v2011, 0.1
      %v2016 = vmul.f32 %v2012, 0.1
      %v2017 = vmul.f32 %v2013, 0.1
      %v2018 = vmax.f32 %v2010, %v2014
      %v2019 = vmax.f32 %v2011, %v2015
      %v2020 = vmax.f32 %v2012, %v2016
      %v2021 = vmax.f32 %v2013, %v2017
      %v2022 = vld [vmem:[%s18] sm:$0xff]
      %v2023 = vld [vmem:[%s18 + $0x8] sm:$0xff]
      %v2024 = vld [vmem:[%s18 + $0x10] sm:$0xff]
      %v2025 = vld [vmem:[%s18 + $0x18] sm:$0xff]
      %v2026 = vld [vmem:[%s18 + $0x20] sm:$0xff]
      %v2027 = vld [vmem:[%s18 + $0x28] sm:$0xff]
      %v2028 = vld [vmem:[%s18 + $0x30] sm:$0xff]
      %v2029 = vld [vmem:[%s18 + $0x38] sm:$0xff]
      %v2030 = vld [vmem:[%s18 + $0x40] sm:$0xff]
      %v2031 = vld [vmem:[%s18 + $0x48] sm:$0xff]
      %v2032 = vld [vmem:[%s18 + $0x50] sm:$0xff]
      %v2033 = vld [vmem:[%s18 + $0x58] sm:$0xff]
      %v2034 = vld [vmem:[%s18 + $0x60] sm:$0xff]
      %v2035 = vld [vmem:[%s18 + $0x68] sm:$0xff]
      %v2036 = vld [vmem:[%s18 + $0x70] sm:$0xff]
      %v2037 = vld [vmem:[%s18 + $0x78] sm:$0xff]
      %v2038 = vld [vmem:[%s18 + $0x80] sm:$0xff]
      %v2039 = vld [vmem:[%s18 + $0x88] sm:$0xff]
      %v2040 = vld [vmem:[%s18 + $0x90] sm:$0xff]
      %v2041 = vld [vmem:[%s18 + $0x98] sm:$0xff]
      %v2042 = vld [vmem:[%s18 + $0xa0] sm:$0x3f]
      %vm2043 = vcmask 310272
      %v2045 = vsel %vm2043, %v2019, 0
      %v2048 = vsel %vm2043, %v2021, 0
      %vm2050 = vcmask 1045504
      %v2052 = vsel %vm2050, %v2042, 0
      %2054 = vmatpush.msra.mxu0 %v2037
      %2055 = vmatpush.msra.mxu0 %v2036
      %2056 = vmatpush.msra.mxu0 %v2035
      %2057 = vmatpush.msra.mxu0 %v2034
      %2058 = vmatpush.msra.mxu0 %v2033
      %2059 = vmatpush.msra.mxu0 %v2032
      %2060 = vmatpush.msra.mxu0 %v2031
      %2061 = vmatpush.msra.mxu0 %v2030
      %2062 = vmatpush.msra.mxu0 %v2029
      %2063 = vmatpush.msra.mxu0 %v2028
      %2064 = vmatpush.msra.mxu0 %v2027
      %2065 = vmatpush.msra.mxu0 %v2026
      %2066 = vmatpush.msra.mxu0 %v2025
      %2067 = vmatpush.msra.mxu0 %v2024
      %2068 = vmatpush.msra.mxu0 %v2023
      %2069 = vmatpush.msra.mxu0 %v2022
      %2070 = vmatmul.f32.gmra.mxu0 %v2018
      %v2071 = vpop.f32.mrf.mxu0
      %v2072 = vadd.f32 0.0, %v2071
      %2073 = vmatmul.f32.gmra.mxu0 %v2020
      %v2074 = vpop.f32.mrf.mxu0
      %v2075 = vadd.f32 0.0, %v2074
      %2076 = vdwg.mxu0
      %2077 = vmatpush.msra.mxu0 0.0
      %2078 = vmatpush.msra.mxu0 0.0
      %2079 = vmatpush.msra.mxu0 0.0
      %2080 = vmatpush.msra.mxu0 0.0
      %2081 = vmatpush.msra.mxu0 0.0
      %2082 = vmatpush.msra.mxu0 0.0
      %2083 = vmatpush.msra.mxu0 0.0
      %2084 = vmatpush.msra.mxu0 0.0
      %2085 = vmatpush.msra.mxu0 0.0
      %2086 = vmatpush.msra.mxu0 0.0
      %2087 = vmatpush.msra.mxu0 0.0
      %2088 = vmatpush.msra.mxu0 %v2052
      %2089 = vmatpush.msra.mxu0 %v2041
      %2090 = vmatpush.msra.mxu0 %v2040
      %2091 = vmatpush.msra.mxu0 %v2039
      %2092 = vmatpush.msra.mxu0 %v2038
      %2093 = vmatmul.f32.gmra.mxu0 %v2045
      %v2094 = vpop.f32.mrf.mxu0
      %v2095 = vadd.f32 %v2072, %v2094
      %2096 = vmatmul.f32.gmra.mxu0 %v2048
      %v2097 = vpop.f32.mrf.mxu0
      %v2098 = vadd.f32 %v2075, %v2097
      %2099 = vdwg.mxu0
      %v2100 = vld [vmem:[%s7] sm:$0xf]
      %v2101 = vld [vmem:[%s8] sm:$0xf]
      %vm2102 = vcmask 130048
      %v2104 = vsel %vm2102, %v2100, 0
      %2106 = vmatpush.msra.mxu0 0.0
      %2107 = vmatpush.msra.mxu0 0.0
      %2108 = vmatpush.msra.mxu0 0.0
      %2109 = vmatpush.msra.mxu0 0.0
      %2110 = vmatpush.msra.mxu0 0.0
      %2111 = vmatpush.msra.mxu0 0.0
      %2112 = vmatpush.msra.mxu0 0.0
      %2113 = vmatpush.msra.mxu0 0.0
      %2114 = vmatpush.msra.mxu0 0.0
      %2115 = vmatpush.msra.mxu0 0.0
      %2116 = vmatpush.msra.mxu0 0.0
      %2117 = vmatpush.msra.mxu0 0.0
      %2118 = vmatpush.msra.mxu0 0.0
      %2119 = vmatpush.msra.mxu0 0.0
      %2120 = vmatpush.msra.mxu0 %v2098
      %2121 = vmatpush.msra.mxu0 %v2095
      %2122 = vmatmul.f32.gmra.mxu0 %v2104
      %v2123 = vpop.f32.mrf.mxu0
      %v2124 = vadd.f32 %v2101, %v2123
      %2125 = vdwg.mxu0
      %v2126 = vmax.f32 %v2124, 0.0
      %v2127 = vld [vmem:[%s9] sm:$0xff]
      %v2128 = vld [vmem:[%s9 + $0x8] sm:$0xff]
      %v2129 = vld [vmem:[%s10] sm:$0xff]
      %v2130 = vld [vmem:[%s10 + $0x8] sm:$0xff]
      %vm2131 = vcmask 31744
      %v2133 = vsel %vm2131, %v2127, 0
      %v2136 = vsel %vm2131, %v2128, 0
      %vm2138 = vcmask 1043456
      %v2140 = vsel %vm2138, %v2126, 0
      %2142 = vmatpush.msra.mxu0 0.0
      %2143 = vmatpush.msra.mxu0 0.0
      %2144 = vmatpush.msra.mxu0 0.0
      %2145 = vmatpush.msra.mxu0 0.0
      %2146 = vmatpush.msra.mxu0 0.0
      %2147 = vmatpush.msra.mxu0 0.0
      %2148 = vmatpush.msra.mxu0 0.0
      %2149 = vmatpush.msra.mxu0 0.0
      %2150 = vmatpush.msra.mxu0 0.0
      %2151 = vmatpush.msra.mxu0 0.0
      %2152 = vmatpush.msra.mxu0 0.0
      %2153 = vmatpush.msra.mxu0 0.0
      %2154 = vmatpush.msra.mxu0 0.0
      %2155 = vmatpush.msra.mxu0 0.0
      %2156 = vmatpush.msra.mxu0 0.0
      %2157 = vmatpush.msra.mxu0 %v2140
      %2158 = vmatmul.f32.gmra.mxu0 %v2133
      %v2159 = vpop.f32.mrf.mxu0
      %v2160 = vadd.f32 %v2129, %v2159
      %2161 = vmatmul.f32.gmra.mxu0 %v2136
      %v2162 = vpop.f32.mrf.mxu0
      %v2163 = vadd.f32 %v2130, %v2162
      %2164 = vdwg.mxu0
      %v2165 = vsub.f32 0.0, %v2160
      %v2166 = vsub.f32 0.0, %v2163
      %v2167 = vmul.f32 %v2165, 1.442695
      %v2168 = vpow.pop %v2167
      %v2169 = vmul.f32 %v2166, 1.442695
      %v2170 = vpow.pop %v2169
      %v2171 = vadd.f32 %v2168, 1.0
      %v2172 = vadd.f32 %v2170, 1.0
      %v2173 = vrcp.pop %v2171
      %v2174 = vmul.f32 %v2171, %v2173
      %v2175 = vsub.f32 1.0, %v2174
      %v2176 = vmul.f32 %v2173, %v2175
      %v2177 = vadd.f32 %v2173, %v2176
      %vm2178 = vweird.f32 %v2171
      %vm2179 = vweird.f32 %v2173
      %vm2180 = vmor %vm2178, %vm2179
      %v2181 = vsel %vm2180, %v2173, %v2177
      %v2182 = vand.u32 2147483647, %v2171
      %vm2183 = vcmp.eq.f32.partialorder %v2182, 8.507059e+37
      %v2184 = vand.u32 %v2171, 2147483648
      %v2185 = vor.u32 1.1754944e-38, %v2184
      %v2186 = vsel %vm2183, %v2185, %v2181
      %v2187 = vmul.f32 1.0, %v2186
      %v2188 = vrcp.pop %v2172
      %v2189 = vmul.f32 %v2172, %v2188
      %v2190 = vsub.f32 1.0, %v2189
      %v2191 = vmul.f32 %v2188, %v2190
      %v2192 = vadd.f32 %v2188, %v2191
      %vm2193 = vweird.f32 %v2172
      %vm2194 = vweird.f32 %v2188
      %vm2195 = vmor %vm2193, %vm2194
      %v2196 = vsel %vm2195, %v2188, %v2192
      %v2197 = vand.u32 2147483647, %v2172
      %vm2198 = vcmp.eq.f32.partialorder %v2197, 8.507059e+37
      %v2199 = vand.u32 %v2172, 2147483648
      %v2200 = vor.u32 1.1754944e-38, %v2199
      %v2201 = vsel %vm2198, %v2200, %v2196
      %v2202 = vmul.f32 1.0, %v2201
      %2204 = vset.pattern.permute.xlu0 0
      %2205 = vperm.xlu0 %2204, %v2187
      %v2206 = vpop.permute.xlu0 %2205
      %2209 = vset.pattern.permute.xlu0 0
      %2210 = vperm.xlu0 %2209, %v2202
      %v2211 = vpop.permute.xlu0 %2210
      %v2213 = vmul.f32 %v2018, %v2206
      %v2214 = vmul.f32 %v2019, %v2206
      %v2215 = vmul.f32 %v2020, %v2211
      %v2216 = vmul.f32 %v2021, %v2211
      %2221 = vrot.lane.b32.xlu0 %v2213, 127
      %v2222 = vpop.permute.xlu0 %2221
      %2223 = vrot.lane.b32.xlu0 %v2214, 127
      %v2224 = vpop.permute.xlu0 %2223
      %2225 = vrot.lane.b32.xlu0 %v2215, 127
      %v2226 = vpop.permute.xlu0 %2225
      %2227 = vrot.lane.b32.xlu0 %v2216, 127
      %v2228 = vpop.permute.xlu0 %2227
      %v2229 = vsel %vm652, %v2222, %v2224
      %v2230 = vsel %vm652, %v2226, %v2228
      %v2235 = vmax.f32 %v2213, %v2229
      %v2236 = vmax.f32 %v2214, %v2224
      %v2237 = vmax.f32 %v2215, %v2230
      %v2238 = vmax.f32 %v2216, %v2228
      %2243 = vrot.lane.b32.xlu0 %v2235, 114
      %v2244 = vpop.permute.xlu0 %2243
      %2245 = vrot.lane.b32.xlu0 %v2236, 114
      %v2246 = vpop.permute.xlu0 %2245
      %2247 = vrot.lane.b32.xlu0 %v2237, 114
      %v2248 = vpop.permute.xlu0 %2247
      %2249 = vrot.lane.b32.xlu0 %v2238, 114
      %v2250 = vpop.permute.xlu0 %2249
      %v2251 = vsel %vm1604, %v2244, %v2246
      %v2252 = vsel %vm1604, %v2248, %v2250
      %v2257 = vmax.f32 %v2235, %v2251
      %v2258 = vmax.f32 %v2236, %v2246
      %v2259 = vmax.f32 %v2237, %v2252
      %v2260 = vmax.f32 %v2238, %v2250
      %v2261 = vld [vmem:[%s16] sm:$0xff]
      %v2262 = vld [vmem:[%s16 + $0x8] sm:$0xff]
      %v2263 = vld [vmem:[%s16 + $0x10] sm:$0xff]
      %v2264 = vld [vmem:[%s16 + $0x18] sm:$0xff]
      %v2265 = vld [vmem:[%s16 + $0x20] sm:$0xff]
      %v2266 = vld [vmem:[%s16 + $0x28] sm:$0xff]
      %v2267 = vld [vmem:[%s16 + $0x30] sm:$0xff]
      %v2268 = vld [vmem:[%s16 + $0x38] sm:$0xff]
      %v2269 = vld [vmem:[%s16 + $0x40] sm:$0xff]
      %v2270 = vld [vmem:[%s16 + $0x48] sm:$0xff]
      %v2271 = vld [vmem:[%s16 + $0x50] sm:$0xff]
      %v2272 = vld [vmem:[%s16 + $0x58] sm:$0xff]
      %v2273 = vld [vmem:[%s16 + $0x60] sm:$0xff]
      %v2274 = vld [vmem:[%s16 + $0x68] sm:$0xff]
      %v2275 = vld [vmem:[%s16 + $0x70] sm:$0xff]
      %v2276 = vld [vmem:[%s16 + $0x78] sm:$0xff]
      %v2277 = vld [vmem:[%s16 + $0x80] sm:$0xff]
      %v2278 = vld [vmem:[%s16 + $0x88] sm:$0xff]
      %v2279 = vld [vmem:[%s16 + $0x90] sm:$0x7f]
      %vm2280 = vcmask 187392
      %v2282 = vsel %vm2280, %v2258, 0
      %v2285 = vsel %vm2280, %v2260, 0
      %vm2287 = vcmask 1046528
      %v2289 = vsel %vm2287, %v2279, 0
      %2291 = vmatpush.msra.mxu0 %v2276
      %2292 = vmatpush.msra.mxu0 %v2275
      %2293 = vmatpush.msra.mxu0 %v2274
      %2294 = vmatpush.msra.mxu0 %v2273
      %2295 = vmatpush.msra.mxu0 %v2272
      %2296 = vmatpush.msra.mxu0 %v2271
      %2297 = vmatpush.msra.mxu0 %v2270
      %2298 = vmatpush.msra.mxu0 %v2269
      %2299 = vmatpush.msra.mxu0 %v2268
      %2300 = vmatpush.msra.mxu0 %v2267
      %2301 = vmatpush.msra.mxu0 %v2266
      %2302 = vmatpush.msra.mxu0 %v2265
      %2303 = vmatpush.msra.mxu0 %v2264
      %2304 = vmatpush.msra.mxu0 %v2263
      %2305 = vmatpush.msra.mxu0 %v2262
      %2306 = vmatpush.msra.mxu0 %v2261
      %2307 = vmatmul.f32.gmra.mxu0 %v2257
      %v2308 = vpop.f32.mrf.mxu0
      %v2309 = vadd.f32 0.0, %v2308
      %2310 = vmatmul.f32.gmra.mxu0 %v2259
      %v2311 = vpop.f32.mrf.mxu0
      %v2312 = vadd.f32 0.0, %v2311
      %2313 = vdwg.mxu0
      %2314 = vmatpush.msra.mxu0 0.0
      %2315 = vmatpush.msra.mxu0 0.0
      %2316 = vmatpush.msra.mxu0 0.0
      %2317 = vmatpush.msra.mxu0 0.0
      %2318 = vmatpush.msra.mxu0 0.0
      %2319 = vmatpush.msra.mxu0 0.0
      %2320 = vmatpush.msra.mxu0 0.0
      %2321 = vmatpush.msra.mxu0 0.0
      %2322 = vmatpush.msra.mxu0 0.0
      %2323 = vmatpush.msra.mxu0 0.0
      %2324 = vmatpush.msra.mxu0 0.0
      %2325 = vmatpush.msra.mxu0 0.0
      %2326 = vmatpush.msra.mxu0 0.0
      %2327 = vmatpush.msra.mxu0 %v2289
      %2328 = vmatpush.msra.mxu0 %v2278
      %2329 = vmatpush.msra.mxu0 %v2277
      %2330 = vmatmul.f32.gmra.mxu0 %v2282
      %v2331 = vpop.f32.mrf.mxu0
      %v2332 = vadd.f32 %v2309, %v2331
      %2333 = vmatmul.f32.gmra.mxu0 %v2285
      %v2334 = vpop.f32.mrf.mxu0
      %v2335 = vadd.f32 %v2312, %v2334
      %2336 = vdwg.mxu0
      %v2337 = vld [vmem:[%s5] sm:$0xff]
      %v2338 = vld [vmem:[%s5 + $0x8] sm:$0xff]
      %v2339 = vld [vmem:[%s5 + $0x10] sm:$0xf]
      %s2340 = scalar_lea.vmem %s5, 24
      %v2341 = vld [vmem:[%s2340] sm:$0xff]
      %v2342 = vld [vmem:[%s2340 + $0x8] sm:$0xff]
      %v2343 = vld [vmem:[%s2340 + $0x10] sm:$0xf]
      %2346 = vrot.lane.b32.xlu0 %v2332, 127
      %v2347 = vpop.permute.xlu0 %2346
      %2348 = vrot.lane.b32.xlu0 %v2335, 127
      %v2349 = vpop.permute.xlu0 %2348
      %v2353 = vsel %vm2102, %v2341, 0
      %v2356 = vsel %vm2102, %v2342, 0
      %v2359 = vsel %vm2102, %v2343, 0
      %2361 = vmatpush.msra.mxu0 0.0
      %2362 = vmatpush.msra.mxu0 0.0
      %2363 = vmatpush.msra.mxu0 0.0
      %2364 = vmatpush.msra.mxu0 0.0
      %2365 = vmatpush.msra.mxu0 0.0
      %2366 = vmatpush.msra.mxu0 0.0
      %2367 = vmatpush.msra.mxu0 0.0
      %2368 = vmatpush.msra.mxu0 0.0
      %2369 = vmatpush.msra.mxu0 0.0
      %2370 = vmatpush.msra.mxu0 0.0
      %2371 = vmatpush.msra.mxu0 0.0
      %2372 = vmatpush.msra.mxu0 0.0
      %2373 = vmatpush.msra.mxu0 0.0
      %2374 = vmatpush.msra.mxu0 0.0
      %2375 = vmatpush.msra.mxu0 %v2349
      %2376 = vmatpush.msra.mxu0 %v2347
      %2377 = vmatmul.f32.gmra.mxu0 %v2353
      %v2378 = vpop.f32.mrf.mxu0
      %v2379 = vadd.f32 0.0, %v2378
      %2380 = vmatmul.f32.gmra.mxu0 %v2356
      %v2381 = vpop.f32.mrf.mxu0
      %v2382 = vadd.f32 0.0, %v2381
      %2383 = vmatmul.f32.gmra.mxu0 %v2359
      %v2384 = vpop.f32.mrf.mxu0
      %v2385 = vadd.f32 0.0, %v2384
      %2386 = vdwg.mxu0
      %v2388 = vsel %vm2102, %v2337, 0
      %v2391 = vsel %vm2102, %v2338, 0
      %v2394 = vsel %vm2102, %v2339, 0
      %2396 = vmatpush.msra.mxu0 0.0
      %2397 = vmatpush.msra.mxu0 0.0
      %2398 = vmatpush.msra.mxu0 0.0
      %2399 = vmatpush.msra.mxu0 0.0
      %2400 = vmatpush.msra.mxu0 0.0
      %2401 = vmatpush.msra.mxu0 0.0
      %2402 = vmatpush.msra.mxu0 0.0
      %2403 = vmatpush.msra.mxu0 0.0
      %2404 = vmatpush.msra.mxu0 0.0
      %2405 = vmatpush.msra.mxu0 0.0
      %2406 = vmatpush.msra.mxu0 0.0
      %2407 = vmatpush.msra.mxu0 0.0
      %2408 = vmatpush.msra.mxu0 0.0
      %2409 = vmatpush.msra.mxu0 0.0
      %2410 = vmatpush.msra.mxu0 %v2335
      %2411 = vmatpush.msra.mxu0 %v2332
      %2412 = vmatmul.f32.gmra.mxu0 %v2388
      %v2413 = vpop.f32.mrf.mxu0
      %v2414 = vadd.f32 %v2379, %v2413
      %2415 = vmatmul.f32.gmra.mxu0 %v2391
      %v2416 = vpop.f32.mrf.mxu0
      %v2417 = vadd.f32 %v2382, %v2416
      %2418 = vmatmul.f32.gmra.mxu0 %v2394
      %v2419 = vpop.f32.mrf.mxu0
      %v2420 = vadd.f32 %v2385, %v2419
      %2421 = vdwg.mxu0
      %s2422 = scalar_lea.vmem %s5, 48
      %v2423 = vld [vmem:[%s2422] sm:$0xff]
      %v2424 = vld [vmem:[%s2422 + $0x8] sm:$0xff]
      %v2425 = vld [vmem:[%s2422 + $0x10] sm:$0xf]
      %2426 = vrot.lane.b32.xlu0 %v2332, 126
      %v2427 = vpop.permute.xlu0 %2426
      %2428 = vrot.lane.b32.xlu0 %v2335, 126
      %v2429 = vpop.permute.xlu0 %2428
      %v2433 = vsel %vm2102, %v2423, 0
      %v2436 = vsel %vm2102, %v2424, 0
      %v2439 = vsel %vm2102, %v2425, 0
      %2441 = vmatpush.msra.mxu0 0.0
      %2442 = vmatpush.msra.mxu0 0.0
      %2443 = vmatpush.msra.mxu0 0.0
      %2444 = vmatpush.msra.mxu0 0.0
      %2445 = vmatpush.msra.mxu0 0.0
      %2446 = vmatpush.msra.mxu0 0.0
      %2447 = vmatpush.msra.mxu0 0.0
      %2448 = vmatpush.msra.mxu0 0.0
      %2449 = vmatpush.msra.mxu0 0.0
      %2450 = vmatpush.msra.mxu0 0.0
      %2451 = vmatpush.msra.mxu0 0.0
      %2452 = vmatpush.msra.mxu0 0.0
      %2453 = vmatpush.msra.mxu0 0.0
      %2454 = vmatpush.msra.mxu0 0.0
      %2455 = vmatpush.msra.mxu0 %v2429
      %2456 = vmatpush.msra.mxu0 %v2427
      %2457 = vmatmul.f32.gmra.mxu0 %v2433
      %v2458 = vpop.f32.mrf.mxu0
      %v2459 = vadd.f32 0.0, %v2458
      %2460 = vmatmul.f32.gmra.mxu0 %v2436
      %v2461 = vpop.f32.mrf.mxu0
      %v2462 = vadd.f32 0.0, %v2461
      %2463 = vmatmul.f32.gmra.mxu0 %v2439
      %v2464 = vpop.f32.mrf.mxu0
      %v2465 = vadd.f32 0.0, %v2464
      %2466 = vdwg.mxu0
      %v2467 = vadd.f32 %v2414, %v2459
      %v2468 = vadd.f32 %v2417, %v2462
      %v2469 = vadd.f32 %v2420, %v2465
      %s2470 = scalar_lea.vmem %s5, 72
      %v2471 = vld [vmem:[%s2470] sm:$0xff]
      %v2472 = vld [vmem:[%s2470 + $0x8] sm:$0xff]
      %v2473 = vld [vmem:[%s2470 + $0x10] sm:$0xf]
      %2474 = vrot.lane.b32.xlu0 %v2332, 120
      %v2475 = vpop.permute.xlu0 %2474
      %2476 = vrot.lane.b32.xlu0 %v2335, 120
      %v2477 = vpop.permute.xlu0 %2476
      %v2481 = vsel %vm2102, %v2471, 0
      %v2484 = vsel %vm2102, %v2472, 0
      %v2487 = vsel %vm2102, %v2473, 0
      %2489 = vmatpush.msra.mxu0 0.0
      %2490 = vmatpush.msra.mxu0 0.0
      %2491 = vmatpush.msra.mxu0 0.0
      %2492 = vmatpush.msra.mxu0 0.0
      %2493 = vmatpush.msra.mxu0 0.0
      %2494 = vmatpush.msra.mxu0 0.0
      %2495 = vmatpush.msra.mxu0 0.0
      %2496 = vmatpush.msra.mxu0 0.0
      %2497 = vmatpush.msra.mxu0 0.0
      %2498 = vmatpush.msra.mxu0 0.0
      %2499 = vmatpush.msra.mxu0 0.0
      %2500 = vmatpush.msra.mxu0 0.0
      %2501 = vmatpush.msra.mxu0 0.0
      %2502 = vmatpush.msra.mxu0 0.0
      %2503 = vmatpush.msra.mxu0 %v2477
      %2504 = vmatpush.msra.mxu0 %v2475
      %2505 = vmatmul.f32.gmra.mxu0 %v2481
      %v2506 = vpop.f32.mrf.mxu0
      %v2507 = vadd.f32 0.0, %v2506
      %2508 = vmatmul.f32.gmra.mxu0 %v2484
      %v2509 = vpop.f32.mrf.mxu0
      %v2510 = vadd.f32 0.0, %v2509
      %2511 = vmatmul.f32.gmra.mxu0 %v2487
      %v2512 = vpop.f32.mrf.mxu0
      %v2513 = vadd.f32 0.0, %v2512
      %2514 = vdwg.mxu0
      %v2515 = vadd.f32 %v2467, %v2507
      %v2516 = vadd.f32 %v2468, %v2510
      %v2517 = vadd.f32 %v2469, %v2513
      %s2518 = scalar_lea.vmem %s5, 96
      %v2519 = vld [vmem:[%s2518] sm:$0xff]
      %v2520 = vld [vmem:[%s2518 + $0x8] sm:$0xff]
      %v2521 = vld [vmem:[%s2518 + $0x10] sm:$0xf]
      %2522 = vrot.lane.b32.xlu0 %v2332, 119
      %v2523 = vpop.permute.xlu0 %2522
      %2524 = vrot.lane.b32.xlu0 %v2335, 119
      %v2525 = vpop.permute.xlu0 %2524
      %v2529 = vsel %vm2102, %v2519, 0
      %v2532 = vsel %vm2102, %v2520, 0
      %v2535 = vsel %vm2102, %v2521, 0
      %2537 = vmatpush.msra.mxu0 0.0
      %2538 = vmatpush.msra.mxu0 0.0
      %2539 = vmatpush.msra.mxu0 0.0
      %2540 = vmatpush.msra.mxu0 0.0
      %2541 = vmatpush.msra.mxu0 0.0
      %2542 = vmatpush.msra.mxu0 0.0
      %2543 = vmatpush.msra.mxu0 0.0
      %2544 = vmatpush.msra.mxu0 0.0
      %2545 = vmatpush.msra.mxu0 0.0
      %2546 = vmatpush.msra.mxu0 0.0
      %2547 = vmatpush.msra.mxu0 0.0
      %2548 = vmatpush.msra.mxu0 0.0
      %2549 = vmatpush.msra.mxu0 0.0
      %2550 = vmatpush.msra.mxu0 0.0
      %2551 = vmatpush.msra.mxu0 %v2525
      %2552 = vmatpush.msra.mxu0 %v2523
      %2553 = vmatmul.f32.gmra.mxu0 %v2529
      %v2554 = vpop.f32.mrf.mxu0
      %v2555 = vadd.f32 0.0, %v2554
      %2556 = vmatmul.f32.gmra.mxu0 %v2532
      %v2557 = vpop.f32.mrf.mxu0
      %v2558 = vadd.f32 0.0, %v2557
      %2559 = vmatmul.f32.gmra.mxu0 %v2535
      %v2560 = vpop.f32.mrf.mxu0
      %v2561 = vadd.f32 0.0, %v2560
      %2562 = vdwg.mxu0
      %v2563 = vadd.f32 %v2515, %v2555
      %v2564 = vadd.f32 %v2516, %v2558
      %v2565 = vadd.f32 %v2517, %v2561
      %s2566 = scalar_lea.vmem %s5, 120
      %v2567 = vld [vmem:[%s2566] sm:$0xff]
      %v2568 = vld [vmem:[%s2566 + $0x8] sm:$0xff]
      %v2569 = vld [vmem:[%s2566 + $0x10] sm:$0xf]
      %2570 = vrot.lane.b32.xlu0 %v2332, 118
      %v2571 = vpop.permute.xlu0 %2570
      %2572 = vrot.lane.b32.xlu0 %v2335, 118
      %v2573 = vpop.permute.xlu0 %2572
      %v2577 = vsel %vm2102, %v2567, 0
      %v2580 = vsel %vm2102, %v2568, 0
      %v2583 = vsel %vm2102, %v2569, 0
      %2585 = vmatpush.msra.mxu0 0.0
      %2586 = vmatpush.msra.mxu0 0.0
      %2587 = vmatpush.msra.mxu0 0.0
      %2588 = vmatpush.msra.mxu0 0.0
      %2589 = vmatpush.msra.mxu0 0.0
      %2590 = vmatpush.msra.mxu0 0.0
      %2591 = vmatpush.msra.mxu0 0.0
      %2592 = vmatpush.msra.mxu0 0.0
      %2593 = vmatpush.msra.mxu0 0.0
      %2594 = vmatpush.msra.mxu0 0.0
      %2595 = vmatpush.msra.mxu0 0.0
      %2596 = vmatpush.msra.mxu0 0.0
      %2597 = vmatpush.msra.mxu0 0.0
      %2598 = vmatpush.msra.mxu0 0.0
      %2599 = vmatpush.msra.mxu0 %v2573
      %2600 = vmatpush.msra.mxu0 %v2571
      %2601 = vmatmul.f32.gmra.mxu0 %v2577
      %v2602 = vpop.f32.mrf.mxu0
      %v2603 = vadd.f32 0.0, %v2602
      %2604 = vmatmul.f32.gmra.mxu0 %v2580
      %v2605 = vpop.f32.mrf.mxu0
      %v2606 = vadd.f32 0.0, %v2605
      %2607 = vmatmul.f32.gmra.mxu0 %v2583
      %v2608 = vpop.f32.mrf.mxu0
      %v2609 = vadd.f32 0.0, %v2608
      %2610 = vdwg.mxu0
      %v2611 = vadd.f32 %v2563, %v2603
      %v2612 = vadd.f32 %v2564, %v2606
      %v2613 = vadd.f32 %v2565, %v2609
      %s2614 = scalar_lea.vmem %s5, 144
      %v2615 = vld [vmem:[%s2614] sm:$0xff]
      %v2616 = vld [vmem:[%s2614 + $0x8] sm:$0xff]
      %v2617 = vld [vmem:[%s2614 + $0x10] sm:$0xf]
      %2618 = vrot.lane.b32.xlu0 %v2332, 112
      %v2619 = vpop.permute.xlu0 %2618
      %2620 = vrot.lane.b32.xlu0 %v2335, 112
      %v2621 = vpop.permute.xlu0 %2620
      %v2625 = vsel %vm2102, %v2615, 0
      %v2628 = vsel %vm2102, %v2616, 0
      %v2631 = vsel %vm2102, %v2617, 0
      %2633 = vmatpush.msra.mxu0 0.0
      %2634 = vmatpush.msra.mxu0 0.0
      %2635 = vmatpush.msra.mxu0 0.0
      %2636 = vmatpush.msra.mxu0 0.0
      %2637 = vmatpush.msra.mxu0 0.0
      %2638 = vmatpush.msra.mxu0 0.0
      %2639 = vmatpush.msra.mxu0 0.0
      %2640 = vmatpush.msra.mxu0 0.0
      %2641 = vmatpush.msra.mxu0 0.0
      %2642 = vmatpush.msra.mxu0 0.0
      %2643 = vmatpush.msra.mxu0 0.0
      %2644 = vmatpush.msra.mxu0 0.0
      %2645 = vmatpush.msra.mxu0 0.0
      %2646 = vmatpush.msra.mxu0 0.0
      %2647 = vmatpush.msra.mxu0 %v2621
      %2648 = vmatpush.msra.mxu0 %v2619
      %2649 = vmatmul.f32.gmra.mxu0 %v2625
      %v2650 = vpop.f32.mrf.mxu0
      %v2651 = vadd.f32 0.0, %v2650
      %2652 = vmatmul.f32.gmra.mxu0 %v2628
      %v2653 = vpop.f32.mrf.mxu0
      %v2654 = vadd.f32 0.0, %v2653
      %2655 = vmatmul.f32.gmra.mxu0 %v2631
      %v2656 = vpop.f32.mrf.mxu0
      %v2657 = vadd.f32 0.0, %v2656
      %2658 = vdwg.mxu0
      %v2659 = vadd.f32 %v2611, %v2651
      %v2660 = vadd.f32 %v2612, %v2654
      %v2661 = vadd.f32 %v2613, %v2657
      %s2662 = scalar_lea.vmem %s5, 168
      %v2663 = vld [vmem:[%s2662] sm:$0xff]
      %v2664 = vld [vmem:[%s2662 + $0x8] sm:$0xff]
      %v2665 = vld [vmem:[%s2662 + $0x10] sm:$0xf]
      %2666 = vrot.lane.b32.xlu0 %v2332, 111
      %v2667 = vpop.permute.xlu0 %2666
      %2668 = vrot.lane.b32.xlu0 %v2335, 111
      %v2669 = vpop.permute.xlu0 %2668
      %v2673 = vsel %vm2102, %v2663, 0
      %v2676 = vsel %vm2102, %v2664, 0
      %v2679 = vsel %vm2102, %v2665, 0
      %2681 = vmatpush.msra.mxu0 0.0
      %2682 = vmatpush.msra.mxu0 0.0
      %2683 = vmatpush.msra.mxu0 0.0
      %2684 = vmatpush.msra.mxu0 0.0
      %2685 = vmatpush.msra.mxu0 0.0
      %2686 = vmatpush.msra.mxu0 0.0
      %2687 = vmatpush.msra.mxu0 0.0
      %2688 = vmatpush.msra.mxu0 0.0
      %2689 = vmatpush.msra.mxu0 0.0
      %2690 = vmatpush.msra.mxu0 0.0
      %2691 = vmatpush.msra.mxu0 0.0
      %2692 = vmatpush.msra.mxu0 0.0
      %2693 = vmatpush.msra.mxu0 0.0
      %2694 = vmatpush.msra.mxu0 0.0
      %2695 = vmatpush.msra.mxu0 %v2669
      %2696 = vmatpush.msra.mxu0 %v2667
      %2697 = vmatmul.f32.gmra.mxu0 %v2673
      %v2698 = vpop.f32.mrf.mxu0
      %v2699 = vadd.f32 0.0, %v2698
      %2700 = vmatmul.f32.gmra.mxu0 %v2676
      %v2701 = vpop.f32.mrf.mxu0
      %v2702 = vadd.f32 0.0, %v2701
      %2703 = vmatmul.f32.gmra.mxu0 %v2679
      %v2704 = vpop.f32.mrf.mxu0
      %v2705 = vadd.f32 0.0, %v2704
      %2706 = vdwg.mxu0
      %v2707 = vadd.f32 %v2659, %v2699
      %v2708 = vadd.f32 %v2660, %v2702
      %v2709 = vadd.f32 %v2661, %v2705
      %s2710 = scalar_lea.vmem %s5, 192
      %v2711 = vld [vmem:[%s2710] sm:$0xff]
      %v2712 = vld [vmem:[%s2710 + $0x8] sm:$0xff]
      %v2713 = vld [vmem:[%s2710 + $0x10] sm:$0xf]
      %2714 = vrot.lane.b32.xlu0 %v2332, 110
      %v2715 = vpop.permute.xlu0 %2714
      %2716 = vrot.lane.b32.xlu0 %v2335, 110
      %v2717 = vpop.permute.xlu0 %2716
      %v2721 = vsel %vm2102, %v2711, 0
      %v2724 = vsel %vm2102, %v2712, 0
      %v2727 = vsel %vm2102, %v2713, 0
      %2729 = vmatpush.msra.mxu0 0.0
      %2730 = vmatpush.msra.mxu0 0.0
      %2731 = vmatpush.msra.mxu0 0.0
      %2732 = vmatpush.msra.mxu0 0.0
      %2733 = vmatpush.msra.mxu0 0.0
      %2734 = vmatpush.msra.mxu0 0.0
      %2735 = vmatpush.msra.mxu0 0.0
      %2736 = vmatpush.msra.mxu0 0.0
      %2737 = vmatpush.msra.mxu0 0.0
      %2738 = vmatpush.msra.mxu0 0.0
      %2739 = vmatpush.msra.mxu0 0.0
      %2740 = vmatpush.msra.mxu0 0.0
      %2741 = vmatpush.msra.mxu0 0.0
      %2742 = vmatpush.msra.mxu0 0.0
      %2743 = vmatpush.msra.mxu0 %v2717
      %2744 = vmatpush.msra.mxu0 %v2715
      %2745 = vmatmul.f32.gmra.mxu0 %v2721
      %v2746 = vpop.f32.mrf.mxu0
      %v2747 = vadd.f32 0.0, %v2746
      %2748 = vmatmul.f32.gmra.mxu0 %v2724
      %v2749 = vpop.f32.mrf.mxu0
      %v2750 = vadd.f32 0.0, %v2749
      %2751 = vmatmul.f32.gmra.mxu0 %v2727
      %v2752 = vpop.f32.mrf.mxu0
      %v2753 = vadd.f32 0.0, %v2752
      %2754 = vdwg.mxu0
      %v2755 = vadd.f32 %v2707, %v2747
      %v2756 = vadd.f32 %v2708, %v2750
      %v2757 = vadd.f32 %v2709, %v2753
      %v2758 = vld [vmem:[%s6] sm:$0xff]
      %v2759 = vld [vmem:[%s6 + $0x8] sm:$0xff]
      %v2760 = vld [vmem:[%s6 + $0x10] sm:$0xf]
      %2762 = vset.pattern.permute.xlu0 0
      %2763 = vperm.xlu0 %2762, %v2758
      %v2764 = vpop.permute.xlu0 %2763
      %2767 = vset.pattern.permute.xlu0 0
      %2768 = vperm.xlu0 %2767, %v2759
      %v2769 = vpop.permute.xlu0 %2768
      %2772 = vset.pattern.permute.xlu0 0
      %2773 = vperm.xlu0 %2772, %v2760
      %v2774 = vpop.permute.xlu0 %2773
      %v2776 = vadd.f32 %v2755, %v2764
      %v2777 = vadd.f32 %v2756, %v2769
      %v2778 = vadd.f32 %v2757, %v2774
      %v2779 = vmul.f32 %v2776, 0.1
      %v2780 = vmul.f32 %v2777, 0.1
      %v2781 = vmul.f32 %v2778, 0.1
      %v2782 = vmax.f32 %v2776, %v2779
      %v2783 = vmax.f32 %v2777, %v2780
      %v2784 = vmax.f32 %v2778, %v2781
      %2788 = vrot.lane.b32.xlu0 %v2782, 127
      %v2789 = vpop.permute.xlu0 %2788
      %2790 = vrot.lane.b32.xlu0 %v2783, 127
      %v2791 = vpop.permute.xlu0 %2790
      %2792 = vrot.lane.b32.xlu0 %v2784, 127
      %v2793 = vpop.permute.xlu0 %2792
      %v2797 = vmax.f32 %v2782, %v2789
      %v2798 = vmax.f32 %v2783, %v2791
      %v2799 = vmax.f32 %v2784, %v2793
      %2803 = vrot.lane.b32.xlu0 %v2797, 120
      %v2804 = vpop.permute.xlu0 %2803
      %2805 = vrot.lane.b32.xlu0 %v2798, 120
      %v2806 = vpop.permute.xlu0 %2805
      %2807 = vrot.lane.b32.xlu0 %v2799, 120
      %v2808 = vpop.permute.xlu0 %2807
      %v2812 = vmax.f32 %v2797, %v2804
      %v2813 = vmax.f32 %v2798, %v2806
      %v2814 = vmax.f32 %v2799, %v2808
      %v2815 = vld [vmem:[%s17] sm:$0xff]
      %v2816 = vld [vmem:[%s17 + $0x8] sm:$0xff]
      %v2817 = vld [vmem:[%s17 + $0x10] sm:$0xff]
      %v2818 = vld [vmem:[%s17 + $0x18] sm:$0xff]
      %v2819 = vld [vmem:[%s17 + $0x20] sm:$0x1f]
      %vm2820 = vcmask 302080
      %v2822 = vsel %vm2820, %v2812, 0
      %v2825 = vsel %vm2820, %v2813, 0
      %v2828 = vsel %vm2820, %v2814, 0
      %vm2830 = vcmask 1044480
      %v2832 = vsel %vm2830, %v2819, 0
      %2834 = vmatpush.msra.mxu0 0.0
      %2835 = vmatpush.msra.mxu0 0.0
      %2836 = vmatpush.msra.mxu0 0.0
      %2837 = vmatpush.msra.mxu0 0.0
      %2838 = vmatpush.msra.mxu0 0.0
      %2839 = vmatpush.msra.mxu0 0.0
      %2840 = vmatpush.msra.mxu0 0.0
      %2841 = vmatpush.msra.mxu0 0.0
      %2842 = vmatpush.msra.mxu0 0.0
      %2843 = vmatpush.msra.mxu0 0.0
      %2844 = vmatpush.msra.mxu0 0.0
      %2845 = vmatpush.msra.mxu0 %v2832
      %2846 = vmatpush.msra.mxu0 %v2818
      %2847 = vmatpush.msra.mxu0 %v2817
      %2848 = vmatpush.msra.mxu0 %v2816
      %2849 = vmatpush.msra.mxu0 %v2815
      %2850 = vmatmul.f32.gmra.mxu0 %v2822
      %v2851 = vpop.f32.mrf.mxu0
      %v2852 = vadd.f32 0.0, %v2851
      %2853 = vmatmul.f32.gmra.mxu0 %v2825
      %v2854 = vpop.f32.mrf.mxu0
      %v2855 = vadd.f32 0.0, %v2854
      %2856 = vmatmul.f32.gmra.mxu0 %v2828
      %v2857 = vpop.f32.mrf.mxu0
      %v2858 = vadd.f32 0.0, %v2857
      %2859 = vdwg.mxu0
      %v2860 = vld [vmem:[%s12] sm:$0xff]
      %v2861 = vld [vmem:[%s12 + $0x8] sm:$0xff]
      %v2862 = vld [vmem:[%s12 + $0x10] sm:$0xff]
      %v2863 = vld [vmem:[%s12 + $0x18] sm:$0xff]
      %v2864 = vld [vmem:[%s12 + $0x20] sm:$0xff]
      %v2865 = vld [vmem:[%s12 + $0x28] sm:$0xff]
      %v2866 = vld [vmem:[%s12 + $0x30] sm:$0xff]
      %v2867 = vld [vmem:[%s12 + $0x38] sm:$0xff]
      %v2868 = vld [vmem:[%s12 + $0x40] sm:$0xff]
      %v2869 = vld [vmem:[%s12 + $0x48] sm:$0xff]
      %v2870 = vld [vmem:[%s11] sm:$0xff]
      %v2871 = vld [vmem:[%s11 + $0x8] sm:$0xff]
      %v2872 = vld [vmem:[%s11 + $0x10] sm:$0xff]
      %v2873 = vld [vmem:[%s11 + $0x18] sm:$0xff]
      %v2874 = vld [vmem:[%s11 + $0x20] sm:$0xff]
      %v2875 = vld [vmem:[%s11 + $0x28] sm:$0xff]
      %v2876 = vld [vmem:[%s11 + $0x30] sm:$0xff]
      %v2877 = vld [vmem:[%s11 + $0x38] sm:$0xff]
      %v2878 = vld [vmem:[%s11 + $0x40] sm:$0xff]
      %v2879 = vld [vmem:[%s11 + $0x48] sm:$0xff]
      %vm2880 = vcmask 162816
      %v2882 = vsel %vm2880, %v2870, 0
      %v2885 = vsel %vm2880, %v2871, 0
      %v2888 = vsel %vm2880, %v2872, 0
      %v2891 = vsel %vm2880, %v2873, 0
      %v2894 = vsel %vm2880, %v2874, 0
      %v2897 = vsel %vm2880, %v2875, 0
      %v2900 = vsel %vm2880, %v2876, 0
      %v2903 = vsel %vm2880, %v2877, 0
      %v2906 = vsel %vm2880, %v2878, 0
      %v2909 = vsel %vm2880, %v2879, 0
      %v2912 = vsel %vm2138, %v2858, 0
      %2914 = vmatpush.msra.mxu0 0.0
      %2915 = vmatpush.msra.mxu0 0.0
      %2916 = vmatpush.msra.mxu0 0.0
      %2917 = vmatpush.msra.mxu0 0.0
      %2918 = vmatpush.msra.mxu0 0.0
      %2919 = vmatpush.msra.mxu0 0.0
      %2920 = vmatpush.msra.mxu0 0.0
      %2921 = vmatpush.msra.mxu0 0.0
      %2922 = vmatpush.msra.mxu0 0.0
      %2923 = vmatpush.msra.mxu0 0.0
      %2924 = vmatpush.msra.mxu0 0.0
      %2925 = vmatpush.msra.mxu0 0.0
      %2926 = vmatpush.msra.mxu0 0.0
      %2927 = vmatpush.msra.mxu0 %v2912
      %2928 = vmatpush.msra.mxu0 %v2855
      %2929 = vmatpush.msra.mxu0 %v2852
      %2930 = vmatmul.f32.gmra.mxu0 %v2882
      %v2931 = vpop.f32.mrf.mxu0
      %v2932 = vadd.f32 0.0, %v2931
      %2933 = vmatmul.f32.gmra.mxu0 %v2885
      %v2934 = vpop.f32.mrf.mxu0
      %v2935 = vadd.f32 0.0, %v2934
      %2936 = vmatmul.f32.gmra.mxu0 %v2888
      %v2937 = vpop.f32.mrf.mxu0
      %v2938 = vadd.f32 0.0, %v2937
      %2939 = vmatmul.f32.gmra.mxu0 %v2891
      %v2940 = vpop.f32.mrf.mxu0
      %v2941 = vadd.f32 0.0, %v2940
      %2942 = vmatmul.f32.gmra.mxu0 %v2894
      %v2943 = vpop.f32.mrf.mxu0
      %v2944 = vadd.f32 0.0, %v2943
      %2945 = vmatmul.f32.gmra.mxu0 %v2897
      %v2946 = vpop.f32.mrf.mxu0
      %v2947 = vadd.f32 0.0, %v2946
      %2948 = vmatmul.f32.gmra.mxu0 %v2900
      %v2949 = vpop.f32.mrf.mxu0
      %v2950 = vadd.f32 0.0, %v2949
      %2951 = vmatmul.f32.gmra.mxu0 %v2903
      %v2952 = vpop.f32.mrf.mxu0
      %v2953 = vadd.f32 0.0, %v2952
      %2954 = vmatmul.f32.gmra.mxu0 %v2906
      %v2955 = vpop.f32.mrf.mxu0
      %v2956 = vadd.f32 0.0, %v2955
      %2957 = vmatmul.f32.gmra.mxu0 %v2909
      %v2958 = vpop.f32.mrf.mxu0
      %v2959 = vadd.f32 0.0, %v2958
      %2960 = vdwg.mxu0
      %v2961 = vadd.f32 %v2860, %v2932
      %v2962 = vadd.f32 %v2861, %v2935
      %v2963 = vadd.f32 %v2862, %v2938
      %v2964 = vadd.f32 %v2863, %v2941
      %v2965 = vadd.f32 %v2864, %v2944
      %v2966 = vadd.f32 %v2865, %v2947
      %v2967 = vadd.f32 %v2866, %v2950
      %v2968 = vadd.f32 %v2867, %v2953
      %v2969 = vadd.f32 %v2868, %v2956
      %v2970 = vadd.f32 %v2869, %v2959
      %s2971 = scalar_lea.vmem %s11, 80
      %v2972 = vld [vmem:[%s2971] sm:$0xff]
      %v2973 = vld [vmem:[%s2971 + $0x8] sm:$0xff]
      %v2974 = vld [vmem:[%s2971 + $0x10] sm:$0xff]
      %v2975 = vld [vmem:[%s2971 + $0x18] sm:$0xff]
      %v2976 = vld [vmem:[%s2971 + $0x20] sm:$0xff]
      %v2977 = vld [vmem:[%s2971 + $0x28] sm:$0xff]
      %v2978 = vld [vmem:[%s2971 + $0x30] sm:$0xff]
      %v2979 = vld [vmem:[%s2971 + $0x38] sm:$0xff]
      %v2980 = vld [vmem:[%s2971 + $0x40] sm:$0xff]
      %v2981 = vld [vmem:[%s2971 + $0x48] sm:$0xff]
      %2984 = vrot.lane.b32.xlu0 %v2852, 127
      %v2985 = vpop.permute.xlu0 %2984
      %2986 = vrot.lane.b32.xlu0 %v2855, 127
      %v2987 = vpop.permute.xlu0 %2986
      %2988 = vrot.lane.b32.xlu0 %v2858, 127
      %v2989 = vpop.permute.xlu0 %2988
      %v2993 = vsel %vm2880, %v2972, 0
      %v2996 = vsel %vm2880, %v2973, 0
      %v2999 = vsel %vm2880, %v2974, 0
      %v3002 = vsel %vm2880, %v2975, 0
      %v3005 = vsel %vm2880, %v2976, 0
      %v3008 = vsel %vm2880, %v2977, 0
      %v3011 = vsel %vm2880, %v2978, 0
      %v3014 = vsel %vm2880, %v2979, 0
      %v3017 = vsel %vm2880, %v2980, 0
      %v3020 = vsel %vm2880, %v2981, 0
      %v3022 = vsel %vm2138, %v2989, 0
      %3024 = vmatpush.msra.mxu0 0.0
      %3025 = vmatpush.msra.mxu0 0.0
      %3026 = vmatpush.msra.mxu0 0.0
      %3027 = vmatpush.msra.mxu0 0.0
      %3028 = vmatpush.msra.mxu0 0.0
      %3029 = vmatpush.msra.mxu0 0.0
      %3030 = vmatpush.msra.mxu0 0.0
      %3031 = vmatpush.msra.mxu0 0.0
      %3032 = vmatpush.msra.mxu0 0.0
      %3033 = vmatpush.msra.mxu0 0.0
      %3034 = vmatpush.msra.mxu0 0.0
      %3035 = vmatpush.msra.mxu0 0.0
      %3036 = vmatpush.msra.mxu0 0.0
      %3037 = vmatpush.msra.mxu0 %v3022
      %3038 = vmatpush.msra.mxu0 %v2987
      %3039 = vmatpush.msra.mxu0 %v2985
      %3040 = vmatmul.f32.gmra.mxu0 %v2993
      %v3041 = vpop.f32.mrf.mxu0
      %v3042 = vadd.f32 0.0, %v3041
      %3043 = vmatmul.f32.gmra.mxu0 %v2996
      %v3044 = vpop.f32.mrf.mxu0
      %v3045 = vadd.f32 0.0, %v3044
      %3046 = vmatmul.f32.gmra.mxu0 %v2999
      %v3047 = vpop.f32.mrf.mxu0
      %v3048 = vadd.f32 0.0, %v3047
      %3049 = vmatmul.f32.gmra.mxu0 %v3002
      %v3050 = vpop.f32.mrf.mxu0
      %v3051 = vadd.f32 0.0, %v3050
      %3052 = vmatmul.f32.gmra.mxu0 %v3005
      %v3053 = vpop.f32.mrf.mxu0
      %v3054 = vadd.f32 0.0, %v3053
      %3055 = vmatmul.f32.gmra.mxu0 %v3008
      %v3056 = vpop.f32.mrf.mxu0
      %v3057 = vadd.f32 0.0, %v3056
      %3058 = vmatmul.f32.gmra.mxu0 %v3011
      %v3059 = vpop.f32.mrf.mxu0
      %v3060 = vadd.f32 0.0, %v3059
      %3061 = vmatmul.f32.gmra.mxu0 %v3014
      %v3062 = vpop.f32.mrf.mxu0
      %v3063 = vadd.f32 0.0, %v3062
      %3064 = vmatmul.f32.gmra.mxu0 %v3017
      %v3065 = vpop.f32.mrf.mxu0
      %v3066 = vadd.f32 0.0, %v3065
      %3067 = vmatmul.f32.gmra.mxu0 %v3020
      %v3068 = vpop.f32.mrf.mxu0
      %v3069 = vadd.f32 0.0, %v3068
      %3070 = vdwg.mxu0
      %v3071 = vadd.f32 %v2961, %v3042
      %v3072 = vadd.f32 %v2962, %v3045
      %v3073 = vadd.f32 %v2963, %v3048
      %v3074 = vadd.f32 %v2964, %v3051
      %v3075 = vadd.f32 %v2965, %v3054
      %v3076 = vadd.f32 %v2966, %v3057
      %v3077 = vadd.f32 %v2967, %v3060
      %v3078 = vadd.f32 %v2968, %v3063
      %v3079 = vadd.f32 %v2969, %v3066
      %v3080 = vadd.f32 %v2970, %v3069
      %s3081 = scalar_lea.vmem %s11, 160
      %v3082 = vld [vmem:[%s3081] sm:$0xff]
      %v3083 = vld [vmem:[%s3081 + $0x8] sm:$0xff]
      %v3084 = vld [vmem:[%s3081 + $0x10] sm:$0xff]
      %v3085 = vld [vmem:[%s3081 + $0x18] sm:$0xff]
      %v3086 = vld [vmem:[%s3081 + $0x20] sm:$0xff]
      %v3087 = vld [vmem:[%s3081 + $0x28] sm:$0xff]
      %v3088 = vld [vmem:[%s3081 + $0x30] sm:$0xff]
      %v3089 = vld [vmem:[%s3081 + $0x38] sm:$0xff]
      %v3090 = vld [vmem:[%s3081 + $0x40] sm:$0xff]
      %v3091 = vld [vmem:[%s3081 + $0x48] sm:$0xff]
      %3092 = vrot.lane.b32.xlu0 %v2852, 126
      %v3093 = vpop.permute.xlu0 %3092
      %3094 = vrot.lane.b32.xlu0 %v2855, 126
      %v3095 = vpop.permute.xlu0 %3094
      %3096 = vrot.lane.b32.xlu0 %v2858, 126
      %v3097 = vpop.permute.xlu0 %3096
      %v3101 = vsel %vm2880, %v3082, 0
      %v3104 = vsel %vm2880, %v3083, 0
      %v3107 = vsel %vm2880, %v3084, 0
      %v3110 = vsel %vm2880, %v3085, 0
      %v3113 = vsel %vm2880, %v3086, 0
      %v3116 = vsel %vm2880, %v3087, 0
      %v3119 = vsel %vm2880, %v3088, 0
      %v3122 = vsel %vm2880, %v3089, 0
      %v3125 = vsel %vm2880, %v3090, 0
      %v3128 = vsel %vm2880, %v3091, 0
      %v3130 = vsel %vm2138, %v3097, 0
      %3132 = vmatpush.msra.mxu0 0.0
      %3133 = vmatpush.msra.mxu0 0.0
      %3134 = vmatpush.msra.mxu0 0.0
      %3135 = vmatpush.msra.mxu0 0.0
      %3136 = vmatpush.msra.mxu0 0.0
      %3137 = vmatpush.msra.mxu0 0.0
      %3138 = vmatpush.msra.mxu0 0.0
      %3139 = vmatpush.msra.mxu0 0.0
      %3140 = vmatpush.msra.mxu0 0.0
      %3141 = vmatpush.msra.mxu0 0.0
      %3142 = vmatpush.msra.mxu0 0.0
      %3143 = vmatpush.msra.mxu0 0.0
      %3144 = vmatpush.msra.mxu0 0.0
      %3145 = vmatpush.msra.mxu0 %v3130
      %3146 = vmatpush.msra.mxu0 %v3095
      %3147 = vmatpush.msra.mxu0 %v3093
      %3148 = vmatmul.f32.gmra.mxu0 %v3101
      %v3149 = vpop.f32.mrf.mxu0
      %v3150 = vadd.f32 0.0, %v3149
      %3151 = vmatmul.f32.gmra.mxu0 %v3104
      %v3152 = vpop.f32.mrf.mxu0
      %v3153 = vadd.f32 0.0, %v3152
      %3154 = vmatmul.f32.gmra.mxu0 %v3107
      %v3155 = vpop.f32.mrf.mxu0
      %v3156 = vadd.f32 0.0, %v3155
      %3157 = vmatmul.f32.gmra.mxu0 %v3110
      %v3158 = vpop.f32.mrf.mxu0
      %v3159 = vadd.f32 0.0, %v3158
      %3160 = vmatmul.f32.gmra.mxu0 %v3113
      %v3161 = vpop.f32.mrf.mxu0
      %v3162 = vadd.f32 0.0, %v3161
      %3163 = vmatmul.f32.gmra.mxu0 %v3116
      %v3164 = vpop.f32.mrf.mxu0
      %v3165 = vadd.f32 0.0, %v3164
      %3166 = vmatmul.f32.gmra.mxu0 %v3119
      %v3167 = vpop.f32.mrf.mxu0
      %v3168 = vadd.f32 0.0, %v3167
      %3169 = vmatmul.f32.gmra.mxu0 %v3122
      %v3170 = vpop.f32.mrf.mxu0
      %v3171 = vadd.f32 0.0, %v3170
      %3172 = vmatmul.f32.gmra.mxu0 %v3125
      %v3173 = vpop.f32.mrf.mxu0
      %v3174 = vadd.f32 0.0, %v3173
      %3175 = vmatmul.f32.gmra.mxu0 %v3128
      %v3176 = vpop.f32.mrf.mxu0
      %v3177 = vadd.f32 0.0, %v3176
      %3178 = vdwg.mxu0
      %v3179 = vadd.f32 %v3071, %v3150
      %v3180 = vadd.f32 %v3072, %v3153
      %v3181 = vadd.f32 %v3073, %v3156
      %v3182 = vadd.f32 %v3074, %v3159
      %v3183 = vadd.f32 %v3075, %v3162
      %v3184 = vadd.f32 %v3076, %v3165
      %v3185 = vadd.f32 %v3077, %v3168
      %v3186 = vadd.f32 %v3078, %v3171
      %v3187 = vadd.f32 %v3079, %v3174
      %v3188 = vadd.f32 %v3080, %v3177
      %s3189 = scalar_lea.vmem %s11, 240
      %v3190 = vld [vmem:[%s3189] sm:$0xff]
      %v3191 = vld [vmem:[%s3189 + $0x8] sm:$0xff]
      %v3192 = vld [vmem:[%s3189 + $0x10] sm:$0xff]
      %v3193 = vld [vmem:[%s3189 + $0x18] sm:$0xff]
      %v3194 = vld [vmem:[%s3189 + $0x20] sm:$0xff]
      %v3195 = vld [vmem:[%s3189 + $0x28] sm:$0xff]
      %v3196 = vld [vmem:[%s3189 + $0x30] sm:$0xff]
      %v3197 = vld [vmem:[%s3189 + $0x38] sm:$0xff]
      %v3198 = vld [vmem:[%s3189 + $0x40] sm:$0xff]
      %v3199 = vld [vmem:[%s3189 + $0x48] sm:$0xff]
      %3200 = vrot.lane.b32.xlu0 %v2852, 125
      %v3201 = vpop.permute.xlu0 %3200
      %3202 = vrot.lane.b32.xlu0 %v2855, 125
      %v3203 = vpop.permute.xlu0 %3202
      %3204 = vrot.lane.b32.xlu0 %v2858, 125
      %v3205 = vpop.permute.xlu0 %3204
      %v3209 = vsel %vm2880, %v3190, 0
      %v3212 = vsel %vm2880, %v3191, 0
      %v3215 = vsel %vm2880, %v3192, 0
      %v3218 = vsel %vm2880, %v3193, 0
      %v3221 = vsel %vm2880, %v3194, 0
      %v3224 = vsel %vm2880, %v3195, 0
      %v3227 = vsel %vm2880, %v3196, 0
      %v3230 = vsel %vm2880, %v3197, 0
      %v3233 = vsel %vm2880, %v3198, 0
      %v3236 = vsel %vm2880, %v3199, 0
      %v3238 = vsel %vm2138, %v3205, 0
      %3240 = vmatpush.msra.mxu0 0.0
      %3241 = vmatpush.msra.mxu0 0.0
      %3242 = vmatpush.msra.mxu0 0.0
      %3243 = vmatpush.msra.mxu0 0.0
      %3244 = vmatpush.msra.mxu0 0.0
      %3245 = vmatpush.msra.mxu0 0.0
      %3246 = vmatpush.msra.mxu0 0.0
      %3247 = vmatpush.msra.mxu0 0.0
      %3248 = vmatpush.msra.mxu0 0.0
      %3249 = vmatpush.msra.mxu0 0.0
      %3250 = vmatpush.msra.mxu0 0.0
      %3251 = vmatpush.msra.mxu0 0.0
      %3252 = vmatpush.msra.mxu0 0.0
      %3253 = vmatpush.msra.mxu0 %v3238
      %3254 = vmatpush.msra.mxu0 %v3203
      %3255 = vmatpush.msra.mxu0 %v3201
      %3256 = vmatmul.f32.gmra.mxu0 %v3209
      %v3257 = vpop.f32.mrf.mxu0
      %v3258 = vadd.f32 0.0, %v3257
      %3259 = vmatmul.f32.gmra.mxu0 %v3212
      %v3260 = vpop.f32.mrf.mxu0
      %v3261 = vadd.f32 0.0, %v3260
      %3262 = vmatmul.f32.gmra.mxu0 %v3215
      %v3263 = vpop.f32.mrf.mxu0
      %v3264 = vadd.f32 0.0, %v3263
      %3265 = vmatmul.f32.gmra.mxu0 %v3218
      %v3266 = vpop.f32.mrf.mxu0
      %v3267 = vadd.f32 0.0, %v3266
      %3268 = vmatmul.f32.gmra.mxu0 %v3221
      %v3269 = vpop.f32.mrf.mxu0
      %v3270 = vadd.f32 0.0, %v3269
      %3271 = vmatmul.f32.gmra.mxu0 %v3224
      %v3272 = vpop.f32.mrf.mxu0
      %v3273 = vadd.f32 0.0, %v3272
      %3274 = vmatmul.f32.gmra.mxu0 %v3227
      %v3275 = vpop.f32.mrf.mxu0
      %v3276 = vadd.f32 0.0, %v3275
      %3277 = vmatmul.f32.gmra.mxu0 %v3230
      %v3278 = vpop.f32.mrf.mxu0
      %v3279 = vadd.f32 0.0, %v3278
      %3280 = vmatmul.f32.gmra.mxu0 %v3233
      %v3281 = vpop.f32.mrf.mxu0
      %v3282 = vadd.f32 0.0, %v3281
      %3283 = vmatmul.f32.gmra.mxu0 %v3236
      %v3284 = vpop.f32.mrf.mxu0
      %v3285 = vadd.f32 0.0, %v3284
      %3286 = vdwg.mxu0
      %v3287 = vadd.f32 %v3179, %v3258
      %v3288 = vadd.f32 %v3180, %v3261
      %v3289 = vadd.f32 %v3181, %v3264
      %v3290 = vadd.f32 %v3182, %v3267
      %v3291 = vadd.f32 %v3183, %v3270
      %v3292 = vadd.f32 %v3184, %v3273
      %v3293 = vadd.f32 %v3185, %v3276
      %v3294 = vadd.f32 %v3186, %v3279
      %v3295 = vadd.f32 %v3187, %v3282
      %v3296 = vadd.f32 %v3188, %v3285
      %s3297 = scalar_lea.vmem %s11, 320
      %v3298 = vld [vmem:[%s3297] sm:$0xff]
      %v3299 = vld [vmem:[%s3297 + $0x8] sm:$0xff]
      %v3300 = vld [vmem:[%s3297 + $0x10] sm:$0xff]
      %v3301 = vld [vmem:[%s3297 + $0x18] sm:$0xff]
      %v3302 = vld [vmem:[%s3297 + $0x20] sm:$0xff]
      %v3303 = vld [vmem:[%s3297 + $0x28] sm:$0xff]
      %v3304 = vld [vmem:[%s3297 + $0x30] sm:$0xff]
      %v3305 = vld [vmem:[%s3297 + $0x38] sm:$0xff]
      %v3306 = vld [vmem:[%s3297 + $0x40] sm:$0xff]
      %v3307 = vld [vmem:[%s3297 + $0x48] sm:$0xff]
      %3308 = vrot.lane.b32.xlu0 %v2852, 124
      %v3309 = vpop.permute.xlu0 %3308
      %3310 = vrot.lane.b32.xlu0 %v2855, 124
      %v3311 = vpop.permute.xlu0 %3310
      %3312 = vrot.lane.b32.xlu0 %v2858, 124
      %v3313 = vpop.permute.xlu0 %3312
      %v3317 = vsel %vm2880, %v3298, 0
      %v3320 = vsel %vm2880, %v3299, 0
      %v3323 = vsel %vm2880, %v3300, 0
      %v3326 = vsel %vm2880, %v3301, 0
      %v3329 = vsel %vm2880, %v3302, 0
      %v3332 = vsel %vm2880, %v3303, 0
      %v3335 = vsel %vm2880, %v3304, 0
      %v3338 = vsel %vm2880, %v3305, 0
      %v3341 = vsel %vm2880, %v3306, 0
      %v3344 = vsel %vm2880, %v3307, 0
      %v3346 = vsel %vm2138, %v3313, 0
      %3348 = vmatpush.msra.mxu0 0.0
      %3349 = vmatpush.msra.mxu0 0.0
      %3350 = vmatpush.msra.mxu0 0.0
      %3351 = vmatpush.msra.mxu0 0.0
      %3352 = vmatpush.msra.mxu0 0.0
      %3353 = vmatpush.msra.mxu0 0.0
      %3354 = vmatpush.msra.mxu0 0.0
      %3355 = vmatpush.msra.mxu0 0.0
      %3356 = vmatpush.msra.mxu0 0.0
      %3357 = vmatpush.msra.mxu0 0.0
      %3358 = vmatpush.msra.mxu0 0.0
      %3359 = vmatpush.msra.mxu0 0.0
      %3360 = vmatpush.msra.mxu0 0.0
      %3361 = vmatpush.msra.mxu0 %v3346
      %3362 = vmatpush.msra.mxu0 %v3311
      %3363 = vmatpush.msra.mxu0 %v3309
      %3364 = vmatmul.f32.gmra.mxu0 %v3317
      %v3365 = vpop.f32.mrf.mxu0
      %v3366 = vadd.f32 0.0, %v3365
      %3367 = vmatmul.f32.gmra.mxu0 %v3320
      %v3368 = vpop.f32.mrf.mxu0
      %v3369 = vadd.f32 0.0, %v3368
      %3370 = vmatmul.f32.gmra.mxu0 %v3323
      %v3371 = vpop.f32.mrf.mxu0
      %v3372 = vadd.f32 0.0, %v3371
      %3373 = vmatmul.f32.gmra.mxu0 %v3326
      %v3374 = vpop.f32.mrf.mxu0
      %v3375 = vadd.f32 0.0, %v3374
      %3376 = vmatmul.f32.gmra.mxu0 %v3329
      %v3377 = vpop.f32.mrf.mxu0
      %v3378 = vadd.f32 0.0, %v3377
      %3379 = vmatmul.f32.gmra.mxu0 %v3332
      %v3380 = vpop.f32.mrf.mxu0
      %v3381 = vadd.f32 0.0, %v3380
      %3382 = vmatmul.f32.gmra.mxu0 %v3335
      %v3383 = vpop.f32.mrf.mxu0
      %v3384 = vadd.f32 0.0, %v3383
      %3385 = vmatmul.f32.gmra.mxu0 %v3338
      %v3386 = vpop.f32.mrf.mxu0
      %v3387 = vadd.f32 0.0, %v3386
      %3388 = vmatmul.f32.gmra.mxu0 %v3341
      %v3389 = vpop.f32.mrf.mxu0
      %v3390 = vadd.f32 0.0, %v3389
      %3391 = vmatmul.f32.gmra.mxu0 %v3344
      %v3392 = vpop.f32.mrf.mxu0
      %v3393 = vadd.f32 0.0, %v3392
      %3394 = vdwg.mxu0
      %v3395 = vadd.f32 %v3287, %v3366
      %v3396 = vadd.f32 %v3288, %v3369
      %v3397 = vadd.f32 %v3289, %v3372
      %v3398 = vadd.f32 %v3290, %v3375
      %v3399 = vadd.f32 %v3291, %v3378
      %v3400 = vadd.f32 %v3292, %v3381
      %v3401 = vadd.f32 %v3293, %v3384
      %v3402 = vadd.f32 %v3294, %v3387
      %v3403 = vadd.f32 %v3295, %v3390
      %v3404 = vadd.f32 %v3296, %v3393
      %s3405 = scalar_lea.vmem %s11, 400
      %v3406 = vld [vmem:[%s3405] sm:$0xff]
      %v3407 = vld [vmem:[%s3405 + $0x8] sm:$0xff]
      %v3408 = vld [vmem:[%s3405 + $0x10] sm:$0xff]
      %v3409 = vld [vmem:[%s3405 + $0x18] sm:$0xff]
      %v3410 = vld [vmem:[%s3405 + $0x20] sm:$0xff]
      %v3411 = vld [vmem:[%s3405 + $0x28] sm:$0xff]
      %v3412 = vld [vmem:[%s3405 + $0x30] sm:$0xff]
      %v3413 = vld [vmem:[%s3405 + $0x38] sm:$0xff]
      %v3414 = vld [vmem:[%s3405 + $0x40] sm:$0xff]
      %v3415 = vld [vmem:[%s3405 + $0x48] sm:$0xff]
      %3416 = vrot.lane.b32.xlu0 %v2852, 123
      %v3417 = vpop.permute.xlu0 %3416
      %3418 = vrot.lane.b32.xlu0 %v2855, 123
      %v3419 = vpop.permute.xlu0 %3418
      %3420 = vrot.lane.b32.xlu0 %v2858, 123
      %v3421 = vpop.permute.xlu0 %3420
      %v3425 = vsel %vm2880, %v3406, 0
      %v3428 = vsel %vm2880, %v3407, 0
      %v3431 = vsel %vm2880, %v3408, 0
      %v3434 = vsel %vm2880, %v3409, 0
      %v3437 = vsel %vm2880, %v3410, 0
      %v3440 = vsel %vm2880, %v3411, 0
      %v3443 = vsel %vm2880, %v3412, 0
      %v3446 = vsel %vm2880, %v3413, 0
      %v3449 = vsel %vm2880, %v3414, 0
      %v3452 = vsel %vm2880, %v3415, 0
      %v3454 = vsel %vm2138, %v3421, 0
      %3456 = vmatpush.msra.mxu0 0.0
      %3457 = vmatpush.msra.mxu0 0.0
      %3458 = vmatpush.msra.mxu0 0.0
      %3459 = vmatpush.msra.mxu0 0.0
      %3460 = vmatpush.msra.mxu0 0.0
      %3461 = vmatpush.msra.mxu0 0.0
      %3462 = vmatpush.msra.mxu0 0.0
      %3463 = vmatpush.msra.mxu0 0.0
      %3464 = vmatpush.msra.mxu0 0.0
      %3465 = vmatpush.msra.mxu0 0.0
      %3466 = vmatpush.msra.mxu0 0.0
      %3467 = vmatpush.msra.mxu0 0.0
      %3468 = vmatpush.msra.mxu0 0.0
      %3469 = vmatpush.msra.mxu0 %v3454
      %3470 = vmatpush.msra.mxu0 %v3419
      %3471 = vmatpush.msra.mxu0 %v3417
      %3472 = vmatmul.f32.gmra.mxu0 %v3425
      %v3473 = vpop.f32.mrf.mxu0
      %v3474 = vadd.f32 0.0, %v3473
      %3475 = vmatmul.f32.gmra.mxu0 %v3428
      %v3476 = vpop.f32.mrf.mxu0
      %v3477 = vadd.f32 0.0, %v3476
      %3478 = vmatmul.f32.gmra.mxu0 %v3431
      %v3479 = vpop.f32.mrf.mxu0
      %v3480 = vadd.f32 0.0, %v3479
      %3481 = vmatmul.f32.gmra.mxu0 %v3434
      %v3482 = vpop.f32.mrf.mxu0
      %v3483 = vadd.f32 0.0, %v3482
      %3484 = vmatmul.f32.gmra.mxu0 %v3437
      %v3485 = vpop.f32.mrf.mxu0
      %v3486 = vadd.f32 0.0, %v3485
      %3487 = vmatmul.f32.gmra.mxu0 %v3440
      %v3488 = vpop.f32.mrf.mxu0
      %v3489 = vadd.f32 0.0, %v3488
      %3490 = vmatmul.f32.gmra.mxu0 %v3443
      %v3491 = vpop.f32.mrf.mxu0
      %v3492 = vadd.f32 0.0, %v3491
      %3493 = vmatmul.f32.gmra.mxu0 %v3446
      %v3494 = vpop.f32.mrf.mxu0
      %v3495 = vadd.f32 0.0, %v3494
      %3496 = vmatmul.f32.gmra.mxu0 %v3449
      %v3497 = vpop.f32.mrf.mxu0
      %v3498 = vadd.f32 0.0, %v3497
      %3499 = vmatmul.f32.gmra.mxu0 %v3452
      %v3500 = vpop.f32.mrf.mxu0
      %v3501 = vadd.f32 0.0, %v3500
      %3502 = vdwg.mxu0
      %v3503 = vadd.f32 %v3395, %v3474
      %v3504 = vadd.f32 %v3396, %v3477
      %v3505 = vadd.f32 %v3397, %v3480
      %v3506 = vadd.f32 %v3398, %v3483
      %v3507 = vadd.f32 %v3399, %v3486
      %v3508 = vadd.f32 %v3400, %v3489
      %v3509 = vadd.f32 %v3401, %v3492
      %v3510 = vadd.f32 %v3402, %v3495
      %v3511 = vadd.f32 %v3403, %v3498
      %v3512 = vadd.f32 %v3404, %v3501
      %s3513 = scalar_lea.vmem %s11, 480
      %v3514 = vld [vmem:[%s3513] sm:$0xff]
      %v3515 = vld [vmem:[%s3513 + $0x8] sm:$0xff]
      %v3516 = vld [vmem:[%s3513 + $0x10] sm:$0xff]
      %v3517 = vld [vmem:[%s3513 + $0x18] sm:$0xff]
      %v3518 = vld [vmem:[%s3513 + $0x20] sm:$0xff]
      %v3519 = vld [vmem:[%s3513 + $0x28] sm:$0xff]
      %v3520 = vld [vmem:[%s3513 + $0x30] sm:$0xff]
      %v3521 = vld [vmem:[%s3513 + $0x38] sm:$0xff]
      %v3522 = vld [vmem:[%s3513 + $0x40] sm:$0xff]
      %v3523 = vld [vmem:[%s3513 + $0x48] sm:$0xff]
      %3524 = vrot.lane.b32.xlu0 %v2852, 122
      %v3525 = vpop.permute.xlu0 %3524
      %3526 = vrot.lane.b32.xlu0 %v2855, 122
      %v3527 = vpop.permute.xlu0 %3526
      %3528 = vrot.lane.b32.xlu0 %v2858, 122
      %v3529 = vpop.permute.xlu0 %3528
      %v3533 = vsel %vm2880, %v3514, 0
      %v3536 = vsel %vm2880, %v3515, 0
      %v3539 = vsel %vm2880, %v3516, 0
      %v3542 = vsel %vm2880, %v3517, 0
      %v3545 = vsel %vm2880, %v3518, 0
      %v3548 = vsel %vm2880, %v3519, 0
      %v3551 = vsel %vm2880, %v3520, 0
      %v3554 = vsel %vm2880, %v3521, 0
      %v3557 = vsel %vm2880, %v3522, 0
      %v3560 = vsel %vm2880, %v3523, 0
      %v3562 = vsel %vm2138, %v3529, 0
      %3564 = vmatpush.msra.mxu0 0.0
      %3565 = vmatpush.msra.mxu0 0.0
      %3566 = vmatpush.msra.mxu0 0.0
      %3567 = vmatpush.msra.mxu0 0.0
      %3568 = vmatpush.msra.mxu0 0.0
      %3569 = vmatpush.msra.mxu0 0.0
      %3570 = vmatpush.msra.mxu0 0.0
      %3571 = vmatpush.msra.mxu0 0.0
      %3572 = vmatpush.msra.mxu0 0.0
      %3573 = vmatpush.msra.mxu0 0.0
      %3574 = vmatpush.msra.mxu0 0.0
      %3575 = vmatpush.msra.mxu0 0.0
      %3576 = vmatpush.msra.mxu0 0.0
      %3577 = vmatpush.msra.mxu0 %v3562
      %3578 = vmatpush.msra.mxu0 %v3527
      %3579 = vmatpush.msra.mxu0 %v3525
      %3580 = vmatmul.f32.gmra.mxu0 %v3533
      %v3581 = vpop.f32.mrf.mxu0
      %v3582 = vadd.f32 0.0, %v3581
      %3583 = vmatmul.f32.gmra.mxu0 %v3536
      %v3584 = vpop.f32.mrf.mxu0
      %v3585 = vadd.f32 0.0, %v3584
      %3586 = vmatmul.f32.gmra.mxu0 %v3539
      %v3587 = vpop.f32.mrf.mxu0
      %v3588 = vadd.f32 0.0, %v3587
      %3589 = vmatmul.f32.gmra.mxu0 %v3542
      %v3590 = vpop.f32.mrf.mxu0
      %v3591 = vadd.f32 0.0, %v3590
      %3592 = vmatmul.f32.gmra.mxu0 %v3545
      %v3593 = vpop.f32.mrf.mxu0
      %v3594 = vadd.f32 0.0, %v3593
      %3595 = vmatmul.f32.gmra.mxu0 %v3548
      %v3596 = vpop.f32.mrf.mxu0
      %v3597 = vadd.f32 0.0, %v3596
      %3598 = vmatmul.f32.gmra.mxu0 %v3551
      %v3599 = vpop.f32.mrf.mxu0
      %v3600 = vadd.f32 0.0, %v3599
      %3601 = vmatmul.f32.gmra.mxu0 %v3554
      %v3602 = vpop.f32.mrf.mxu0
      %v3603 = vadd.f32 0.0, %v3602
      %3604 = vmatmul.f32.gmra.mxu0 %v3557
      %v3605 = vpop.f32.mrf.mxu0
      %v3606 = vadd.f32 0.0, %v3605
      %3607 = vmatmul.f32.gmra.mxu0 %v3560
      %v3608 = vpop.f32.mrf.mxu0
      %v3609 = vadd.f32 0.0, %v3608
      %3610 = vdwg.mxu0
      %v3611 = vadd.f32 %v3503, %v3582
      %v3612 = vadd.f32 %v3504, %v3585
      %v3613 = vadd.f32 %v3505, %v3588
      %v3614 = vadd.f32 %v3506, %v3591
      %v3615 = vadd.f32 %v3507, %v3594
      %v3616 = vadd.f32 %v3508, %v3597
      %v3617 = vadd.f32 %v3509, %v3600
      %v3618 = vadd.f32 %v3510, %v3603
      %v3619 = vadd.f32 %v3511, %v3606
      %v3620 = vadd.f32 %v3512, %v3609
      %s3621 = scalar_lea.vmem %s11, 560
      %v3622 = vld [vmem:[%s3621] sm:$0xff]
      %v3623 = vld [vmem:[%s3621 + $0x8] sm:$0xff]
      %v3624 = vld [vmem:[%s3621 + $0x10] sm:$0xff]
      %v3625 = vld [vmem:[%s3621 + $0x18] sm:$0xff]
      %v3626 = vld [vmem:[%s3621 + $0x20] sm:$0xff]
      %v3627 = vld [vmem:[%s3621 + $0x28] sm:$0xff]
      %v3628 = vld [vmem:[%s3621 + $0x30] sm:$0xff]
      %v3629 = vld [vmem:[%s3621 + $0x38] sm:$0xff]
      %v3630 = vld [vmem:[%s3621 + $0x40] sm:$0xff]
      %v3631 = vld [vmem:[%s3621 + $0x48] sm:$0xff]
      %3632 = vrot.lane.b32.xlu0 %v2852, 121
      %v3633 = vpop.permute.xlu0 %3632
      %3634 = vrot.lane.b32.xlu0 %v2855, 121
      %v3635 = vpop.permute.xlu0 %3634
      %3636 = vrot.lane.b32.xlu0 %v2858, 121
      %v3637 = vpop.permute.xlu0 %3636
      %v3641 = vsel %vm2880, %v3622, 0
      %v3644 = vsel %vm2880, %v3623, 0
      %v3647 = vsel %vm2880, %v3624, 0
      %v3650 = vsel %vm2880, %v3625, 0
      %v3653 = vsel %vm2880, %v3626, 0
      %v3656 = vsel %vm2880, %v3627, 0
      %v3659 = vsel %vm2880, %v3628, 0
      %v3662 = vsel %vm2880, %v3629, 0
      %v3665 = vsel %vm2880, %v3630, 0
      %v3668 = vsel %vm2880, %v3631, 0
      %v3670 = vsel %vm2138, %v3637, 0
      %3672 = vmatpush.msra.mxu0 0.0
      %3673 = vmatpush.msra.mxu0 0.0
      %3674 = vmatpush.msra.mxu0 0.0
      %3675 = vmatpush.msra.mxu0 0.0
      %3676 = vmatpush.msra.mxu0 0.0
      %3677 = vmatpush.msra.mxu0 0.0
      %3678 = vmatpush.msra.mxu0 0.0
      %3679 = vmatpush.msra.mxu0 0.0
      %3680 = vmatpush.msra.mxu0 0.0
      %3681 = vmatpush.msra.mxu0 0.0
      %3682 = vmatpush.msra.mxu0 0.0
      %3683 = vmatpush.msra.mxu0 0.0
      %3684 = vmatpush.msra.mxu0 0.0
      %3685 = vmatpush.msra.mxu0 %v3670
      %3686 = vmatpush.msra.mxu0 %v3635
      %3687 = vmatpush.msra.mxu0 %v3633
      %3688 = vmatmul.f32.gmra.mxu0 %v3641
      %v3689 = vpop.f32.mrf.mxu0
      %v3690 = vadd.f32 0.0, %v3689
      %3691 = vmatmul.f32.gmra.mxu0 %v3644
      %v3692 = vpop.f32.mrf.mxu0
      %v3693 = vadd.f32 0.0, %v3692
      %3694 = vmatmul.f32.gmra.mxu0 %v3647
      %v3695 = vpop.f32.mrf.mxu0
      %v3696 = vadd.f32 0.0, %v3695
      %3697 = vmatmul.f32.gmra.mxu0 %v3650
      %v3698 = vpop.f32.mrf.mxu0
      %v3699 = vadd.f32 0.0, %v3698
      %3700 = vmatmul.f32.gmra.mxu0 %v3653
      %v3701 = vpop.f32.mrf.mxu0
      %v3702 = vadd.f32 0.0, %v3701
      %3703 = vmatmul.f32.gmra.mxu0 %v3656
      %v3704 = vpop.f32.mrf.mxu0
      %v3705 = vadd.f32 0.0, %v3704
      %3706 = vmatmul.f32.gmra.mxu0 %v3659
      %v3707 = vpop.f32.mrf.mxu0
      %v3708 = vadd.f32 0.0, %v3707
      %3709 = vmatmul.f32.gmra.mxu0 %v3662
      %v3710 = vpop.f32.mrf.mxu0
      %v3711 = vadd.f32 0.0, %v3710
      %3712 = vmatmul.f32.gmra.mxu0 %v3665
      %v3713 = vpop.f32.mrf.mxu0
      %v3714 = vadd.f32 0.0, %v3713
      %3715 = vmatmul.f32.gmra.mxu0 %v3668
      %v3716 = vpop.f32.mrf.mxu0
      %v3717 = vadd.f32 0.0, %v3716
      %3718 = vdwg.mxu0
      %v3719 = vadd.f32 %v3611, %v3690
      %v3720 = vadd.f32 %v3612, %v3693
      %v3721 = vadd.f32 %v3613, %v3696
      %v3722 = vadd.f32 %v3614, %v3699
      %v3723 = vadd.f32 %v3615, %v3702
      %v3724 = vadd.f32 %v3616, %v3705
      %v3725 = vadd.f32 %v3617, %v3708
      %v3726 = vadd.f32 %v3618, %v3711
      %v3727 = vadd.f32 %v3619, %v3714
      %v3728 = vadd.f32 %v3620, %v3717
      %s3729 = scalar_lea.vmem %s11, 640
      %v3730 = vld [vmem:[%s3729] sm:$0xff]
      %v3731 = vld [vmem:[%s3729 + $0x8] sm:$0xff]
      %v3732 = vld [vmem:[%s3729 + $0x10] sm:$0xff]
      %v3733 = vld [vmem:[%s3729 + $0x18] sm:$0xff]
      %v3734 = vld [vmem:[%s3729 + $0x20] sm:$0xff]
      %v3735 = vld [vmem:[%s3729 + $0x28] sm:$0xff]
      %v3736 = vld [vmem:[%s3729 + $0x30] sm:$0xff]
      %v3737 = vld [vmem:[%s3729 + $0x38] sm:$0xff]
      %v3738 = vld [vmem:[%s3729 + $0x40] sm:$0xff]
      %v3739 = vld [vmem:[%s3729 + $0x48] sm:$0xff]
      %3740 = vrot.lane.b32.xlu0 %v2852, 120
      %v3741 = vpop.permute.xlu0 %3740
      %3742 = vrot.lane.b32.xlu0 %v2855, 120
      %v3743 = vpop.permute.xlu0 %3742
      %3744 = vrot.lane.b32.xlu0 %v2858, 120
      %v3745 = vpop.permute.xlu0 %3744
      %v3749 = vsel %vm2880, %v3730, 0
      %v3752 = vsel %vm2880, %v3731, 0
      %v3755 = vsel %vm2880, %v3732, 0
      %v3758 = vsel %vm2880, %v3733, 0
      %v3761 = vsel %vm2880, %v3734, 0
      %v3764 = vsel %vm2880, %v3735, 0
      %v3767 = vsel %vm2880, %v3736, 0
      %v3770 = vsel %vm2880, %v3737, 0
      %v3773 = vsel %vm2880, %v3738, 0
      %v3776 = vsel %vm2880, %v3739, 0
      %v3778 = vsel %vm2138, %v3745, 0
      %3780 = vmatpush.msra.mxu0 0.0
      %3781 = vmatpush.msra.mxu0 0.0
      %3782 = vmatpush.msra.mxu0 0.0
      %3783 = vmatpush.msra.mxu0 0.0
      %3784 = vmatpush.msra.mxu0 0.0
      %3785 = vmatpush.msra.mxu0 0.0
      %3786 = vmatpush.msra.mxu0 0.0
      %3787 = vmatpush.msra.mxu0 0.0
      %3788 = vmatpush.msra.mxu0 0.0
      %3789 = vmatpush.msra.mxu0 0.0
      %3790 = vmatpush.msra.mxu0 0.0
      %3791 = vmatpush.msra.mxu0 0.0
      %3792 = vmatpush.msra.mxu0 0.0
      %3793 = vmatpush.msra.mxu0 %v3778
      %3794 = vmatpush.msra.mxu0 %v3743
      %3795 = vmatpush.msra.mxu0 %v3741
      %3796 = vmatmul.f32.gmra.mxu0 %v3749
      %v3797 = vpop.f32.mrf.mxu0
      %v3798 = vadd.f32 0.0, %v3797
      %3799 = vmatmul.f32.gmra.mxu0 %v3752
      %v3800 = vpop.f32.mrf.mxu0
      %v3801 = vadd.f32 0.0, %v3800
      %3802 = vmatmul.f32.gmra.mxu0 %v3755
      %v3803 = vpop.f32.mrf.mxu0
      %v3804 = vadd.f32 0.0, %v3803
      %3805 = vmatmul.f32.gmra.mxu0 %v3758
      %v3806 = vpop.f32.mrf.mxu0
      %v3807 = vadd.f32 0.0, %v3806
      %3808 = vmatmul.f32.gmra.mxu0 %v3761
      %v3809 = vpop.f32.mrf.mxu0
      %v3810 = vadd.f32 0.0, %v3809
      %3811 = vmatmul.f32.gmra.mxu0 %v3764
      %v3812 = vpop.f32.mrf.mxu0
      %v3813 = vadd.f32 0.0, %v3812
      %3814 = vmatmul.f32.gmra.mxu0 %v3767
      %v3815 = vpop.f32.mrf.mxu0
      %v3816 = vadd.f32 0.0, %v3815
      %3817 = vmatmul.f32.gmra.mxu0 %v3770
      %v3818 = vpop.f32.mrf.mxu0
      %v3819 = vadd.f32 0.0, %v3818
      %3820 = vmatmul.f32.gmra.mxu0 %v3773
      %v3821 = vpop.f32.mrf.mxu0
      %v3822 = vadd.f32 0.0, %v3821
      %3823 = vmatmul.f32.gmra.mxu0 %v3776
      %v3824 = vpop.f32.mrf.mxu0
      %v3825 = vadd.f32 0.0, %v3824
      %3826 = vdwg.mxu0
      %v3827 = vadd.f32 %v3719, %v3798
      %v3828 = vadd.f32 %v3720, %v3801
      %v3829 = vadd.f32 %v3721, %v3804
      %v3830 = vadd.f32 %v3722, %v3807
      %v3831 = vadd.f32 %v3723, %v3810
      %v3832 = vadd.f32 %v3724, %v3813
      %v3833 = vadd.f32 %v3725, %v3816
      %v3834 = vadd.f32 %v3726, %v3819
      %v3835 = vadd.f32 %v3727, %v3822
      %v3836 = vadd.f32 %v3728, %v3825
      %v3837 = vmul.f32 %v3827, 0.1
      %v3838 = vmul.f32 %v3828, 0.1
      %v3839 = vmul.f32 %v3829, 0.1
      %v3840 = vmul.f32 %v3830, 0.1
      %v3841 = vmul.f32 %v3831, 0.1
      %v3842 = vmul.f32 %v3832, 0.1
      %v3843 = vmul.f32 %v3833, 0.1
      %v3844 = vmul.f32 %v3834, 0.1
      %v3845 = vmul.f32 %v3835, 0.1
      %v3846 = vmul.f32 %v3836, 0.1
      %v3847 = vmax.f32 %v3827, %v3837
      %v3848 = vmax.f32 %v3828, %v3838
      %v3849 = vmax.f32 %v3829, %v3839
      %v3850 = vmax.f32 %v3830, %v3840
      %v3851 = vmax.f32 %v3831, %v3841
      %v3852 = vmax.f32 %v3832, %v3842
      %v3853 = vmax.f32 %v3833, %v3843
      %v3854 = vmax.f32 %v3834, %v3844
      %v3855 = vmax.f32 %v3835, %v3845
      %v3856 = vmax.f32 %v3836, %v3846
      %v3857 = vld [vmem:[%s13] sm:$0xff]
      %v3858 = vld [vmem:[%s13 + $0x8] sm:$0x3]
      %v3859 = vld [vmem:[%s14] sm:$0xff]
      %v3860 = vld [vmem:[%s14 + $0x8] sm:$0x3]
      %vm3861 = vcmask 654336
      %v3863 = vsel %vm3861, %v3857, 0
      %v3866 = vsel %vm3861, %v3858, 0
      %3868 = vmatpush.msra.mxu0 0.0
      %3869 = vmatpush.msra.mxu0 0.0
      %3870 = vmatpush.msra.mxu0 0.0
      %3871 = vmatpush.msra.mxu0 0.0
      %3872 = vmatpush.msra.mxu0 0.0
      %3873 = vmatpush.msra.mxu0 0.0
      %3874 = vmatpush.msra.mxu0 %v3856
      %3875 = vmatpush.msra.mxu0 %v3855
      %3876 = vmatpush.msra.mxu0 %v3854
      %3877 = vmatpush.msra.mxu0 %v3853
      %3878 = vmatpush.msra.mxu0 %v3852
      %3879 = vmatpush.msra.mxu0 %v3851
      %3880 = vmatpush.msra.mxu0 %v3850
      %3881 = vmatpush.msra.mxu0 %v3849
      %3882 = vmatpush.msra.mxu0 %v3848
      %3883 = vmatpush.msra.mxu0 %v3847
      %3884 = vmatmul.f32.gmra.mxu0 %v3863
      %v3885 = vpop.f32.mrf.mxu0
      %v3886 = vadd.f32 %v3859, %v3885
      %3887 = vmatmul.f32.gmra.mxu0 %v3866
      %v3888 = vpop.f32.mrf.mxu0
      %v3889 = vadd.f32 %v3860, %v3888
      %3890 = vdwg.mxu0
      %vm3891 = vcmask 7168
      %3892 = vst.msk [vmem:[%s599] sm:$0xff] %vm3891, %v3886
      %vm3893 = vcmask 1024
      %3894 = vst.msk [vmem:[%s599 + $0x8] sm:$0x3] %vm3893, %v3889
      %p3895 = scmp.lt.s32.totalorder %s30, 1
      %s3896 = scalar_select %p3895, %s30, 1
      %s3897 = smul.addr %s3896, 2
      %s3898 = smul.addr %s3897, 8
      %s3899 = scalar_lea.vmem %s19, %s3898
      // Predicated region
      $region97: #{simple_cnn_forward.1} parent=95 // pred_check
        %p3900 = pneg %p452
      $region98: #{simple_cnn_forward.1} parent=95 // pred_check_branch
        %3902 = sbr.rel (%p3900) target = $region100
      $region99: #{simple_cnn_forward.1} parent=95 // pred_region
        _
      $region100: #{simple_cnn_forward.1} parent=95 // pred_fallthru
        _
    $region96: #{simple_cnn_forward.1} parent=5 // pred_fallthru
      _
    %p3903 = scmp.le.s32.totalorder 2, %s25
    // Predicated region
    $region101: #{simple_cnn_forward.1} parent=5 // pred_check
      %p3904 = pneg %p3903
    $region102: #{simple_cnn_forward.1} parent=5 // pred_check_branch
      %3906 = sbr.rel (%p3904) target = $region104
    $region103: #{simple_cnn_forward.1} parent=5 // pred_region
      %s3907 = ssub.s32 %s25, 2
      // Predicated region
      $region105: #{simple_cnn_forward.1} parent=103 // pred_check
        %p3908 = pneg %p458
      $region106: #{simple_cnn_forward.1} parent=103 // pred_check_branch
        %3910 = sbr.rel (%p3908) target = $region108
      $region107: #{simple_cnn_forward.1} parent=103 // pred_region
        %p3911 = scmp.lt.s32.totalorder %s31, 1
        %s3912 = scalar_select %p3911, %s31, 1
        %s3913 = smul.addr %s3912, 2
        %s3914 = smul.addr %s3913, 8
        %s3915 = scalar_lea.vmem %s19, %s3914
      $region108: #{simple_cnn_forward.1} parent=103 // pred_fallthru
        _
    $region104: #{simple_cnn_forward.1} parent=5 // pred_fallthru
      _
  $region6: #{simple_cnn_forward.1} parent=0 // loop_footer
    %s29 = sadd.s32 1, %s25
  $region7: #{simple_cnn_forward.1} parent=0 // loop_footer_branch
    %24 = sbr.rel target = $region3
  $region8: #{simple_cnn_forward.1} parent=0 // loop_exit
    _

</llo_original>
